<compile_context>
chip_gen: v5e
topology: v5e:2x2
jax: 0.10.0
libtpu: 0.0.40
codegen_flags: <defaults>
</compile_context>

<pallas_src>
import jax
import jax.numpy as jnp
from jax import lax
from jax.experimental import pallas as pl
from jax.experimental.pallas import tpu as pltpu


def net_kernel(emb_ref,
               lw_ih_f, lw_hh_f, lb_f,
               lw_ih_b, lw_hh_b, lb_b,
               gw_ih_f, gw_hh_f, gb_ih_f, gb_hh_f,
               gw_ih_b, gw_hh_b, gb_ih_b, gb_hh_b,
               fc_w, fc_b,
               out_ref,
               xg_f_ref, xg_b_ref,
               lstm_f_ref, lstm_b_ref,
               gi_f_ref, gi_b_ref):
    T, TB, E = emb_ref.shape
    H = lw_hh_f.shape[0]
    f32 = jnp.float32

    # ---- 1. hoisted LSTM input projections: one big MXU matmul per direction ----
    emb2d = emb_ref[...].reshape(T * TB, E)
    xg_f_ref[...] = (jnp.dot(emb2d, lw_ih_f[...], preferred_element_type=f32)
                     + lb_f[...]).reshape(T, TB, 4 * H)
    xg_b_ref[...] = (jnp.dot(emb2d, lw_ih_b[...], preferred_element_type=f32)
                     + lb_b[...]).reshape(T, TB, 4 * H)

    whh_f = lw_hh_f[...]
    whh_b = lw_hh_b[...]

    def lstm_act(g, c):
        # Two full-vreg EUP passes (g is a single 4H=128-lane vreg tile), then
        # slice the activated gate lanes; PyTorch gate order is [i, f, g, o].
        sg = jax.nn.sigmoid(g)
        tg = jnp.tanh(g)
        i = sg[:, 0:H]
        f = sg[:, H:2 * H]
        o = sg[:, 3 * H:4 * H]
        gg = tg[:, 2 * H:3 * H]
        c_new = f * c + i * gg
        h_new = o * jnp.tanh(c_new)
        return h_new, c_new

    zeros_bh = jnp.zeros((TB, H), f32)

    # ---- 2. fused bidirectional LSTM: fwd step t and bwd step T-1-t per iter ----
    def lstm_body(t, carry):
        hf, cf, hb, cb = carry
        tb = T - 1 - t
        gf = xg_f_ref[t] + jnp.dot(hf, whh_f, preferred_element_type=f32)
        gb = xg_b_ref[tb] + jnp.dot(hb, whh_b, preferred_element_type=f32)
        hf, cf = lstm_act(gf, cf)
        hb, cb = lstm_act(gb, cb)
        lstm_f_ref[t] = hf
        lstm_b_ref[tb] = hb
        return (hf, cf, hb, cb)

    lax.fori_loop(0, T, lstm_body,
                  (zeros_bh, zeros_bh, zeros_bh, zeros_bh), unroll=True)

    # nn.Dropout(0.1) is the identity at inference time.
    # TODO(synk): training-mode dropout (RNG masking) intentionally not implemented.

    # ---- 3. hoisted GRU input projections over the whole LSTM output sequence ----
    # concat([h_fwd, h_bwd], -1) @ W  ==  h_fwd @ W[:H] + h_bwd @ W[H:], so no
    # lane concatenation is ever needed (neither per-step nor one-time).
    lf2d = lstm_f_ref[...].reshape(T * TB, H)
    lb2d = lstm_b_ref[...].reshape(T * TB, H)
    gi_f_ref[...] = (jnp.dot(lf2d, gw_ih_f[0:H, :], preferred_element_type=f32)
                     + jnp.dot(lb2d, gw_ih_f[H:2 * H, :], preferred_element_type=f32)
                     + gb_ih_f[...]).reshape(T, TB, 3 * H)
    gi_b_ref[...] = (jnp.dot(lf2d, gw_ih_b[0:H, :], preferred_element_type=f32)
                     + jnp.dot(lb2d, gw_ih_b[H:2 * H, :], preferred_element_type=f32)
                     + gb_ih_b[...]).reshape(T, TB, 3 * H)

    gwhh_f = gw_hh_f[...]
    gwhh_b = gw_hh_b[...]
    # Hoist the bias broadcasts out of the loop (JAX does not CSE broadcasts).
    gbhh_f_full = jnp.broadcast_to(gb_hh_f[...], (TB, 3 * H))
    gbhh_b_full = jnp.broadcast_to(gb_hh_b[...], (TB, 3 * H))

    def gru_act(gi, gh, h):
        s = jax.nn.sigmoid(gi + gh)          # one EUP pass; the n-lanes are unused
        r = s[:, 0:H]
        z = s[:, H:2 * H]
        n = jnp.tanh(gi[:, 2 * H:3 * H] + r * gh[:, 2 * H:3 * H])
        return (1.0 - z) * n + z * h

    # ---- 4. fused bidirectional GRU, keep only the final hidden per direction ----
    def gru_body(t, carry):
        hgf, hgb = carry
        tb = T - 1 - t
        ghf = jnp.dot(hgf, gwhh_f, preferred_element_type=f32) + gbhh_f_full
        ghb = jnp.dot(hgb, gwhh_b, preferred_element_type=f32) + gbhh_b_full
        hgf = gru_act(gi_f_ref[t], ghf, hgf)
        hgb = gru_act(gi_b_ref[tb], ghb, hgb)
        return (hgf, hgb)

    h_gf, h_gb = lax.fori_loop(0, T, gru_body, (zeros_bh, zeros_bh), unroll=True)

    # ---- 5. final linear: concat([fwd_final, bwd_final]) @ fc_w + fc_b ----
    # (again expressed as a split matmul so no lane concat is required)
    out_ref[...] = (jnp.dot(h_gf, fc_w[0:H, :], preferred_element_type=f32)
                    + jnp.dot(h_gb, fc_w[H:2 * H, :], preferred_element_type=f32)
                    + fc_b[...])


def net_forward(x_ids, emb_matrix, params):
    B, T = x_ids.shape
    E = emb_matrix.shape[1]
    H = params["lstm_whh_f"].shape[0]

    TB = 8                                     # sublane-aligned batch tile
    B_pad = ((B + TB - 1) // TB) * TB

    emb = jnp.take(emb_matrix, x_ids, axis=0)          # (B, T, E)   embedding gather (glue)
    emb_t = jnp.transpose(emb, (1, 0, 2))              # (T, B, E)   time-major for the kernel
    if B_pad != B:
        emb_t = jnp.pad(emb_t, ((0, 0), (0, B_pad - B), (0, 0)))

    args = (emb_t,
            params["lstm_wih_f"], params["lstm_whh_f"], params["lstm_b_f"],
            params["lstm_wih_b"], params["lstm_whh_b"], params["lstm_b_b"],
            params["gru_wih_f"], params["gru_whh_f"],
            params["gru_bih_f"], params["gru_bhh_f"],
            params["gru_wih_b"], params["gru_whh_b"],
            params["gru_bih_b"], params["gru_bhh_b"],
            params["fc_w"], params["fc_b"])

    def _const_spec(arr):
        n = arr.ndim
        return pl.BlockSpec(arr.shape, lambda b, _n=n: (0,) * _n)

    in_specs = ([pl.BlockSpec((T, TB, E), lambda b: (0, b, 0))]
                + [_const_spec(a) for a in args[1:]])
    out_spec = pl.BlockSpec((TB, 1), lambda b: (b, 0))

    out = pl.pallas_call(
        net_kernel,
        out_shape=jax.ShapeDtypeStruct((B_pad, 1), jnp.float32),
        grid=(B_pad // TB,),                              # batch blocks; "parallel" => megacore on v7x
        in_specs=in_specs,
        out_specs=out_spec,
        scratch_shapes=[
            pltpu.VMEM((T, TB, 4 * H), jnp.float32),      # xg_f  : precomputed LSTM fwd input gates
            pltpu.VMEM((T, TB, 4 * H), jnp.float32),      # xg_b  : precomputed LSTM bwd input gates
            pltpu.VMEM((T, TB, H), jnp.float32),          # lstm_f: fwd LSTM hidden sequence
            pltpu.VMEM((T, TB, H), jnp.float32),          # lstm_b: bwd LSTM hidden sequence
            pltpu.VMEM((T, TB, 3 * H), jnp.float32),      # gi_f  : precomputed GRU fwd input gates
            pltpu.VMEM((T, TB, 3 * H), jnp.float32),      # gi_b  : precomputed GRU bwd input gates
        ],
        compiler_params=pltpu.CompilerParams(
            dimension_semantics=("parallel",),
            vmem_limit_bytes=32 * 1024 * 1024),
    )(*args)

    return out[None, :B, :]                               # (1, B, 1) == out.unsqueeze(0)


def init_params(key, emb_size, hidden):
    # Deterministic synthetic parameters, stored already transposed for
    # right-multiplication (PyTorch keeps (gates*H, in) and does x @ W.T).
    ks = jax.random.split(key, 16)
    s = 0.1
    rnd = lambda k, shape: jax.random.normal(k, shape, jnp.float32) * s
    E, H = emb_size, hidden
    return dict(
        lstm_wih_f=rnd(ks[0], (E, 4 * H)), lstm_whh_f=rnd(ks[1], (H, 4 * H)),
        lstm_b_f=rnd(ks[2], (1, 4 * H)),   # b_ih + b_hh combined
        lstm_wih_b=rnd(ks[3], (E, 4 * H)), lstm_whh_b=rnd(ks[4], (H, 4 * H)),
        lstm_b_b=rnd(ks[5], (1, 4 * H)),
        gru_wih_f=rnd(ks[6], (2 * H, 3 * H)), gru_whh_f=rnd(ks[7], (H, 3 * H)),
        gru_bih_f=rnd(ks[8], (1, 3 * H)), gru_bhh_f=rnd(ks[9], (1, 3 * H)),
        gru_wih_b=rnd(ks[10], (2 * H, 3 * H)), gru_whh_b=rnd(ks[11], (H, 3 * H)),
        gru_bih_b=rnd(ks[12], (1, 3 * H)), gru_bhh_b=rnd(ks[13], (1, 3 * H)),
        fc_w=rnd(ks[14], (2 * H, 1)), fc_b=rnd(ks[15], (1, 1)),
    )


def reference_forward(x_ids, emb_matrix, params):
    # Pure-JAX reference with identical semantics (for correctness check).
    emb = jnp.take(emb_matrix, x_ids, axis=0)
    B, T, E = emb.shape
    H = params["lstm_whh_f"].shape[0]
    xs = jnp.transpose(emb, (1, 0, 2))

    def lstm_dir(wih, whh, b, reverse):
        def cell(carry, x):
            h, c = carry
            g = x @ wih + h @ whh + b
            i = jax.nn.sigmoid(g[:, :H]); f = jax.nn.sigmoid(g[:, H:2 * H])
            gg = jnp.tanh(g[:, 2 * H:3 * H]); o = jax.nn.sigmoid(g[:, 3 * H:])
            c = f * c + i * gg
            h = o * jnp.tanh(c)
            return (h, c), h
        seq_in = xs[::-1] if reverse else xs
        _, hs = lax.scan(cell, (jnp.zeros((B, H)), jnp.zeros((B, H))), seq_in)
        return hs[::-1] if reverse else hs

    hf = lstm_dir(params["lstm_wih_f"], params["lstm_whh_f"], params["lstm_b_f"], False)
    hb = lstm_dir(params["lstm_wih_b"], params["lstm_whh_b"], params["lstm_b_b"], True)
    seq = jnp.concatenate([hf, hb], axis=-1)

    def gru_dir(wih, whh, bih, bhh, reverse):
        def cell(h, x):
            gi = x @ wih + bih; gh = h @ whh + bhh
            r = jax.nn.sigmoid(gi[:, :H] + gh[:, :H])
            z = jax.nn.sigmoid(gi[:, H:2 * H] + gh[:, H:2 * H])
            n = jnp.tanh(gi[:, 2 * H:] + r * gh[:, 2 * H:])
            return (1 - z) * n + z * h, None
        seq_in = seq[::-1] if reverse else seq
        h, _ = lax.scan(cell, jnp.zeros((B, H)), seq_in)
        return h

    hgf = gru_dir(params["gru_wih_f"], params["gru_whh_f"],
                  params["gru_bih_f"], params["gru_bhh_f"], False)
    hgb = gru_dir(params["gru_wih_b"], params["gru_whh_b"],
                  params["gru_bih_b"], params["gru_bhh_b"], True)
    feat = jnp.concatenate([hgf, hgb], axis=-1)
    return (feat @ params["fc_w"] + params["fc_b"])[None]


if __name__ == "__main__":
    key = jax.random.PRNGKey(0)
    k_emb, k_ids, k_par = jax.random.split(key, 3)

    NUM_WORDS, EMB, HIDDEN = 100, 32, 32
    B, T = 2, 8

    emb_matrix = jax.random.normal(k_emb, (NUM_WORDS, EMB), jnp.float32)
    x_ids = jax.random.randint(k_ids, (B, T), 0, NUM_WORDS, dtype=jnp.int32)
    params = init_params(k_par, EMB, HIDDEN)

    out = net_forward(x_ids, emb_matrix, params)
    out = jax.block_until_ready(out)
    assert out.shape == (1, B, 1), out.shape

    ref = jax.block_until_ready(reference_forward(x_ids, emb_matrix, params))
    assert jnp.allclose(out, ref, rtol=1e-4, atol=1e-4), (out, ref)

    print("KERNEL_OK")
</pallas_src>

<mosaic_0001>
module attributes {stable_mosaic.version = 11 : i64} {
  func.func @net_kernel(%arg0: i32, %arg1: memref<8x8x32xf32, #tpu.memory_space<vmem>>, %arg2: memref<32x128xf32, #tpu.memory_space<vmem>>, %arg3: memref<32x128xf32, #tpu.memory_space<vmem>>, %arg4: memref<1x128xf32, #tpu.memory_space<vmem>>, %arg5: memref<32x128xf32, #tpu.memory_space<vmem>>, %arg6: memref<32x128xf32, #tpu.memory_space<vmem>>, %arg7: memref<1x128xf32, #tpu.memory_space<vmem>>, %arg8: memref<64x96xf32, #tpu.memory_space<vmem>>, %arg9: memref<32x96xf32, #tpu.memory_space<vmem>>, %arg10: memref<1x96xf32, #tpu.memory_space<vmem>>, %arg11: memref<1x96xf32, #tpu.memory_space<vmem>>, %arg12: memref<64x96xf32, #tpu.memory_space<vmem>>, %arg13: memref<32x96xf32, #tpu.memory_space<vmem>>, %arg14: memref<1x96xf32, #tpu.memory_space<vmem>>, %arg15: memref<1x96xf32, #tpu.memory_space<vmem>>, %arg16: memref<64x1xf32, #tpu.memory_space<vmem>>, %arg17: memref<1x1xf32, #tpu.memory_space<vmem>>, %arg18: memref<8x1xf32, #tpu.memory_space<vmem>>, %arg19: memref<8x8x128xf32, #tpu.memory_space<vmem>>, %arg20: memref<8x8x128xf32, #tpu.memory_space<vmem>>, %arg21: memref<8x8x32xf32, #tpu.memory_space<vmem>>, %arg22: memref<8x8x32xf32, #tpu.memory_space<vmem>>, %arg23: memref<8x8x96xf32, #tpu.memory_space<vmem>>, %arg24: memref<8x8x96xf32, #tpu.memory_space<vmem>>) attributes {dimension_semantics = [#tpu.dimension_semantics<parallel>], iteration_bounds = array<i64: 1>, scalar_prefetch = 0 : i64, scratch_operands = 6 : i64, tpu.core_type = #tpu.core_type<tc>, window_params = [{transform_indices = @transform_0, window_bounds = array<i64: 8, 8, 32>}, {pipeline_mode = #tpu.pipeline_mode<synchronous>, transform_indices = @transform_1, window_bounds = array<i64: 32, 128>}, {pipeline_mode = #tpu.pipeline_mode<synchronous>, transform_indices = @transform_2, window_bounds = array<i64: 32, 128>}, {pipeline_mode = #tpu.pipeline_mode<synchronous>, transform_indices = @transform_3, window_bounds = array<i64: 1, 128>}, {pipeline_mode = #tpu.pipeline_mode<synchronous>, transform_indices = @transform_4, window_bounds = array<i64: 32, 128>}, {pipeline_mode = #tpu.pipeline_mode<synchronous>, transform_indices = @transform_5, window_bounds = array<i64: 32, 128>}, {pipeline_mode = #tpu.pipeline_mode<synchronous>, transform_indices = @transform_6, window_bounds = array<i64: 1, 128>}, {pipeline_mode = #tpu.pipeline_mode<synchronous>, transform_indices = @transform_7, window_bounds = array<i64: 64, 96>}, {pipeline_mode = #tpu.pipeline_mode<synchronous>, transform_indices = @transform_8, window_bounds = array<i64: 32, 96>}, {pipeline_mode = #tpu.pipeline_mode<synchronous>, transform_indices = @transform_9, window_bounds = array<i64: 1, 96>}, {pipeline_mode = #tpu.pipeline_mode<synchronous>, transform_indices = @transform_10, window_bounds = array<i64: 1, 96>}, {pipeline_mode = #tpu.pipeline_mode<synchronous>, transform_indices = @transform_11, window_bounds = array<i64: 64, 96>}, {pipeline_mode = #tpu.pipeline_mode<synchronous>, transform_indices = @transform_12, window_bounds = array<i64: 32, 96>}, {pipeline_mode = #tpu.pipeline_mode<synchronous>, transform_indices = @transform_13, window_bounds = array<i64: 1, 96>}, {pipeline_mode = #tpu.pipeline_mode<synchronous>, transform_indices = @transform_14, window_bounds = array<i64: 1, 96>}, {pipeline_mode = #tpu.pipeline_mode<synchronous>, transform_indices = @transform_15, window_bounds = array<i64: 64, 1>}, {pipeline_mode = #tpu.pipeline_mode<synchronous>, transform_indices = @transform_16, window_bounds = array<i64: 1, 1>}, {transform_indices = @transform_17, window_bounds = array<i64: 8, 1>}]} {
    %c0 = arith.constant 0 : index
    %c0_0 = arith.constant 0 : index
    %c0_1 = arith.constant 0 : index
    %0 = vector.load %arg1[%c0, %c0_0, %c0_1] : memref<8x8x32xf32, #tpu.memory_space<vmem>>, vector<8x8x32xf32>
    %1 = vector.shape_cast %0 : vector<8x8x32xf32> to vector<64x32xf32>
    %c0_2 = arith.constant 0 : index
    %c0_3 = arith.constant 0 : index
    %2 = vector.load %arg2[%c0_2, %c0_3] : memref<32x128xf32, #tpu.memory_space<vmem>>, vector<32x128xf32>
    %cst = arith.constant dense<0.000000e+00> : vector<64x128xf32>
    %3 = tpu.matmul %1, %2, %cst {dimension_numbers = #tpu.dot_dimension_numbers<[1], [0], [0], [1], [0, 0, 1, 1], [], []>} : vector<64x32xf32>, vector<32x128xf32>, vector<64x128xf32> -> vector<64x128xf32>
    %c0_4 = arith.constant 0 : index
    %c0_5 = arith.constant 0 : index
    %4 = vector.load %arg4[%c0_4, %c0_5] : memref<1x128xf32, #tpu.memory_space<vmem>>, vector<1x128xf32>
    %5 = vector.broadcast %4 : vector<1x128xf32> to vector<64x128xf32>
    %6 = arith.addf %3, %5 : vector<64x128xf32>
    %7 = vector.shape_cast %6 : vector<64x128xf32> to vector<8x8x128xf32>
    %c0_6 = arith.constant 0 : index
    %c0_7 = arith.constant 0 : index
    %c0_8 = arith.constant 0 : index
    %8 = vector.load %arg19[%c0_6, %c0_7, %c0_8] : memref<8x8x128xf32, #tpu.memory_space<vmem>>, vector<8x8x128xf32>
    tpu.vector_store %arg19[%c0_6, %c0_7, %c0_8], %7 {strides = array<i32>} : memref<8x8x128xf32, #tpu.memory_space<vmem>>, vector<8x8x128xf32>,
    %c0_9 = arith.constant 0 : index
    %c0_10 = arith.constant 0 : index
    %9 = vector.load %arg5[%c0_9, %c0_10] : memref<32x128xf32, #tpu.memory_space<vmem>>, vector<32x128xf32>
    %cst_11 = arith.constant dense<0.000000e+00> : vector<64x128xf32>
    %10 = tpu.matmul %1, %9, %cst_11 {dimension_numbers = #tpu.dot_dimension_numbers<[1], [0], [0], [1], [0, 0, 1, 1], [], []>} : vector<64x32xf32>, vector<32x128xf32>, vector<64x128xf32> -> vector<64x128xf32>
    %c0_12 = arith.constant 0 : index
    %c0_13 = arith.constant 0 : index
    %11 = vector.load %arg7[%c0_12, %c0_13] : memref<1x128xf32, #tpu.memory_space<vmem>>, vector<1x128xf32>
    %12 = vector.broadcast %11 : vector<1x128xf32> to vector<64x128xf32>
    %13 = arith.addf %10, %12 : vector<64x128xf32>
    %14 = vector.shape_cast %13 : vector<64x128xf32> to vector<8x8x128xf32>
    %c0_14 = arith.constant 0 : index
    %c0_15 = arith.constant 0 : index
    %c0_16 = arith.constant 0 : index
    %15 = vector.load %arg20[%c0_14, %c0_15, %c0_16] : memref<8x8x128xf32, #tpu.memory_space<vmem>>, vector<8x8x128xf32>
    tpu.vector_store %arg20[%c0_14, %c0_15, %c0_16], %14 {strides = array<i32>} : memref<8x8x128xf32, #tpu.memory_space<vmem>>, vector<8x8x128xf32>,
    %c0_17 = arith.constant 0 : index
    %c0_18 = arith.constant 0 : index
    %16 = vector.load %arg3[%c0_17, %c0_18] : memref<32x128xf32, #tpu.memory_space<vmem>>, vector<32x128xf32>
    %c0_19 = arith.constant 0 : index
    %c0_20 = arith.constant 0 : index
    %17 = vector.load %arg6[%c0_19, %c0_20] : memref<32x128xf32, #tpu.memory_space<vmem>>, vector<32x128xf32>
    %cst_21 = arith.constant 0.000000e+00 : f32
    %18 = vector.broadcast %cst_21 : f32 to vector<8x32xf32>
    %c0_i32 = arith.constant 0 : i32
    %c7_i32 = arith.constant 7 : i32
    %19 = arith.subi %c7_i32, %c0_i32 : i32
    %20 = arith.index_cast %c0_i32 : i32 to index
    %c0_22 = arith.constant 0 : index
    %c0_23 = arith.constant 0 : index
    %21 = vector.load %arg19[%20, %c0_22, %c0_23] : memref<8x8x128xf32, #tpu.memory_space<vmem>>, vector<1x8x128xf32>
    %22 = vector.shape_cast %21 : vector<1x8x128xf32> to vector<8x128xf32>
    %cst_24 = arith.constant dense<0.000000e+00> : vector<8x128xf32>
    %23 = tpu.matmul %18, %16, %cst_24 {dimension_numbers = #tpu.dot_dimension_numbers<[1], [0], [0], [1], [0, 0, 1, 1], [], []>} : vector<8x32xf32>, vector<32x128xf32>, vector<8x128xf32> -> vector<8x128xf32>
    %24 = arith.addf %22, %23 : vector<8x128xf32>
    %25 = arith.index_cast %19 : i32 to index
    %c0_25 = arith.constant 0 : index
    %c0_26 = arith.constant 0 : index
    %26 = vector.load %arg20[%25, %c0_25, %c0_26] : memref<8x8x128xf32, #tpu.memory_space<vmem>>, vector<1x8x128xf32>
    %27 = vector.shape_cast %26 : vector<1x8x128xf32> to vector<8x128xf32>
    %cst_27 = arith.constant dense<0.000000e+00> : vector<8x128xf32>
    %28 = tpu.matmul %18, %17, %cst_27 {dimension_numbers = #tpu.dot_dimension_numbers<[1], [0], [0], [1], [0, 0, 1, 1], [], []>} : vector<8x32xf32>, vector<32x128xf32>, vector<8x128xf32> -> vector<8x128xf32>
    %29 = arith.addf %27, %28 : vector<8x128xf32>
    %30 = arith.negf %24 : vector<8x128xf32>
    %31 = math.exp %30 : vector<8x128xf32>
    %cst_28 = arith.constant 1.000000e+00 : f32
    %32 = vector.broadcast %cst_28 : f32 to vector<8x128xf32>
    %33 = arith.addf %32, %31 : vector<8x128xf32>
    %34 = arith.divf %32, %33 : vector<8x128xf32>
    %35 = math.tanh %24 : vector<8x128xf32>
    %36 = vector.extract_strided_slice %34 {offsets = [0, 0], sizes = [8, 32], strides = [1, 1]} : vector<8x128xf32> to vector<8x32xf32>
    %37 = vector.extract_strided_slice %34 {offsets = [0, 32], sizes = [8, 32], strides = [1, 1]} : vector<8x128xf32> to vector<8x32xf32>
    %38 = vector.extract_strided_slice %34 {offsets = [0, 96], sizes = [8, 32], strides = [1, 1]} : vector<8x128xf32> to vector<8x32xf32>
    %39 = vector.extract_strided_slice %35 {offsets = [0, 64], sizes = [8, 32], strides = [1, 1]} : vector<8x128xf32> to vector<8x32xf32>
    %40 = arith.mulf %37, %18 : vector<8x32xf32>
    %41 = arith.mulf %36, %39 : vector<8x32xf32>
    %42 = arith.addf %40, %41 : vector<8x32xf32>
    %43 = math.tanh %42 : vector<8x32xf32>
    %44 = arith.mulf %38, %43 : vector<8x32xf32>
    %45 = arith.negf %29 : vector<8x128xf32>
    %46 = math.exp %45 : vector<8x128xf32>
    %cst_29 = arith.constant 1.000000e+00 : f32
    %47 = vector.broadcast %cst_29 : f32 to vector<8x128xf32>
    %48 = arith.addf %47, %46 : vector<8x128xf32>
    %49 = arith.divf %47, %48 : vector<8x128xf32>
    %50 = math.tanh %29 : vector<8x128xf32>
    %51 = vector.extract_strided_slice %49 {offsets = [0, 0], sizes = [8, 32], strides = [1, 1]} : vector<8x128xf32> to vector<8x32xf32>
    %52 = vector.extract_strided_slice %49 {offsets = [0, 32], sizes = [8, 32], strides = [1, 1]} : vector<8x128xf32> to vector<8x32xf32>
    %53 = vector.extract_strided_slice %49 {offsets = [0, 96], sizes = [8, 32], strides = [1, 1]} : vector<8x128xf32> to vector<8x32xf32>
    %54 = vector.extract_strided_slice %50 {offsets = [0, 64], sizes = [8, 32], strides = [1, 1]} : vector<8x128xf32> to vector<8x32xf32>
    %55 = arith.mulf %52, %18 : vector<8x32xf32>
    %56 = arith.mulf %51, %54 : vector<8x32xf32>
    %57 = arith.addf %55, %56 : vector<8x32xf32>
    %58 = math.tanh %57 : vector<8x32xf32>
    %59 = arith.mulf %53, %58 : vector<8x32xf32>
    %60 = arith.index_cast %c0_i32 : i32 to index
    %c0_30 = arith.constant 0 : index
    %c0_31 = arith.constant 0 : index
    %61 = vector.load %arg21[%60, %c0_30, %c0_31] : memref<8x8x32xf32, #tpu.memory_space<vmem>>, vector<1x8x32xf32>
    %62 = vector.shape_cast %61 : vector<1x8x32xf32> to vector<8x32xf32>
    %63 = vector.shape_cast %44 : vector<8x32xf32> to vector<1x8x32xf32>
    tpu.vector_store %arg21[%60, %c0_30, %c0_31], %63 {strides = array<i32>} : memref<8x8x32xf32, #tpu.memory_space<vmem>>, vector<1x8x32xf32>,
    %64 = arith.index_cast %19 : i32 to index
    %c0_32 = arith.constant 0 : index
    %c0_33 = arith.constant 0 : index
    %65 = vector.load %arg22[%64, %c0_32, %c0_33] : memref<8x8x32xf32, #tpu.memory_space<vmem>>, vector<1x8x32xf32>
    %66 = vector.shape_cast %65 : vector<1x8x32xf32> to vector<8x32xf32>
    %67 = vector.shape_cast %59 : vector<8x32xf32> to vector<1x8x32xf32>
    tpu.vector_store %arg22[%64, %c0_32, %c0_33], %67 {strides = array<i32>} : memref<8x8x32xf32, #tpu.memory_space<vmem>>, vector<1x8x32xf32>,
    %c1_i32 = arith.constant 1 : i32
    %c7_i32_34 = arith.constant 7 : i32
    %68 = arith.subi %c7_i32_34, %c1_i32 : i32
    %69 = arith.index_cast %c1_i32 : i32 to index
    %c0_35 = arith.constant 0 : index
    %c0_36 = arith.constant 0 : index
    %70 = vector.load %arg19[%69, %c0_35, %c0_36] : memref<8x8x128xf32, #tpu.memory_space<vmem>>, vector<1x8x128xf32>
    %71 = vector.shape_cast %70 : vector<1x8x128xf32> to vector<8x128xf32>
    %cst_37 = arith.constant dense<0.000000e+00> : vector<8x128xf32>
    %72 = tpu.matmul %44, %16, %cst_37 {dimension_numbers = #tpu.dot_dimension_numbers<[1], [0], [0], [1], [0, 0, 1, 1], [], []>} : vector<8x32xf32>, vector<32x128xf32>, vector<8x128xf32> -> vector<8x128xf32>
    %73 = arith.addf %71, %72 : vector<8x128xf32>
    %74 = arith.index_cast %68 : i32 to index
    %c0_38 = arith.constant 0 : index
    %c0_39 = arith.constant 0 : index
    %75 = vector.load %arg20[%74, %c0_38, %c0_39] : memref<8x8x128xf32, #tpu.memory_space<vmem>>, vector<1x8x128xf32>
    %76 = vector.shape_cast %75 : vector<1x8x128xf32> to vector<8x128xf32>
    %cst_40 = arith.constant dense<0.000000e+00> : vector<8x128xf32>
    %77 = tpu.matmul %59, %17, %cst_40 {dimension_numbers = #tpu.dot_dimension_numbers<[1], [0], [0], [1], [0, 0, 1, 1], [], []>} : vector<8x32xf32>, vector<32x128xf32>, vector<8x128xf32> -> vector<8x128xf32>
    %78 = arith.addf %76, %77 : vector<8x128xf32>
    %79 = arith.negf %73 : vector<8x128xf32>
    %80 = math.exp %79 : vector<8x128xf32>
    %cst_41 = arith.constant 1.000000e+00 : f32
    %81 = vector.broadcast %cst_41 : f32 to vector<8x128xf32>
    %82 = arith.addf %81, %80 : vector<8x128xf32>
    %83 = arith.divf %81, %82 : vector<8x128xf32>
    %84 = math.tanh %73 : vector<8x128xf32>
    %85 = vector.extract_strided_slice %83 {offsets = [0, 0], sizes = [8, 32], strides = [1, 1]} : vector<8x128xf32> to vector<8x32xf32>
    %86 = vector.extract_strided_slice %83 {offsets = [0, 32], sizes = [8, 32], strides = [1, 1]} : vector<8x128xf32> to vector<8x32xf32>
    %87 = vector.extract_strided_slice %83 {offsets = [0, 96], sizes = [8, 32], strides = [1, 1]} : vector<8x128xf32> to vector<8x32xf32>
    %88 = vector.extract_strided_slice %84 {offsets = [0, 64], sizes = [8, 32], strides = [1, 1]} : vector<8x128xf32> to vector<8x32xf32>
    %89 = arith.mulf %86, %42 : vector<8x32xf32>
    %90 = arith.mulf %85, %88 : vector<8x32xf32>
    %91 = arith.addf %89, %90 : vector<8x32xf32>
    %92 = math.tanh %91 : vector<8x32xf32>
    %93 = arith.mulf %87, %92 : vector<8x32xf32>
    %94 = arith.negf %78 : vector<8x128xf32>
    %95 = math.exp %94 : vector<8x128xf32>
    %cst_42 = arith.constant 1.000000e+00 : f32
    %96 = vector.broadcast %cst_42 : f32 to vector<8x128xf32>
    %97 = arith.addf %96, %95 : vector<8x128xf32>
    %98 = arith.divf %96, %97 : vector<8x128xf32>
    %99 = math.tanh %78 : vector<8x128xf32>
    %100 = vector.extract_strided_slice %98 {offsets = [0, 0], sizes = [8, 32], strides = [1, 1]} : vector<8x128xf32> to vector<8x32xf32>
    %101 = vector.extract_strided_slice %98 {offsets = [0, 32], sizes = [8, 32], strides = [1, 1]} : vector<8x128xf32> to vector<8x32xf32>
    %102 = vector.extract_strided_slice %98 {offsets = [0, 96], sizes = [8, 32], strides = [1, 1]} : vector<8x128xf32> to vector<8x32xf32>
    %103 = vector.extract_strided_slice %99 {offsets = [0, 64], sizes = [8, 32], strides = [1, 1]} : vector<8x128xf32> to vector<8x32xf32>
    %104 = arith.mulf %101, %57 : vector<8x32xf32>
    %105 = arith.mulf %100, %103 : vector<8x32xf32>
    %106 = arith.addf %104, %105 : vector<8x32xf32>
    %107 = math.tanh %106 : vector<8x32xf32>
    %108 = arith.mulf %102, %107 : vector<8x32xf32>
    %109 = arith.index_cast %c1_i32 : i32 to index
    %c0_43 = arith.constant 0 : index
    %c0_44 = arith.constant 0 : index
    %110 = vector.load %arg21[%109, %c0_43, %c0_44] : memref<8x8x32xf32, #tpu.memory_space<vmem>>, vector<1x8x32xf32>
    %111 = vector.shape_cast %110 : vector<1x8x32xf32> to vector<8x32xf32>
    %112 = vector.shape_cast %93 : vector<8x32xf32> to vector<1x8x32xf32>
    tpu.vector_store %arg21[%109, %c0_43, %c0_44], %112 {strides = array<i32>} : memref<8x8x32xf32, #tpu.memory_space<vmem>>, vector<1x8x32xf32>,
    %113 = arith.index_cast %68 : i32 to index
    %c0_45 = arith.constant 0 : index
    %c0_46 = arith.constant 0 : index
    %114 = vector.load %arg22[%113, %c0_45, %c0_46] : memref<8x8x32xf32, #tpu.memory_space<vmem>>, vector<1x8x32xf32>
    %115 = vector.shape_cast %114 : vector<1x8x32xf32> to vector<8x32xf32>
    %116 = vector.shape_cast %108 : vector<8x32xf32> to vector<1x8x32xf32>
    tpu.vector_store %arg22[%113, %c0_45, %c0_46], %116 {strides = array<i32>} : memref<8x8x32xf32, #tpu.memory_space<vmem>>, vector<1x8x32xf32>,
    %c2_i32 = arith.constant 2 : i32
    %c7_i32_47 = arith.constant 7 : i32
    %117 = arith.subi %c7_i32_47, %c2_i32 : i32
    %118 = arith.index_cast %c2_i32 : i32 to index
    %c0_48 = arith.constant 0 : index
    %c0_49 = arith.constant 0 : index
    %119 = vector.load %arg19[%118, %c0_48, %c0_49] : memref<8x8x128xf32, #tpu.memory_space<vmem>>, vector<1x8x128xf32>
    %120 = vector.shape_cast %119 : vector<1x8x128xf32> to vector<8x128xf32>
    %cst_50 = arith.constant dense<0.000000e+00> : vector<8x128xf32>
    %121 = tpu.matmul %93, %16, %cst_50 {dimension_numbers = #tpu.dot_dimension_numbers<[1], [0], [0], [1], [0, 0, 1, 1], [], []>} : vector<8x32xf32>, vector<32x128xf32>, vector<8x128xf32> -> vector<8x128xf32>
    %122 = arith.addf %120, %121 : vector<8x128xf32>
    %123 = arith.index_cast %117 : i32 to index
    %c0_51 = arith.constant 0 : index
    %c0_52 = arith.constant 0 : index
    %124 = vector.load %arg20[%123, %c0_51, %c0_52] : memref<8x8x128xf32, #tpu.memory_space<vmem>>, vector<1x8x128xf32>
    %125 = vector.shape_cast %124 : vector<1x8x128xf32> to vector<8x128xf32>
    %cst_53 = arith.constant dense<0.000000e+00> : vector<8x128xf32>
    %126 = tpu.matmul %108, %17, %cst_53 {dimension_numbers = #tpu.dot_dimension_numbers<[1], [0], [0], [1], [0, 0, 1, 1], [], []>} : vector<8x32xf32>, vector<32x128xf32>, vector<8x128xf32> -> vector<8x128xf32>
    %127 = arith.addf %125, %126 : vector<8x128xf32>
    %128 = arith.negf %122 : vector<8x128xf32>
    %129 = math.exp %128 : vector<8x128xf32>
    %cst_54 = arith.constant 1.000000e+00 : f32
    %130 = vector.broadcast %cst_54 : f32 to vector<8x128xf32>
    %131 = arith.addf %130, %129 : vector<8x128xf32>
    %132 = arith.divf %130, %131 : vector<8x128xf32>
    %133 = math.tanh %122 : vector<8x128xf32>
    %134 = vector.extract_strided_slice %132 {offsets = [0, 0], sizes = [8, 32], strides = [1, 1]} : vector<8x128xf32> to vector<8x32xf32>
    %135 = vector.extract_strided_slice %132 {offsets = [0, 32], sizes = [8, 32], strides = [1, 1]} : vector<8x128xf32> to vector<8x32xf32>
    %136 = vector.extract_strided_slice %132 {offsets = [0, 96], sizes = [8, 32], strides = [1, 1]} : vector<8x128xf32> to vector<8x32xf32>
    %137 = vector.extract_strided_slice %133 {offsets = [0, 64], sizes = [8, 32], strides = [1, 1]} : vector<8x128xf32> to vector<8x32xf32>
    %138 = arith.mulf %135, %91 : vector<8x32xf32>
    %139 = arith.mulf %134, %137 : vector<8x32xf32>
    %140 = arith.addf %138, %139 : vector<8x32xf32>
    %141 = math.tanh %140 : vector<8x32xf32>
    %142 = arith.mulf %136, %141 : vector<8x32xf32>
    %143 = arith.negf %127 : vector<8x128xf32>
    %144 = math.exp %143 : vector<8x128xf32>
    %cst_55 = arith.constant 1.000000e+00 : f32
    %145 = vector.broadcast %cst_55 : f32 to vector<8x128xf32>
    %146 = arith.addf %145, %144 : vector<8x128xf32>
    %147 = arith.divf %145, %146 : vector<8x128xf32>
    %148 = math.tanh %127 : vector<8x128xf32>
    %149 = vector.extract_strided_slice %147 {offsets = [0, 0], sizes = [8, 32], strides = [1, 1]} : vector<8x128xf32> to vector<8x32xf32>
    %150 = vector.extract_strided_slice %147 {offsets = [0, 32], sizes = [8, 32], strides = [1, 1]} : vector<8x128xf32> to vector<8x32xf32>
    %151 = vector.extract_strided_slice %147 {offsets = [0, 96], sizes = [8, 32], strides = [1, 1]} : vector<8x128xf32> to vector<8x32xf32>
    %152 = vector.extract_strided_slice %148 {offsets = [0, 64], sizes = [8, 32], strides = [1, 1]} : vector<8x128xf32> to vector<8x32xf32>
    %153 = arith.mulf %150, %106 : vector<8x32xf32>
    %154 = arith.mulf %149, %152 : vector<8x32xf32>
    %155 = arith.addf %153, %154 : vector<8x32xf32>
    %156 = math.tanh %155 : vector<8x32xf32>
    %157 = arith.mulf %151, %156 : vector<8x32xf32>
    %158 = arith.index_cast %c2_i32 : i32 to index
    %c0_56 = arith.constant 0 : index
    %c0_57 = arith.constant 0 : index
    %159 = vector.load %arg21[%158, %c0_56, %c0_57] : memref<8x8x32xf32, #tpu.memory_space<vmem>>, vector<1x8x32xf32>
    %160 = vector.shape_cast %159 : vector<1x8x32xf32> to vector<8x32xf32>
    %161 = vector.shape_cast %142 : vector<8x32xf32> to vector<1x8x32xf32>
    tpu.vector_store %arg21[%158, %c0_56, %c0_57], %161 {strides = array<i32>} : memref<8x8x32xf32, #tpu.memory_space<vmem>>, vector<1x8x32xf32>,
    %162 = arith.index_cast %117 : i32 to index
    %c0_58 = arith.constant 0 : index
    %c0_59 = arith.constant 0 : index
    %163 = vector.load %arg22[%162, %c0_58, %c0_59] : memref<8x8x32xf32, #tpu.memory_space<vmem>>, vector<1x8x32xf32>
    %164 = vector.shape_cast %163 : vector<1x8x32xf32> to vector<8x32xf32>
    %165 = vector.shape_cast %157 : vector<8x32xf32> to vector<1x8x32xf32>
    tpu.vector_store %arg22[%162, %c0_58, %c0_59], %165 {strides = array<i32>} : memref<8x8x32xf32, #tpu.memory_space<vmem>>, vector<1x8x32xf32>,
    %c3_i32 = arith.constant 3 : i32
    %c7_i32_60 = arith.constant 7 : i32
    %166 = arith.subi %c7_i32_60, %c3_i32 : i32
    %167 = arith.index_cast %c3_i32 : i32 to index
    %c0_61 = arith.constant 0 : index
    %c0_62 = arith.constant 0 : index
    %168 = vector.load %arg19[%167, %c0_61, %c0_62] : memref<8x8x128xf32, #tpu.memory_space<vmem>>, vector<1x8x128xf32>
    %169 = vector.shape_cast %168 : vector<1x8x128xf32> to vector<8x128xf32>
    %cst_63 = arith.constant dense<0.000000e+00> : vector<8x128xf32>
    %170 = tpu.matmul %142, %16, %cst_63 {dimension_numbers = #tpu.dot_dimension_numbers<[1], [0], [0], [1], [0, 0, 1, 1], [], []>} : vector<8x32xf32>, vector<32x128xf32>, vector<8x128xf32> -> vector<8x128xf32>
    %171 = arith.addf %169, %170 : vector<8x128xf32>
    %172 = arith.index_cast %166 : i32 to index
    %c0_64 = arith.constant 0 : index
    %c0_65 = arith.constant 0 : index
    %173 = vector.load %arg20[%172, %c0_64, %c0_65] : memref<8x8x128xf32, #tpu.memory_space<vmem>>, vector<1x8x128xf32>
    %174 = vector.shape_cast %173 : vector<1x8x128xf32> to vector<8x128xf32>
    %cst_66 = arith.constant dense<0.000000e+00> : vector<8x128xf32>
    %175 = tpu.matmul %157, %17, %cst_66 {dimension_numbers = #tpu.dot_dimension_numbers<[1], [0], [0], [1], [0, 0, 1, 1], [], []>} : vector<8x32xf32>, vector<32x128xf32>, vector<8x128xf32> -> vector<8x128xf32>
    %176 = arith.addf %174, %175 : vector<8x128xf32>
    %177 = arith.negf %171 : vector<8x128xf32>
    %178 = math.exp %177 : vector<8x128xf32>
    %cst_67 = arith.constant 1.000000e+00 : f32
    %179 = vector.broadcast %cst_67 : f32 to vector<8x128xf32>
    %180 = arith.addf %179, %178 : vector<8x128xf32>
    %181 = arith.divf %179, %180 : vector<8x128xf32>
    %182 = math.tanh %171 : vector<8x128xf32>
    %183 = vector.extract_strided_slice %181 {offsets = [0, 0], sizes = [8, 32], strides = [1, 1]} : vector<8x128xf32> to vector<8x32xf32>
    %184 = vector.extract_strided_slice %181 {offsets = [0, 32], sizes = [8, 32], strides = [1, 1]} : vector<8x128xf32> to vector<8x32xf32>
    %185 = vector.extract_strided_slice %181 {offsets = [0, 96], sizes = [8, 32], strides = [1, 1]} : vector<8x128xf32> to vector<8x32xf32>
    %186 = vector.extract_strided_slice %182 {offsets = [0, 64], sizes = [8, 32], strides = [1, 1]} : vector<8x128xf32> to vector<8x32xf32>
    %187 = arith.mulf %184, %140 : vector<8x32xf32>
    %188 = arith.mulf %183, %186 : vector<8x32xf32>
    %189 = arith.addf %187, %188 : vector<8x32xf32>
    %190 = math.tanh %189 : vector<8x32xf32>
    %191 = arith.mulf %185, %190 : vector<8x32xf32>
    %192 = arith.negf %176 : vector<8x128xf32>
    %193 = math.exp %192 : vector<8x128xf32>
    %cst_68 = arith.constant 1.000000e+00 : f32
    %194 = vector.broadcast %cst_68 : f32 to vector<8x128xf32>
    %195 = arith.addf %194, %193 : vector<8x128xf32>
    %196 = arith.divf %194, %195 : vector<8x128xf32>
    %197 = math.tanh %176 : vector<8x128xf32>
    %198 = vector.extract_strided_slice %196 {offsets = [0, 0], sizes = [8, 32], strides = [1, 1]} : vector<8x128xf32> to vector<8x32xf32>
    %199 = vector.extract_strided_slice %196 {offsets = [0, 32], sizes = [8, 32], strides = [1, 1]} : vector<8x128xf32> to vector<8x32xf32>
    %200 = vector.extract_strided_slice %196 {offsets = [0, 96], sizes = [8, 32], strides = [1, 1]} : vector<8x128xf32> to vector<8x32xf32>
    %201 = vector.extract_strided_slice %197 {offsets = [0, 64], sizes = [8, 32], strides = [1, 1]} : vector<8x128xf32> to vector<8x32xf32>
    %202 = arith.mulf %199, %155 : vector<8x32xf32>
    %203 = arith.mulf %198, %201 : vector<8x32xf32>
    %204 = arith.addf %202, %203 : vector<8x32xf32>
    %205 = math.tanh %204 : vector<8x32xf32>
    %206 = arith.mulf %200, %205 : vector<8x32xf32>
    %207 = arith.index_cast %c3_i32 : i32 to index
    %c0_69 = arith.constant 0 : index
    %c0_70 = arith.constant 0 : index
    %208 = vector.load %arg21[%207, %c0_69, %c0_70] : memref<8x8x32xf32, #tpu.memory_space<vmem>>, vector<1x8x32xf32>
    %209 = vector.shape_cast %208 : vector<1x8x32xf32> to vector<8x32xf32>
    %210 = vector.shape_cast %191 : vector<8x32xf32> to vector<1x8x32xf32>
    tpu.vector_store %arg21[%207, %c0_69, %c0_70], %210 {strides = array<i32>} : memref<8x8x32xf32, #tpu.memory_space<vmem>>, vector<1x8x32xf32>,
    %211 = arith.index_cast %166 : i32 to index
    %c0_71 = arith.constant 0 : index
    %c0_72 = arith.constant 0 : index
    %212 = vector.load %arg22[%211, %c0_71, %c0_72] : memref<8x8x32xf32, #tpu.memory_space<vmem>>, vector<1x8x32xf32>
    %213 = vector.shape_cast %212 : vector<1x8x32xf32> to vector<8x32xf32>
    %214 = vector.shape_cast %206 : vector<8x32xf32> to vector<1x8x32xf32>
    tpu.vector_store %arg22[%211, %c0_71, %c0_72], %214 {strides = array<i32>} : memref<8x8x32xf32, #tpu.memory_space<vmem>>, vector<1x8x32xf32>,
    %c4_i32 = arith.constant 4 : i32
    %c7_i32_73 = arith.constant 7 : i32
    %215 = arith.subi %c7_i32_73, %c4_i32 : i32
    %216 = arith.index_cast %c4_i32 : i32 to index
    %c0_74 = arith.constant 0 : index
    %c0_75 = arith.constant 0 : index
    %217 = vector.load %arg19[%216, %c0_74, %c0_75] : memref<8x8x128xf32, #tpu.memory_space<vmem>>, vector<1x8x128xf32>
    %218 = vector.shape_cast %217 : vector<1x8x128xf32> to vector<8x128xf32>
    %cst_76 = arith.constant dense<0.000000e+00> : vector<8x128xf32>
    %219 = tpu.matmul %191, %16, %cst_76 {dimension_numbers = #tpu.dot_dimension_numbers<[1], [0], [0], [1], [0, 0, 1, 1], [], []>} : vector<8x32xf32>, vector<32x128xf32>, vector<8x128xf32> -> vector<8x128xf32>
    %220 = arith.addf %218, %219 : vector<8x128xf32>
    %221 = arith.index_cast %215 : i32 to index
    %c0_77 = arith.constant 0 : index
    %c0_78 = arith.constant 0 : index
    %222 = vector.load %arg20[%221, %c0_77, %c0_78] : memref<8x8x128xf32, #tpu.memory_space<vmem>>, vector<1x8x128xf32>
    %223 = vector.shape_cast %222 : vector<1x8x128xf32> to vector<8x128xf32>
    %cst_79 = arith.constant dense<0.000000e+00> : vector<8x128xf32>
    %224 = tpu.matmul %206, %17, %cst_79 {dimension_numbers = #tpu.dot_dimension_numbers<[1], [0], [0], [1], [0, 0, 1, 1], [], []>} : vector<8x32xf32>, vector<32x128xf32>, vector<8x128xf32> -> vector<8x128xf32>
    %225 = arith.addf %223, %224 : vector<8x128xf32>
    %226 = arith.negf %220 : vector<8x128xf32>
    %227 = math.exp %226 : vector<8x128xf32>
    %cst_80 = arith.constant 1.000000e+00 : f32
    %228 = vector.broadcast %cst_80 : f32 to vector<8x128xf32>
    %229 = arith.addf %228, %227 : vector<8x128xf32>
    %230 = arith.divf %228, %229 : vector<8x128xf32>
    %231 = math.tanh %220 : vector<8x128xf32>
    %232 = vector.extract_strided_slice %230 {offsets = [0, 0], sizes = [8, 32], strides = [1, 1]} : vector<8x128xf32> to vector<8x32xf32>
    %233 = vector.extract_strided_slice %230 {offsets = [0, 32], sizes = [8, 32], strides = [1, 1]} : vector<8x128xf32> to vector<8x32xf32>
    %234 = vector.extract_strided_slice %230 {offsets = [0, 96], sizes = [8, 32], strides = [1, 1]} : vector<8x128xf32> to vector<8x32xf32>
    %235 = vector.extract_strided_slice %231 {offsets = [0, 64], sizes = [8, 32], strides = [1, 1]} : vector<8x128xf32> to vector<8x32xf32>
    %236 = arith.mulf %233, %189 : vector<8x32xf32>
    %237 = arith.mulf %232, %235 : vector<8x32xf32>
    %238 = arith.addf %236, %237 : vector<8x32xf32>
    %239 = math.tanh %238 : vector<8x32xf32>
    %240 = arith.mulf %234, %239 : vector<8x32xf32>
    %241 = arith.negf %225 : vector<8x128xf32>
    %242 = math.exp %241 : vector<8x128xf32>
    %cst_81 = arith.constant 1.000000e+00 : f32
    %243 = vector.broadcast %cst_81 : f32 to vector<8x128xf32>
    %244 = arith.addf %243, %242 : vector<8x128xf32>
    %245 = arith.divf %243, %244 : vector<8x128xf32>
    %246 = math.tanh %225 : vector<8x128xf32>
    %247 = vector.extract_strided_slice %245 {offsets = [0, 0], sizes = [8, 32], strides = [1, 1]} : vector<8x128xf32> to vector<8x32xf32>
    %248 = vector.extract_strided_slice %245 {offsets = [0, 32], sizes = [8, 32], strides = [1, 1]} : vector<8x128xf32> to vector<8x32xf32>
    %249 = vector.extract_strided_slice %245 {offsets = [0, 96], sizes = [8, 32], strides = [1, 1]} : vector<8x128xf32> to vector<8x32xf32>
    %250 = vector.extract_strided_slice %246 {offsets = [0, 64], sizes = [8, 32], strides = [1, 1]} : vector<8x128xf32> to vector<8x32xf32>
    %251 = arith.mulf %248, %204 : vector<8x32xf32>
    %252 = arith.mulf %247, %250 : vector<8x32xf32>
    %253 = arith.addf %251, %252 : vector<8x32xf32>
    %254 = math.tanh %253 : vector<8x32xf32>
    %255 = arith.mulf %249, %254 : vector<8x32xf32>
    %256 = arith.index_cast %c4_i32 : i32 to index
    %c0_82 = arith.constant 0 : index
    %c0_83 = arith.constant 0 : index
    %257 = vector.load %arg21[%256, %c0_82, %c0_83] : memref<8x8x32xf32, #tpu.memory_space<vmem>>, vector<1x8x32xf32>
    %258 = vector.shape_cast %257 : vector<1x8x32xf32> to vector<8x32xf32>
    %259 = vector.shape_cast %240 : vector<8x32xf32> to vector<1x8x32xf32>
    tpu.vector_store %arg21[%256, %c0_82, %c0_83], %259 {strides = array<i32>} : memref<8x8x32xf32, #tpu.memory_space<vmem>>, vector<1x8x32xf32>,
    %260 = arith.index_cast %215 : i32 to index
    %c0_84 = arith.constant 0 : index
    %c0_85 = arith.constant 0 : index
    %261 = vector.load %arg22[%260, %c0_84, %c0_85] : memref<8x8x32xf32, #tpu.memory_space<vmem>>, vector<1x8x32xf32>
    %262 = vector.shape_cast %261 : vector<1x8x32xf32> to vector<8x32xf32>
    %263 = vector.shape_cast %255 : vector<8x32xf32> to vector<1x8x32xf32>
    tpu.vector_store %arg22[%260, %c0_84, %c0_85], %263 {strides = array<i32>} : memref<8x8x32xf32, #tpu.memory_space<vmem>>, vector<1x8x32xf32>,
    %c5_i32 = arith.constant 5 : i32
    %c7_i32_86 = arith.constant 7 : i32
    %264 = arith.subi %c7_i32_86, %c5_i32 : i32
    %265 = arith.index_cast %c5_i32 : i32 to index
    %c0_87 = arith.constant 0 : index
    %c0_88 = arith.constant 0 : index
    %266 = vector.load %arg19[%265, %c0_87, %c0_88] : memref<8x8x128xf32, #tpu.memory_space<vmem>>, vector<1x8x128xf32>
    %267 = vector.shape_cast %266 : vector<1x8x128xf32> to vector<8x128xf32>
    %cst_89 = arith.constant dense<0.000000e+00> : vector<8x128xf32>
    %268 = tpu.matmul %240, %16, %cst_89 {dimension_numbers = #tpu.dot_dimension_numbers<[1], [0], [0], [1], [0, 0, 1, 1], [], []>} : vector<8x32xf32>, vector<32x128xf32>, vector<8x128xf32> -> vector<8x128xf32>
    %269 = arith.addf %267, %268 : vector<8x128xf32>
    %270 = arith.index_cast %264 : i32 to index
    %c0_90 = arith.constant 0 : index
    %c0_91 = arith.constant 0 : index
    %271 = vector.load %arg20[%270, %c0_90, %c0_91] : memref<8x8x128xf32, #tpu.memory_space<vmem>>, vector<1x8x128xf32>
    %272 = vector.shape_cast %271 : vector<1x8x128xf32> to vector<8x128xf32>
    %cst_92 = arith.constant dense<0.000000e+00> : vector<8x128xf32>
    %273 = tpu.matmul %255, %17, %cst_92 {dimension_numbers = #tpu.dot_dimension_numbers<[1], [0], [0], [1], [0, 0, 1, 1], [], []>} : vector<8x32xf32>, vector<32x128xf32>, vector<8x128xf32> -> vector<8x128xf32>
    %274 = arith.addf %272, %273 : vector<8x128xf32>
    %275 = arith.negf %269 : vector<8x128xf32>
    %276 = math.exp %275 : vector<8x128xf32>
    %cst_93 = arith.constant 1.000000e+00 : f32
    %277 = vector.broadcast %cst_93 : f32 to vector<8x128xf32>
    %278 = arith.addf %277, %276 : vector<8x128xf32>
    %279 = arith.divf %277, %278 : vector<8x128xf32>
    %280 = math.tanh %269 : vector<8x128xf32>
    %281 = vector.extract_strided_slice %279 {offsets = [0, 0], sizes = [8, 32], strides = [1, 1]} : vector<8x128xf32> to vector<8x32xf32>
    %282 = vector.extract_strided_slice %279 {offsets = [0, 32], sizes = [8, 32], strides = [1, 1]} : vector<8x128xf32> to vector<8x32xf32>
    %283 = vector.extract_strided_slice %279 {offsets = [0, 96], sizes = [8, 32], strides = [1, 1]} : vector<8x128xf32> to vector<8x32xf32>
    %284 = vector.extract_strided_slice %280 {offsets = [0, 64], sizes = [8, 32], strides = [1, 1]} : vector<8x128xf32> to vector<8x32xf32>
    %285 = arith.mulf %282, %238 : vector<8x32xf32>
    %286 = arith.mulf %281, %284 : vector<8x32xf32>
    %287 = arith.addf %285, %286 : vector<8x32xf32>
    %288 = math.tanh %287 : vector<8x32xf32>
    %289 = arith.mulf %283, %288 : vector<8x32xf32>
    %290 = arith.negf %274 : vector<8x128xf32>
    %291 = math.exp %290 : vector<8x128xf32>
    %cst_94 = arith.constant 1.000000e+00 : f32
    %292 = vector.broadcast %cst_94 : f32 to vector<8x128xf32>
    %293 = arith.addf %292, %291 : vector<8x128xf32>
    %294 = arith.divf %292, %293 : vector<8x128xf32>
    %295 = math.tanh %274 : vector<8x128xf32>
    %296 = vector.extract_strided_slice %294 {offsets = [0, 0], sizes = [8, 32], strides = [1, 1]} : vector<8x128xf32> to vector<8x32xf32>
    %297 = vector.extract_strided_slice %294 {offsets = [0, 32], sizes = [8, 32], strides = [1, 1]} : vector<8x128xf32> to vector<8x32xf32>
    %298 = vector.extract_strided_slice %294 {offsets = [0, 96], sizes = [8, 32], strides = [1, 1]} : vector<8x128xf32> to vector<8x32xf32>
    %299 = vector.extract_strided_slice %295 {offsets = [0, 64], sizes = [8, 32], strides = [1, 1]} : vector<8x128xf32> to vector<8x32xf32>
    %300 = arith.mulf %297, %253 : vector<8x32xf32>
    %301 = arith.mulf %296, %299 : vector<8x32xf32>
    %302 = arith.addf %300, %301 : vector<8x32xf32>
    %303 = math.tanh %302 : vector<8x32xf32>
    %304 = arith.mulf %298, %303 : vector<8x32xf32>
    %305 = arith.index_cast %c5_i32 : i32 to index
    %c0_95 = arith.constant 0 : index
    %c0_96 = arith.constant 0 : index
    %306 = vector.load %arg21[%305, %c0_95, %c0_96] : memref<8x8x32xf32, #tpu.memory_space<vmem>>, vector<1x8x32xf32>
    %307 = vector.shape_cast %306 : vector<1x8x32xf32> to vector<8x32xf32>
    %308 = vector.shape_cast %289 : vector<8x32xf32> to vector<1x8x32xf32>
    tpu.vector_store %arg21[%305, %c0_95, %c0_96], %308 {strides = array<i32>} : memref<8x8x32xf32, #tpu.memory_space<vmem>>, vector<1x8x32xf32>,
    %309 = arith.index_cast %264 : i32 to index
    %c0_97 = arith.constant 0 : index
    %c0_98 = arith.constant 0 : index
    %310 = vector.load %arg22[%309, %c0_97, %c0_98] : memref<8x8x32xf32, #tpu.memory_space<vmem>>, vector<1x8x32xf32>
    %311 = vector.shape_cast %310 : vector<1x8x32xf32> to vector<8x32xf32>
    %312 = vector.shape_cast %304 : vector<8x32xf32> to vector<1x8x32xf32>
    tpu.vector_store %arg22[%309, %c0_97, %c0_98], %312 {strides = array<i32>} : memref<8x8x32xf32, #tpu.memory_space<vmem>>, vector<1x8x32xf32>,
    %c6_i32 = arith.constant 6 : i32
    %c7_i32_99 = arith.constant 7 : i32
    %313 = arith.subi %c7_i32_99, %c6_i32 : i32
    %314 = arith.index_cast %c6_i32 : i32 to index
    %c0_100 = arith.constant 0 : index
    %c0_101 = arith.constant 0 : index
    %315 = vector.load %arg19[%314, %c0_100, %c0_101] : memref<8x8x128xf32, #tpu.memory_space<vmem>>, vector<1x8x128xf32>
    %316 = vector.shape_cast %315 : vector<1x8x128xf32> to vector<8x128xf32>
    %cst_102 = arith.constant dense<0.000000e+00> : vector<8x128xf32>
    %317 = tpu.matmul %289, %16, %cst_102 {dimension_numbers = #tpu.dot_dimension_numbers<[1], [0], [0], [1], [0, 0, 1, 1], [], []>} : vector<8x32xf32>, vector<32x128xf32>, vector<8x128xf32> -> vector<8x128xf32>
    %318 = arith.addf %316, %317 : vector<8x128xf32>
    %319 = arith.index_cast %313 : i32 to index
    %c0_103 = arith.constant 0 : index
    %c0_104 = arith.constant 0 : index
    %320 = vector.load %arg20[%319, %c0_103, %c0_104] : memref<8x8x128xf32, #tpu.memory_space<vmem>>, vector<1x8x128xf32>
    %321 = vector.shape_cast %320 : vector<1x8x128xf32> to vector<8x128xf32>
    %cst_105 = arith.constant dense<0.000000e+00> : vector<8x128xf32>
    %322 = tpu.matmul %304, %17, %cst_105 {dimension_numbers = #tpu.dot_dimension_numbers<[1], [0], [0], [1], [0, 0, 1, 1], [], []>} : vector<8x32xf32>, vector<32x128xf32>, vector<8x128xf32> -> vector<8x128xf32>
    %323 = arith.addf %321, %322 : vector<8x128xf32>
    %324 = arith.negf %318 : vector<8x128xf32>
    %325 = math.exp %324 : vector<8x128xf32>
    %cst_106 = arith.constant 1.000000e+00 : f32
    %326 = vector.broadcast %cst_106 : f32 to vector<8x128xf32>
    %327 = arith.addf %326, %325 : vector<8x128xf32>
    %328 = arith.divf %326, %327 : vector<8x128xf32>
    %329 = math.tanh %318 : vector<8x128xf32>
    %330 = vector.extract_strided_slice %328 {offsets = [0, 0], sizes = [8, 32], strides = [1, 1]} : vector<8x128xf32> to vector<8x32xf32>
    %331 = vector.extract_strided_slice %328 {offsets = [0, 32], sizes = [8, 32], strides = [1, 1]} : vector<8x128xf32> to vector<8x32xf32>
    %332 = vector.extract_strided_slice %328 {offsets = [0, 96], sizes = [8, 32], strides = [1, 1]} : vector<8x128xf32> to vector<8x32xf32>
    %333 = vector.extract_strided_slice %329 {offsets = [0, 64], sizes = [8, 32], strides = [1, 1]} : vector<8x128xf32> to vector<8x32xf32>
    %334 = arith.mulf %331, %287 : vector<8x32xf32>
    %335 = arith.mulf %330, %333 : vector<8x32xf32>
    %336 = arith.addf %334, %335 : vector<8x32xf32>
    %337 = math.tanh %336 : vector<8x32xf32>
    %338 = arith.mulf %332, %337 : vector<8x32xf32>
    %339 = arith.negf %323 : vector<8x128xf32>
    %340 = math.exp %339 : vector<8x128xf32>
    %cst_107 = arith.constant 1.000000e+00 : f32
    %341 = vector.broadcast %cst_107 : f32 to vector<8x128xf32>
    %342 = arith.addf %341, %340 : vector<8x128xf32>
    %343 = arith.divf %341, %342 : vector<8x128xf32>
    %344 = math.tanh %323 : vector<8x128xf32>
    %345 = vector.extract_strided_slice %343 {offsets = [0, 0], sizes = [8, 32], strides = [1, 1]} : vector<8x128xf32> to vector<8x32xf32>
    %346 = vector.extract_strided_slice %343 {offsets = [0, 32], sizes = [8, 32], strides = [1, 1]} : vector<8x128xf32> to vector<8x32xf32>
    %347 = vector.extract_strided_slice %343 {offsets = [0, 96], sizes = [8, 32], strides = [1, 1]} : vector<8x128xf32> to vector<8x32xf32>
    %348 = vector.extract_strided_slice %344 {offsets = [0, 64], sizes = [8, 32], strides = [1, 1]} : vector<8x128xf32> to vector<8x32xf32>
    %349 = arith.mulf %346, %302 : vector<8x32xf32>
    %350 = arith.mulf %345, %348 : vector<8x32xf32>
    %351 = arith.addf %349, %350 : vector<8x32xf32>
    %352 = math.tanh %351 : vector<8x32xf32>
    %353 = arith.mulf %347, %352 : vector<8x32xf32>
    %354 = arith.index_cast %c6_i32 : i32 to index
    %c0_108 = arith.constant 0 : index
    %c0_109 = arith.constant 0 : index
    %355 = vector.load %arg21[%354, %c0_108, %c0_109] : memref<8x8x32xf32, #tpu.memory_space<vmem>>, vector<1x8x32xf32>
    %356 = vector.shape_cast %355 : vector<1x8x32xf32> to vector<8x32xf32>
    %357 = vector.shape_cast %338 : vector<8x32xf32> to vector<1x8x32xf32>
    tpu.vector_store %arg21[%354, %c0_108, %c0_109], %357 {strides = array<i32>} : memref<8x8x32xf32, #tpu.memory_space<vmem>>, vector<1x8x32xf32>,
    %358 = arith.index_cast %313 : i32 to index
    %c0_110 = arith.constant 0 : index
    %c0_111 = arith.constant 0 : index
    %359 = vector.load %arg22[%358, %c0_110, %c0_111] : memref<8x8x32xf32, #tpu.memory_space<vmem>>, vector<1x8x32xf32>
    %360 = vector.shape_cast %359 : vector<1x8x32xf32> to vector<8x32xf32>
    %361 = vector.shape_cast %353 : vector<8x32xf32> to vector<1x8x32xf32>
    tpu.vector_store %arg22[%358, %c0_110, %c0_111], %361 {strides = array<i32>} : memref<8x8x32xf32, #tpu.memory_space<vmem>>, vector<1x8x32xf32>,
    %c7_i32_112 = arith.constant 7 : i32
    %c7_i32_113 = arith.constant 7 : i32
    %362 = arith.subi %c7_i32_113, %c7_i32_112 : i32
    %363 = arith.index_cast %c7_i32_112 : i32 to index
    %c0_114 = arith.constant 0 : index
    %c0_115 = arith.constant 0 : index
    %364 = vector.load %arg19[%363, %c0_114, %c0_115] : memref<8x8x128xf32, #tpu.memory_space<vmem>>, vector<1x8x128xf32>
    %365 = vector.shape_cast %364 : vector<1x8x128xf32> to vector<8x128xf32>
    %cst_116 = arith.constant dense<0.000000e+00> : vector<8x128xf32>
    %366 = tpu.matmul %338, %16, %cst_116 {dimension_numbers = #tpu.dot_dimension_numbers<[1], [0], [0], [1], [0, 0, 1, 1], [], []>} : vector<8x32xf32>, vector<32x128xf32>, vector<8x128xf32> -> vector<8x128xf32>
    %367 = arith.addf %365, %366 : vector<8x128xf32>
    %368 = arith.index_cast %362 : i32 to index
    %c0_117 = arith.constant 0 : index
    %c0_118 = arith.constant 0 : index
    %369 = vector.load %arg20[%368, %c0_117, %c0_118] : memref<8x8x128xf32, #tpu.memory_space<vmem>>, vector<1x8x128xf32>
    %370 = vector.shape_cast %369 : vector<1x8x128xf32> to vector<8x128xf32>
    %cst_119 = arith.constant dense<0.000000e+00> : vector<8x128xf32>
    %371 = tpu.matmul %353, %17, %cst_119 {dimension_numbers = #tpu.dot_dimension_numbers<[1], [0], [0], [1], [0, 0, 1, 1], [], []>} : vector<8x32xf32>, vector<32x128xf32>, vector<8x128xf32> -> vector<8x128xf32>
    %372 = arith.addf %370, %371 : vector<8x128xf32>
    %373 = arith.negf %367 : vector<8x128xf32>
    %374 = math.exp %373 : vector<8x128xf32>
    %cst_120 = arith.constant 1.000000e+00 : f32
    %375 = vector.broadcast %cst_120 : f32 to vector<8x128xf32>
    %376 = arith.addf %375, %374 : vector<8x128xf32>
    %377 = arith.divf %375, %376 : vector<8x128xf32>
    %378 = math.tanh %367 : vector<8x128xf32>
    %379 = vector.extract_strided_slice %377 {offsets = [0, 0], sizes = [8, 32], strides = [1, 1]} : vector<8x128xf32> to vector<8x32xf32>
    %380 = vector.extract_strided_slice %377 {offsets = [0, 32], sizes = [8, 32], strides = [1, 1]} : vector<8x128xf32> to vector<8x32xf32>
    %381 = vector.extract_strided_slice %377 {offsets = [0, 96], sizes = [8, 32], strides = [1, 1]} : vector<8x128xf32> to vector<8x32xf32>
    %382 = vector.extract_strided_slice %378 {offsets = [0, 64], sizes = [8, 32], strides = [1, 1]} : vector<8x128xf32> to vector<8x32xf32>
    %383 = arith.mulf %380, %336 : vector<8x32xf32>
    %384 = arith.mulf %379, %382 : vector<8x32xf32>
    %385 = arith.addf %383, %384 : vector<8x32xf32>
    %386 = math.tanh %385 : vector<8x32xf32>
    %387 = arith.mulf %381, %386 : vector<8x32xf32>
    %388 = arith.negf %372 : vector<8x128xf32>
    %389 = math.exp %388 : vector<8x128xf32>
    %cst_121 = arith.constant 1.000000e+00 : f32
    %390 = vector.broadcast %cst_121 : f32 to vector<8x128xf32>
    %391 = arith.addf %390, %389 : vector<8x128xf32>
    %392 = arith.divf %390, %391 : vector<8x128xf32>
    %393 = math.tanh %372 : vector<8x128xf32>
    %394 = vector.extract_strided_slice %392 {offsets = [0, 0], sizes = [8, 32], strides = [1, 1]} : vector<8x128xf32> to vector<8x32xf32>
    %395 = vector.extract_strided_slice %392 {offsets = [0, 32], sizes = [8, 32], strides = [1, 1]} : vector<8x128xf32> to vector<8x32xf32>
    %396 = vector.extract_strided_slice %392 {offsets = [0, 96], sizes = [8, 32], strides = [1, 1]} : vector<8x128xf32> to vector<8x32xf32>
    %397 = vector.extract_strided_slice %393 {offsets = [0, 64], sizes = [8, 32], strides = [1, 1]} : vector<8x128xf32> to vector<8x32xf32>
    %398 = arith.mulf %395, %351 : vector<8x32xf32>
    %399 = arith.mulf %394, %397 : vector<8x32xf32>
    %400 = arith.addf %398, %399 : vector<8x32xf32>
    %401 = math.tanh %400 : vector<8x32xf32>
    %402 = arith.mulf %396, %401 : vector<8x32xf32>
    %403 = arith.index_cast %c7_i32_112 : i32 to index
    %c0_122 = arith.constant 0 : index
    %c0_123 = arith.constant 0 : index
    %404 = vector.load %arg21[%403, %c0_122, %c0_123] : memref<8x8x32xf32, #tpu.memory_space<vmem>>, vector<1x8x32xf32>
    %405 = vector.shape_cast %404 : vector<1x8x32xf32> to vector<8x32xf32>
    %406 = vector.shape_cast %387 : vector<8x32xf32> to vector<1x8x32xf32>
    tpu.vector_store %arg21[%403, %c0_122, %c0_123], %406 {strides = array<i32>} : memref<8x8x32xf32, #tpu.memory_space<vmem>>, vector<1x8x32xf32>,
    %407 = arith.index_cast %362 : i32 to index
    %c0_124 = arith.constant 0 : index
    %c0_125 = arith.constant 0 : index
    %408 = vector.load %arg22[%407, %c0_124, %c0_125] : memref<8x8x32xf32, #tpu.memory_space<vmem>>, vector<1x8x32xf32>
    %409 = vector.shape_cast %408 : vector<1x8x32xf32> to vector<8x32xf32>
    %410 = vector.shape_cast %402 : vector<8x32xf32> to vector<1x8x32xf32>
    tpu.vector_store %arg22[%407, %c0_124, %c0_125], %410 {strides = array<i32>} : memref<8x8x32xf32, #tpu.memory_space<vmem>>, vector<1x8x32xf32>,
    %c8_i32 = arith.constant 8 : i32
    %c0_126 = arith.constant 0 : index
    %c0_127 = arith.constant 0 : index
    %c0_128 = arith.constant 0 : index
    %411 = vector.load %arg21[%c0_126, %c0_127, %c0_128] : memref<8x8x32xf32, #tpu.memory_space<vmem>>, vector<8x8x32xf32>
    %412 = vector.shape_cast %411 : vector<8x8x32xf32> to vector<64x32xf32>
    %c0_129 = arith.constant 0 : index
    %c0_130 = arith.constant 0 : index
    %c0_131 = arith.constant 0 : index
    %413 = vector.load %arg22[%c0_129, %c0_130, %c0_131] : memref<8x8x32xf32, #tpu.memory_space<vmem>>, vector<8x8x32xf32>
    %414 = vector.shape_cast %413 : vector<8x8x32xf32> to vector<64x32xf32>
    %c0_132 = arith.constant 0 : index
    %c0_133 = arith.constant 0 : index
    %415 = vector.load %arg8[%c0_132, %c0_133] : memref<64x96xf32, #tpu.memory_space<vmem>>, vector<32x96xf32>
    %cst_134 = arith.constant dense<0.000000e+00> : vector<64x96xf32>
    %416 = tpu.matmul %412, %415, %cst_134 {dimension_numbers = #tpu.dot_dimension_numbers<[1], [0], [0], [1], [0, 0, 1, 1], [], []>} : vector<64x32xf32>, vector<32x96xf32>, vector<64x96xf32> -> vector<64x96xf32>
    %c32 = arith.constant 32 : index
    %c0_135 = arith.constant 0 : index
    %417 = vector.load %arg8[%c32, %c0_135] : memref<64x96xf32, #tpu.memory_space<vmem>>, vector<32x96xf32>
    %cst_136 = arith.constant dense<0.000000e+00> : vector<64x96xf32>
    %418 = tpu.matmul %414, %417, %cst_136 {dimension_numbers = #tpu.dot_dimension_numbers<[1], [0], [0], [1], [0, 0, 1, 1], [], []>} : vector<64x32xf32>, vector<32x96xf32>, vector<64x96xf32> -> vector<64x96xf32>
    %419 = arith.addf %416, %418 : vector<64x96xf32>
    %c0_137 = arith.constant 0 : index
    %c0_138 = arith.constant 0 : index
    %420 = vector.load %arg10[%c0_137, %c0_138] : memref<1x96xf32, #tpu.memory_space<vmem>>, vector<1x96xf32>
    %421 = vector.broadcast %420 : vector<1x96xf32> to vector<64x96xf32>
    %422 = arith.addf %419, %421 : vector<64x96xf32>
    %423 = vector.shape_cast %422 : vector<64x96xf32> to vector<8x8x96xf32>
    %c0_139 = arith.constant 0 : index
    %c0_140 = arith.constant 0 : index
    %c0_141 = arith.constant 0 : index
    %424 = vector.load %arg23[%c0_139, %c0_140, %c0_141] : memref<8x8x96xf32, #tpu.memory_space<vmem>>, vector<8x8x96xf32>
    tpu.vector_store %arg23[%c0_139, %c0_140, %c0_141], %423 {strides = array<i32>} : memref<8x8x96xf32, #tpu.memory_space<vmem>>, vector<8x8x96xf32>,
    %c0_142 = arith.constant 0 : index
    %c0_143 = arith.constant 0 : index
    %425 = vector.load %arg12[%c0_142, %c0_143] : memref<64x96xf32, #tpu.memory_space<vmem>>, vector<32x96xf32>
    %cst_144 = arith.constant dense<0.000000e+00> : vector<64x96xf32>
    %426 = tpu.matmul %412, %425, %cst_144 {dimension_numbers = #tpu.dot_dimension_numbers<[1], [0], [0], [1], [0, 0, 1, 1], [], []>} : vector<64x32xf32>, vector<32x96xf32>, vector<64x96xf32> -> vector<64x96xf32>
    %c32_145 = arith.constant 32 : index
    %c0_146 = arith.constant 0 : index
    %427 = vector.load %arg12[%c32_145, %c0_146] : memref<64x96xf32, #tpu.memory_space<vmem>>, vector<32x96xf32>
    %cst_147 = arith.constant dense<0.000000e+00> : vector<64x96xf32>
    %428 = tpu.matmul %414, %427, %cst_147 {dimension_numbers = #tpu.dot_dimension_numbers<[1], [0], [0], [1], [0, 0, 1, 1], [], []>} : vector<64x32xf32>, vector<32x96xf32>, vector<64x96xf32> -> vector<64x96xf32>
    %429 = arith.addf %426, %428 : vector<64x96xf32>
    %c0_148 = arith.constant 0 : index
    %c0_149 = arith.constant 0 : index
    %430 = vector.load %arg14[%c0_148, %c0_149] : memref<1x96xf32, #tpu.memory_space<vmem>>, vector<1x96xf32>
    %431 = vector.broadcast %430 : vector<1x96xf32> to vector<64x96xf32>
    %432 = arith.addf %429, %431 : vector<64x96xf32>
    %433 = vector.shape_cast %432 : vector<64x96xf32> to vector<8x8x96xf32>
    %c0_150 = arith.constant 0 : index
    %c0_151 = arith.constant 0 : index
    %c0_152 = arith.constant 0 : index
    %434 = vector.load %arg24[%c0_150, %c0_151, %c0_152] : memref<8x8x96xf32, #tpu.memory_space<vmem>>, vector<8x8x96xf32>
    tpu.vector_store %arg24[%c0_150, %c0_151, %c0_152], %433 {strides = array<i32>} : memref<8x8x96xf32, #tpu.memory_space<vmem>>, vector<8x8x96xf32>,
    %c0_153 = arith.constant 0 : index
    %c0_154 = arith.constant 0 : index
    %435 = vector.load %arg9[%c0_153, %c0_154] : memref<32x96xf32, #tpu.memory_space<vmem>>, vector<32x96xf32>
    %c0_155 = arith.constant 0 : index
    %c0_156 = arith.constant 0 : index
    %436 = vector.load %arg13[%c0_155, %c0_156] : memref<32x96xf32, #tpu.memory_space<vmem>>, vector<32x96xf32>
    %c0_157 = arith.constant 0 : index
    %c0_158 = arith.constant 0 : index
    %437 = vector.load %arg11[%c0_157, %c0_158] : memref<1x96xf32, #tpu.memory_space<vmem>>, vector<1x96xf32>
    %438 = vector.shape_cast %437 : vector<1x96xf32> to vector<1x96xf32>
    %439 = vector.broadcast %438 : vector<1x96xf32> to vector<8x96xf32>
    %c0_159 = arith.constant 0 : index
    %c0_160 = arith.constant 0 : index
    %440 = vector.load %arg15[%c0_159, %c0_160] : memref<1x96xf32, #tpu.memory_space<vmem>>, vector<1x96xf32>
    %441 = vector.shape_cast %440 : vector<1x96xf32> to vector<1x96xf32>
    %442 = vector.broadcast %441 : vector<1x96xf32> to vector<8x96xf32>
    %c0_i32_161 = arith.constant 0 : i32
    %c7_i32_162 = arith.constant 7 : i32
    %443 = arith.subi %c7_i32_162, %c0_i32_161 : i32
    %cst_163 = arith.constant dense<0.000000e+00> : vector<8x96xf32>
    %444 = tpu.matmul %18, %435, %cst_163 {dimension_numbers = #tpu.dot_dimension_numbers<[1], [0], [0], [1], [0, 0, 1, 1], [], []>} : vector<8x32xf32>, vector<32x96xf32>, vector<8x96xf32> -> vector<8x96xf32>
    %445 = arith.addf %444, %439 : vector<8x96xf32>
    %cst_164 = arith.constant dense<0.000000e+00> : vector<8x96xf32>
    %446 = tpu.matmul %18, %436, %cst_164 {dimension_numbers = #tpu.dot_dimension_numbers<[1], [0], [0], [1], [0, 0, 1, 1], [], []>} : vector<8x32xf32>, vector<32x96xf32>, vector<8x96xf32> -> vector<8x96xf32>
    %447 = arith.addf %446, %442 : vector<8x96xf32>
    %448 = arith.index_cast %c0_i32_161 : i32 to index
    %c0_165 = arith.constant 0 : index
    %c0_166 = arith.constant 0 : index
    %449 = vector.load %arg23[%448, %c0_165, %c0_166] : memref<8x8x96xf32, #tpu.memory_space<vmem>>, vector<1x8x96xf32>
    %450 = vector.shape_cast %449 : vector<1x8x96xf32> to vector<8x96xf32>
    %451 = arith.addf %450, %445 : vector<8x96xf32>
    %452 = arith.negf %451 : vector<8x96xf32>
    %453 = math.exp %452 : vector<8x96xf32>
    %cst_167 = arith.constant 1.000000e+00 : f32
    %454 = vector.broadcast %cst_167 : f32 to vector<8x96xf32>
    %455 = arith.addf %454, %453 : vector<8x96xf32>
    %456 = arith.divf %454, %455 : vector<8x96xf32>
    %457 = vector.extract_strided_slice %456 {offsets = [0, 0], sizes = [8, 32], strides = [1, 1]} : vector<8x96xf32> to vector<8x32xf32>
    %458 = vector.extract_strided_slice %456 {offsets = [0, 32], sizes = [8, 32], strides = [1, 1]} : vector<8x96xf32> to vector<8x32xf32>
    %459 = vector.extract_strided_slice %450 {offsets = [0, 64], sizes = [8, 32], strides = [1, 1]} : vector<8x96xf32> to vector<8x32xf32>
    %460 = vector.extract_strided_slice %445 {offsets = [0, 64], sizes = [8, 32], strides = [1, 1]} : vector<8x96xf32> to vector<8x32xf32>
    %461 = arith.mulf %457, %460 : vector<8x32xf32>
    %462 = arith.addf %459, %461 : vector<8x32xf32>
    %463 = math.tanh %462 : vector<8x32xf32>
    %cst_168 = arith.constant 1.000000e+00 : f32
    %464 = vector.broadcast %cst_168 : f32 to vector<8x32xf32>
    %465 = arith.subf %464, %458 : vector<8x32xf32>
    %466 = arith.mulf %465, %463 : vector<8x32xf32>
    %467 = arith.mulf %458, %18 : vector<8x32xf32>
    %468 = arith.addf %466, %467 : vector<8x32xf32>
    %469 = arith.index_cast %443 : i32 to index
    %c0_169 = arith.constant 0 : index
    %c0_170 = arith.constant 0 : index
    %470 = vector.load %arg24[%469, %c0_169, %c0_170] : memref<8x8x96xf32, #tpu.memory_space<vmem>>, vector<1x8x96xf32>
    %471 = vector.shape_cast %470 : vector<1x8x96xf32> to vector<8x96xf32>
    %472 = arith.addf %471, %447 : vector<8x96xf32>
    %473 = arith.negf %472 : vector<8x96xf32>
    %474 = math.exp %473 : vector<8x96xf32>
    %cst_171 = arith.constant 1.000000e+00 : f32
    %475 = vector.broadcast %cst_171 : f32 to vector<8x96xf32>
    %476 = arith.addf %475, %474 : vector<8x96xf32>
    %477 = arith.divf %475, %476 : vector<8x96xf32>
    %478 = vector.extract_strided_slice %477 {offsets = [0, 0], sizes = [8, 32], strides = [1, 1]} : vector<8x96xf32> to vector<8x32xf32>
    %479 = vector.extract_strided_slice %477 {offsets = [0, 32], sizes = [8, 32], strides = [1, 1]} : vector<8x96xf32> to vector<8x32xf32>
    %480 = vector.extract_strided_slice %471 {offsets = [0, 64], sizes = [8, 32], strides = [1, 1]} : vector<8x96xf32> to vector<8x32xf32>
    %481 = vector.extract_strided_slice %447 {offsets = [0, 64], sizes = [8, 32], strides = [1, 1]} : vector<8x96xf32> to vector<8x32xf32>
    %482 = arith.mulf %478, %481 : vector<8x32xf32>
    %483 = arith.addf %480, %482 : vector<8x32xf32>
    %484 = math.tanh %483 : vector<8x32xf32>
    %cst_172 = arith.constant 1.000000e+00 : f32
    %485 = vector.broadcast %cst_172 : f32 to vector<8x32xf32>
    %486 = arith.subf %485, %479 : vector<8x32xf32>
    %487 = arith.mulf %486, %484 : vector<8x32xf32>
    %488 = arith.mulf %479, %18 : vector<8x32xf32>
    %489 = arith.addf %487, %488 : vector<8x32xf32>
    %c1_i32_173 = arith.constant 1 : i32
    %c7_i32_174 = arith.constant 7 : i32
    %490 = arith.subi %c7_i32_174, %c1_i32_173 : i32
    %cst_175 = arith.constant dense<0.000000e+00> : vector<8x96xf32>
    %491 = tpu.matmul %468, %435, %cst_175 {dimension_numbers = #tpu.dot_dimension_numbers<[1], [0], [0], [1], [0, 0, 1, 1], [], []>} : vector<8x32xf32>, vector<32x96xf32>, vector<8x96xf32> -> vector<8x96xf32>
    %492 = arith.addf %491, %439 : vector<8x96xf32>
    %cst_176 = arith.constant dense<0.000000e+00> : vector<8x96xf32>
    %493 = tpu.matmul %489, %436, %cst_176 {dimension_numbers = #tpu.dot_dimension_numbers<[1], [0], [0], [1], [0, 0, 1, 1], [], []>} : vector<8x32xf32>, vector<32x96xf32>, vector<8x96xf32> -> vector<8x96xf32>
    %494 = arith.addf %493, %442 : vector<8x96xf32>
    %495 = arith.index_cast %c1_i32_173 : i32 to index
    %c0_177 = arith.constant 0 : index
    %c0_178 = arith.constant 0 : index
    %496 = vector.load %arg23[%495, %c0_177, %c0_178] : memref<8x8x96xf32, #tpu.memory_space<vmem>>, vector<1x8x96xf32>
    %497 = vector.shape_cast %496 : vector<1x8x96xf32> to vector<8x96xf32>
    %498 = arith.addf %497, %492 : vector<8x96xf32>
    %499 = arith.negf %498 : vector<8x96xf32>
    %500 = math.exp %499 : vector<8x96xf32>
    %cst_179 = arith.constant 1.000000e+00 : f32
    %501 = vector.broadcast %cst_179 : f32 to vector<8x96xf32>
    %502 = arith.addf %501, %500 : vector<8x96xf32>
    %503 = arith.divf %501, %502 : vector<8x96xf32>
    %504 = vector.extract_strided_slice %503 {offsets = [0, 0], sizes = [8, 32], strides = [1, 1]} : vector<8x96xf32> to vector<8x32xf32>
    %505 = vector.extract_strided_slice %503 {offsets = [0, 32], sizes = [8, 32], strides = [1, 1]} : vector<8x96xf32> to vector<8x32xf32>
    %506 = vector.extract_strided_slice %497 {offsets = [0, 64], sizes = [8, 32], strides = [1, 1]} : vector<8x96xf32> to vector<8x32xf32>
    %507 = vector.extract_strided_slice %492 {offsets = [0, 64], sizes = [8, 32], strides = [1, 1]} : vector<8x96xf32> to vector<8x32xf32>
    %508 = arith.mulf %504, %507 : vector<8x32xf32>
    %509 = arith.addf %506, %508 : vector<8x32xf32>
    %510 = math.tanh %509 : vector<8x32xf32>
    %cst_180 = arith.constant 1.000000e+00 : f32
    %511 = vector.broadcast %cst_180 : f32 to vector<8x32xf32>
    %512 = arith.subf %511, %505 : vector<8x32xf32>
    %513 = arith.mulf %512, %510 : vector<8x32xf32>
    %514 = arith.mulf %505, %468 : vector<8x32xf32>
    %515 = arith.addf %513, %514 : vector<8x32xf32>
    %516 = arith.index_cast %490 : i32 to index
    %c0_181 = arith.constant 0 : index
    %c0_182 = arith.constant 0 : index
    %517 = vector.load %arg24[%516, %c0_181, %c0_182] : memref<8x8x96xf32, #tpu.memory_space<vmem>>, vector<1x8x96xf32>
    %518 = vector.shape_cast %517 : vector<1x8x96xf32> to vector<8x96xf32>
    %519 = arith.addf %518, %494 : vector<8x96xf32>
    %520 = arith.negf %519 : vector<8x96xf32>
    %521 = math.exp %520 : vector<8x96xf32>
    %cst_183 = arith.constant 1.000000e+00 : f32
    %522 = vector.broadcast %cst_183 : f32 to vector<8x96xf32>
    %523 = arith.addf %522, %521 : vector<8x96xf32>
    %524 = arith.divf %522, %523 : vector<8x96xf32>
    %525 = vector.extract_strided_slice %524 {offsets = [0, 0], sizes = [8, 32], strides = [1, 1]} : vector<8x96xf32> to vector<8x32xf32>
    %526 = vector.extract_strided_slice %524 {offsets = [0, 32], sizes = [8, 32], strides = [1, 1]} : vector<8x96xf32> to vector<8x32xf32>
    %527 = vector.extract_strided_slice %518 {offsets = [0, 64], sizes = [8, 32], strides = [1, 1]} : vector<8x96xf32> to vector<8x32xf32>
    %528 = vector.extract_strided_slice %494 {offsets = [0, 64], sizes = [8, 32], strides = [1, 1]} : vector<8x96xf32> to vector<8x32xf32>
    %529 = arith.mulf %525, %528 : vector<8x32xf32>
    %530 = arith.addf %527, %529 : vector<8x32xf32>
    %531 = math.tanh %530 : vector<8x32xf32>
    %cst_184 = arith.constant 1.000000e+00 : f32
    %532 = vector.broadcast %cst_184 : f32 to vector<8x32xf32>
    %533 = arith.subf %532, %526 : vector<8x32xf32>
    %534 = arith.mulf %533, %531 : vector<8x32xf32>
    %535 = arith.mulf %526, %489 : vector<8x32xf32>
    %536 = arith.addf %534, %535 : vector<8x32xf32>
    %c2_i32_185 = arith.constant 2 : i32
    %c7_i32_186 = arith.constant 7 : i32
    %537 = arith.subi %c7_i32_186, %c2_i32_185 : i32
    %cst_187 = arith.constant dense<0.000000e+00> : vector<8x96xf32>
    %538 = tpu.matmul %515, %435, %cst_187 {dimension_numbers = #tpu.dot_dimension_numbers<[1], [0], [0], [1], [0, 0, 1, 1], [], []>} : vector<8x32xf32>, vector<32x96xf32>, vector<8x96xf32> -> vector<8x96xf32>
    %539 = arith.addf %538, %439 : vector<8x96xf32>
    %cst_188 = arith.constant dense<0.000000e+00> : vector<8x96xf32>
    %540 = tpu.matmul %536, %436, %cst_188 {dimension_numbers = #tpu.dot_dimension_numbers<[1], [0], [0], [1], [0, 0, 1, 1], [], []>} : vector<8x32xf32>, vector<32x96xf32>, vector<8x96xf32> -> vector<8x96xf32>
    %541 = arith.addf %540, %442 : vector<8x96xf32>
    %542 = arith.index_cast %c2_i32_185 : i32 to index
    %c0_189 = arith.constant 0 : index
    %c0_190 = arith.constant 0 : index
    %543 = vector.load %arg23[%542, %c0_189, %c0_190] : memref<8x8x96xf32, #tpu.memory_space<vmem>>, vector<1x8x96xf32>
    %544 = vector.shape_cast %543 : vector<1x8x96xf32> to vector<8x96xf32>
    %545 = arith.addf %544, %539 : vector<8x96xf32>
    %546 = arith.negf %545 : vector<8x96xf32>
    %547 = math.exp %546 : vector<8x96xf32>
    %cst_191 = arith.constant 1.000000e+00 : f32
    %548 = vector.broadcast %cst_191 : f32 to vector<8x96xf32>
    %549 = arith.addf %548, %547 : vector<8x96xf32>
    %550 = arith.divf %548, %549 : vector<8x96xf32>
    %551 = vector.extract_strided_slice %550 {offsets = [0, 0], sizes = [8, 32], strides = [1, 1]} : vector<8x96xf32> to vector<8x32xf32>
    %552 = vector.extract_strided_slice %550 {offsets = [0, 32], sizes = [8, 32], strides = [1, 1]} : vector<8x96xf32> to vector<8x32xf32>
    %553 = vector.extract_strided_slice %544 {offsets = [0, 64], sizes = [8, 32], strides = [1, 1]} : vector<8x96xf32> to vector<8x32xf32>
    %554 = vector.extract_strided_slice %539 {offsets = [0, 64], sizes = [8, 32], strides = [1, 1]} : vector<8x96xf32> to vector<8x32xf32>
    %555 = arith.mulf %551, %554 : vector<8x32xf32>
    %556 = arith.addf %553, %555 : vector<8x32xf32>
    %557 = math.tanh %556 : vector<8x32xf32>
    %cst_192 = arith.constant 1.000000e+00 : f32
    %558 = vector.broadcast %cst_192 : f32 to vector<8x32xf32>
    %559 = arith.subf %558, %552 : vector<8x32xf32>
    %560 = arith.mulf %559, %557 : vector<8x32xf32>
    %561 = arith.mulf %552, %515 : vector<8x32xf32>
    %562 = arith.addf %560, %561 : vector<8x32xf32>
    %563 = arith.index_cast %537 : i32 to index
    %c0_193 = arith.constant 0 : index
    %c0_194 = arith.constant 0 : index
    %564 = vector.load %arg24[%563, %c0_193, %c0_194] : memref<8x8x96xf32, #tpu.memory_space<vmem>>, vector<1x8x96xf32>
    %565 = vector.shape_cast %564 : vector<1x8x96xf32> to vector<8x96xf32>
    %566 = arith.addf %565, %541 : vector<8x96xf32>
    %567 = arith.negf %566 : vector<8x96xf32>
    %568 = math.exp %567 : vector<8x96xf32>
    %cst_195 = arith.constant 1.000000e+00 : f32
    %569 = vector.broadcast %cst_195 : f32 to vector<8x96xf32>
    %570 = arith.addf %569, %568 : vector<8x96xf32>
    %571 = arith.divf %569, %570 : vector<8x96xf32>
    %572 = vector.extract_strided_slice %571 {offsets = [0, 0], sizes = [8, 32], strides = [1, 1]} : vector<8x96xf32> to vector<8x32xf32>
    %573 = vector.extract_strided_slice %571 {offsets = [0, 32], sizes = [8, 32], strides = [1, 1]} : vector<8x96xf32> to vector<8x32xf32>
    %574 = vector.extract_strided_slice %565 {offsets = [0, 64], sizes = [8, 32], strides = [1, 1]} : vector<8x96xf32> to vector<8x32xf32>
    %575 = vector.extract_strided_slice %541 {offsets = [0, 64], sizes = [8, 32], strides = [1, 1]} : vector<8x96xf32> to vector<8x32xf32>
    %576 = arith.mulf %572, %575 : vector<8x32xf32>
    %577 = arith.addf %574, %576 : vector<8x32xf32>
    %578 = math.tanh %577 : vector<8x32xf32>
    %cst_196 = arith.constant 1.000000e+00 : f32
    %579 = vector.broadcast %cst_196 : f32 to vector<8x32xf32>
    %580 = arith.subf %579, %573 : vector<8x32xf32>
    %581 = arith.mulf %580, %578 : vector<8x32xf32>
    %582 = arith.mulf %573, %536 : vector<8x32xf32>
    %583 = arith.addf %581, %582 : vector<8x32xf32>
    %c3_i32_197 = arith.constant 3 : i32
    %c7_i32_198 = arith.constant 7 : i32
    %584 = arith.subi %c7_i32_198, %c3_i32_197 : i32
    %cst_199 = arith.constant dense<0.000000e+00> : vector<8x96xf32>
    %585 = tpu.matmul %562, %435, %cst_199 {dimension_numbers = #tpu.dot_dimension_numbers<[1], [0], [0], [1], [0, 0, 1, 1], [], []>} : vector<8x32xf32>, vector<32x96xf32>, vector<8x96xf32> -> vector<8x96xf32>
    %586 = arith.addf %585, %439 : vector<8x96xf32>
    %cst_200 = arith.constant dense<0.000000e+00> : vector<8x96xf32>
    %587 = tpu.matmul %583, %436, %cst_200 {dimension_numbers = #tpu.dot_dimension_numbers<[1], [0], [0], [1], [0, 0, 1, 1], [], []>} : vector<8x32xf32>, vector<32x96xf32>, vector<8x96xf32> -> vector<8x96xf32>
    %588 = arith.addf %587, %442 : vector<8x96xf32>
    %589 = arith.index_cast %c3_i32_197 : i32 to index
    %c0_201 = arith.constant 0 : index
    %c0_202 = arith.constant 0 : index
    %590 = vector.load %arg23[%589, %c0_201, %c0_202] : memref<8x8x96xf32, #tpu.memory_space<vmem>>, vector<1x8x96xf32>
    %591 = vector.shape_cast %590 : vector<1x8x96xf32> to vector<8x96xf32>
    %592 = arith.addf %591, %586 : vector<8x96xf32>
    %593 = arith.negf %592 : vector<8x96xf32>
    %594 = math.exp %593 : vector<8x96xf32>
    %cst_203 = arith.constant 1.000000e+00 : f32
    %595 = vector.broadcast %cst_203 : f32 to vector<8x96xf32>
    %596 = arith.addf %595, %594 : vector<8x96xf32>
    %597 = arith.divf %595, %596 : vector<8x96xf32>
    %598 = vector.extract_strided_slice %597 {offsets = [0, 0], sizes = [8, 32], strides = [1, 1]} : vector<8x96xf32> to vector<8x32xf32>
    %599 = vector.extract_strided_slice %597 {offsets = [0, 32], sizes = [8, 32], strides = [1, 1]} : vector<8x96xf32> to vector<8x32xf32>
    %600 = vector.extract_strided_slice %591 {offsets = [0, 64], sizes = [8, 32], strides = [1, 1]} : vector<8x96xf32> to vector<8x32xf32>
    %601 = vector.extract_strided_slice %586 {offsets = [0, 64], sizes = [8, 32], strides = [1, 1]} : vector<8x96xf32> to vector<8x32xf32>
    %602 = arith.mulf %598, %601 : vector<8x32xf32>
    %603 = arith.addf %600, %602 : vector<8x32xf32>
    %604 = math.tanh %603 : vector<8x32xf32>
    %cst_204 = arith.constant 1.000000e+00 : f32
    %605 = vector.broadcast %cst_204 : f32 to vector<8x32xf32>
    %606 = arith.subf %605, %599 : vector<8x32xf32>
    %607 = arith.mulf %606, %604 : vector<8x32xf32>
    %608 = arith.mulf %599, %562 : vector<8x32xf32>
    %609 = arith.addf %607, %608 : vector<8x32xf32>
    %610 = arith.index_cast %584 : i32 to index
    %c0_205 = arith.constant 0 : index
    %c0_206 = arith.constant 0 : index
    %611 = vector.load %arg24[%610, %c0_205, %c0_206] : memref<8x8x96xf32, #tpu.memory_space<vmem>>, vector<1x8x96xf32>
    %612 = vector.shape_cast %611 : vector<1x8x96xf32> to vector<8x96xf32>
    %613 = arith.addf %612, %588 : vector<8x96xf32>
    %614 = arith.negf %613 : vector<8x96xf32>
    %615 = math.exp %614 : vector<8x96xf32>
    %cst_207 = arith.constant 1.000000e+00 : f32
    %616 = vector.broadcast %cst_207 : f32 to vector<8x96xf32>
    %617 = arith.addf %616, %615 : vector<8x96xf32>
    %618 = arith.divf %616, %617 : vector<8x96xf32>
    %619 = vector.extract_strided_slice %618 {offsets = [0, 0], sizes = [8, 32], strides = [1, 1]} : vector<8x96xf32> to vector<8x32xf32>
    %620 = vector.extract_strided_slice %618 {offsets = [0, 32], sizes = [8, 32], strides = [1, 1]} : vector<8x96xf32> to vector<8x32xf32>
    %621 = vector.extract_strided_slice %612 {offsets = [0, 64], sizes = [8, 32], strides = [1, 1]} : vector<8x96xf32> to vector<8x32xf32>
    %622 = vector.extract_strided_slice %588 {offsets = [0, 64], sizes = [8, 32], strides = [1, 1]} : vector<8x96xf32> to vector<8x32xf32>
    %623 = arith.mulf %619, %622 : vector<8x32xf32>
    %624 = arith.addf %621, %623 : vector<8x32xf32>
    %625 = math.tanh %624 : vector<8x32xf32>
    %cst_208 = arith.constant 1.000000e+00 : f32
    %626 = vector.broadcast %cst_208 : f32 to vector<8x32xf32>
    %627 = arith.subf %626, %620 : vector<8x32xf32>
    %628 = arith.mulf %627, %625 : vector<8x32xf32>
    %629 = arith.mulf %620, %583 : vector<8x32xf32>
    %630 = arith.addf %628, %629 : vector<8x32xf32>
    %c4_i32_209 = arith.constant 4 : i32
    %c7_i32_210 = arith.constant 7 : i32
    %631 = arith.subi %c7_i32_210, %c4_i32_209 : i32
    %cst_211 = arith.constant dense<0.000000e+00> : vector<8x96xf32>
    %632 = tpu.matmul %609, %435, %cst_211 {dimension_numbers = #tpu.dot_dimension_numbers<[1], [0], [0], [1], [0, 0, 1, 1], [], []>} : vector<8x32xf32>, vector<32x96xf32>, vector<8x96xf32> -> vector<8x96xf32>
    %633 = arith.addf %632, %439 : vector<8x96xf32>
    %cst_212 = arith.constant dense<0.000000e+00> : vector<8x96xf32>
    %634 = tpu.matmul %630, %436, %cst_212 {dimension_numbers = #tpu.dot_dimension_numbers<[1], [0], [0], [1], [0, 0, 1, 1], [], []>} : vector<8x32xf32>, vector<32x96xf32>, vector<8x96xf32> -> vector<8x96xf32>
    %635 = arith.addf %634, %442 : vector<8x96xf32>
    %636 = arith.index_cast %c4_i32_209 : i32 to index
    %c0_213 = arith.constant 0 : index
    %c0_214 = arith.constant 0 : index
    %637 = vector.load %arg23[%636, %c0_213, %c0_214] : memref<8x8x96xf32, #tpu.memory_space<vmem>>, vector<1x8x96xf32>
    %638 = vector.shape_cast %637 : vector<1x8x96xf32> to vector<8x96xf32>
    %639 = arith.addf %638, %633 : vector<8x96xf32>
    %640 = arith.negf %639 : vector<8x96xf32>
    %641 = math.exp %640 : vector<8x96xf32>
    %cst_215 = arith.constant 1.000000e+00 : f32
    %642 = vector.broadcast %cst_215 : f32 to vector<8x96xf32>
    %643 = arith.addf %642, %641 : vector<8x96xf32>
    %644 = arith.divf %642, %643 : vector<8x96xf32>
    %645 = vector.extract_strided_slice %644 {offsets = [0, 0], sizes = [8, 32], strides = [1, 1]} : vector<8x96xf32> to vector<8x32xf32>
    %646 = vector.extract_strided_slice %644 {offsets = [0, 32], sizes = [8, 32], strides = [1, 1]} : vector<8x96xf32> to vector<8x32xf32>
    %647 = vector.extract_strided_slice %638 {offsets = [0, 64], sizes = [8, 32], strides = [1, 1]} : vector<8x96xf32> to vector<8x32xf32>
    %648 = vector.extract_strided_slice %633 {offsets = [0, 64], sizes = [8, 32], strides = [1, 1]} : vector<8x96xf32> to vector<8x32xf32>
    %649 = arith.mulf %645, %648 : vector<8x32xf32>
    %650 = arith.addf %647, %649 : vector<8x32xf32>
    %651 = math.tanh %650 : vector<8x32xf32>
    %cst_216 = arith.constant 1.000000e+00 : f32
    %652 = vector.broadcast %cst_216 : f32 to vector<8x32xf32>
    %653 = arith.subf %652, %646 : vector<8x32xf32>
    %654 = arith.mulf %653, %651 : vector<8x32xf32>
    %655 = arith.mulf %646, %609 : vector<8x32xf32>
    %656 = arith.addf %654, %655 : vector<8x32xf32>
    %657 = arith.index_cast %631 : i32 to index
    %c0_217 = arith.constant 0 : index
    %c0_218 = arith.constant 0 : index
    %658 = vector.load %arg24[%657, %c0_217, %c0_218] : memref<8x8x96xf32, #tpu.memory_space<vmem>>, vector<1x8x96xf32>
    %659 = vector.shape_cast %658 : vector<1x8x96xf32> to vector<8x96xf32>
    %660 = arith.addf %659, %635 : vector<8x96xf32>
    %661 = arith.negf %660 : vector<8x96xf32>
    %662 = math.exp %661 : vector<8x96xf32>
    %cst_219 = arith.constant 1.000000e+00 : f32
    %663 = vector.broadcast %cst_219 : f32 to vector<8x96xf32>
    %664 = arith.addf %663, %662 : vector<8x96xf32>
    %665 = arith.divf %663, %664 : vector<8x96xf32>
    %666 = vector.extract_strided_slice %665 {offsets = [0, 0], sizes = [8, 32], strides = [1, 1]} : vector<8x96xf32> to vector<8x32xf32>
    %667 = vector.extract_strided_slice %665 {offsets = [0, 32], sizes = [8, 32], strides = [1, 1]} : vector<8x96xf32> to vector<8x32xf32>
    %668 = vector.extract_strided_slice %659 {offsets = [0, 64], sizes = [8, 32], strides = [1, 1]} : vector<8x96xf32> to vector<8x32xf32>
    %669 = vector.extract_strided_slice %635 {offsets = [0, 64], sizes = [8, 32], strides = [1, 1]} : vector<8x96xf32> to vector<8x32xf32>
    %670 = arith.mulf %666, %669 : vector<8x32xf32>
    %671 = arith.addf %668, %670 : vector<8x32xf32>
    %672 = math.tanh %671 : vector<8x32xf32>
    %cst_220 = arith.constant 1.000000e+00 : f32
    %673 = vector.broadcast %cst_220 : f32 to vector<8x32xf32>
    %674 = arith.subf %673, %667 : vector<8x32xf32>
    %675 = arith.mulf %674, %672 : vector<8x32xf32>
    %676 = arith.mulf %667, %630 : vector<8x32xf32>
    %677 = arith.addf %675, %676 : vector<8x32xf32>
    %c5_i32_221 = arith.constant 5 : i32
    %c7_i32_222 = arith.constant 7 : i32
    %678 = arith.subi %c7_i32_222, %c5_i32_221 : i32
    %cst_223 = arith.constant dense<0.000000e+00> : vector<8x96xf32>
    %679 = tpu.matmul %656, %435, %cst_223 {dimension_numbers = #tpu.dot_dimension_numbers<[1], [0], [0], [1], [0, 0, 1, 1], [], []>} : vector<8x32xf32>, vector<32x96xf32>, vector<8x96xf32> -> vector<8x96xf32>
    %680 = arith.addf %679, %439 : vector<8x96xf32>
    %cst_224 = arith.constant dense<0.000000e+00> : vector<8x96xf32>
    %681 = tpu.matmul %677, %436, %cst_224 {dimension_numbers = #tpu.dot_dimension_numbers<[1], [0], [0], [1], [0, 0, 1, 1], [], []>} : vector<8x32xf32>, vector<32x96xf32>, vector<8x96xf32> -> vector<8x96xf32>
    %682 = arith.addf %681, %442 : vector<8x96xf32>
    %683 = arith.index_cast %c5_i32_221 : i32 to index
    %c0_225 = arith.constant 0 : index
    %c0_226 = arith.constant 0 : index
    %684 = vector.load %arg23[%683, %c0_225, %c0_226] : memref<8x8x96xf32, #tpu.memory_space<vmem>>, vector<1x8x96xf32>
    %685 = vector.shape_cast %684 : vector<1x8x96xf32> to vector<8x96xf32>
    %686 = arith.addf %685, %680 : vector<8x96xf32>
    %687 = arith.negf %686 : vector<8x96xf32>
    %688 = math.exp %687 : vector<8x96xf32>
    %cst_227 = arith.constant 1.000000e+00 : f32
    %689 = vector.broadcast %cst_227 : f32 to vector<8x96xf32>
    %690 = arith.addf %689, %688 : vector<8x96xf32>
    %691 = arith.divf %689, %690 : vector<8x96xf32>
    %692 = vector.extract_strided_slice %691 {offsets = [0, 0], sizes = [8, 32], strides = [1, 1]} : vector<8x96xf32> to vector<8x32xf32>
    %693 = vector.extract_strided_slice %691 {offsets = [0, 32], sizes = [8, 32], strides = [1, 1]} : vector<8x96xf32> to vector<8x32xf32>
    %694 = vector.extract_strided_slice %685 {offsets = [0, 64], sizes = [8, 32], strides = [1, 1]} : vector<8x96xf32> to vector<8x32xf32>
    %695 = vector.extract_strided_slice %680 {offsets = [0, 64], sizes = [8, 32], strides = [1, 1]} : vector<8x96xf32> to vector<8x32xf32>
    %696 = arith.mulf %692, %695 : vector<8x32xf32>
    %697 = arith.addf %694, %696 : vector<8x32xf32>
    %698 = math.tanh %697 : vector<8x32xf32>
    %cst_228 = arith.constant 1.000000e+00 : f32
    %699 = vector.broadcast %cst_228 : f32 to vector<8x32xf32>
    %700 = arith.subf %699, %693 : vector<8x32xf32>
    %701 = arith.mulf %700, %698 : vector<8x32xf32>
    %702 = arith.mulf %693, %656 : vector<8x32xf32>
    %703 = arith.addf %701, %702 : vector<8x32xf32>
    %704 = arith.index_cast %678 : i32 to index
    %c0_229 = arith.constant 0 : index
    %c0_230 = arith.constant 0 : index
    %705 = vector.load %arg24[%704, %c0_229, %c0_230] : memref<8x8x96xf32, #tpu.memory_space<vmem>>, vector<1x8x96xf32>
    %706 = vector.shape_cast %705 : vector<1x8x96xf32> to vector<8x96xf32>
    %707 = arith.addf %706, %682 : vector<8x96xf32>
    %708 = arith.negf %707 : vector<8x96xf32>
    %709 = math.exp %708 : vector<8x96xf32>
    %cst_231 = arith.constant 1.000000e+00 : f32
    %710 = vector.broadcast %cst_231 : f32 to vector<8x96xf32>
    %711 = arith.addf %710, %709 : vector<8x96xf32>
    %712 = arith.divf %710, %711 : vector<8x96xf32>
    %713 = vector.extract_strided_slice %712 {offsets = [0, 0], sizes = [8, 32], strides = [1, 1]} : vector<8x96xf32> to vector<8x32xf32>
    %714 = vector.extract_strided_slice %712 {offsets = [0, 32], sizes = [8, 32], strides = [1, 1]} : vector<8x96xf32> to vector<8x32xf32>
    %715 = vector.extract_strided_slice %706 {offsets = [0, 64], sizes = [8, 32], strides = [1, 1]} : vector<8x96xf32> to vector<8x32xf32>
    %716 = vector.extract_strided_slice %682 {offsets = [0, 64], sizes = [8, 32], strides = [1, 1]} : vector<8x96xf32> to vector<8x32xf32>
    %717 = arith.mulf %713, %716 : vector<8x32xf32>
    %718 = arith.addf %715, %717 : vector<8x32xf32>
    %719 = math.tanh %718 : vector<8x32xf32>
    %cst_232 = arith.constant 1.000000e+00 : f32
    %720 = vector.broadcast %cst_232 : f32 to vector<8x32xf32>
    %721 = arith.subf %720, %714 : vector<8x32xf32>
    %722 = arith.mulf %721, %719 : vector<8x32xf32>
    %723 = arith.mulf %714, %677 : vector<8x32xf32>
    %724 = arith.addf %722, %723 : vector<8x32xf32>
    %c6_i32_233 = arith.constant 6 : i32
    %c7_i32_234 = arith.constant 7 : i32
    %725 = arith.subi %c7_i32_234, %c6_i32_233 : i32
    %cst_235 = arith.constant dense<0.000000e+00> : vector<8x96xf32>
    %726 = tpu.matmul %703, %435, %cst_235 {dimension_numbers = #tpu.dot_dimension_numbers<[1], [0], [0], [1], [0, 0, 1, 1], [], []>} : vector<8x32xf32>, vector<32x96xf32>, vector<8x96xf32> -> vector<8x96xf32>
    %727 = arith.addf %726, %439 : vector<8x96xf32>
    %cst_236 = arith.constant dense<0.000000e+00> : vector<8x96xf32>
    %728 = tpu.matmul %724, %436, %cst_236 {dimension_numbers = #tpu.dot_dimension_numbers<[1], [0], [0], [1], [0, 0, 1, 1], [], []>} : vector<8x32xf32>, vector<32x96xf32>, vector<8x96xf32> -> vector<8x96xf32>
    %729 = arith.addf %728, %442 : vector<8x96xf32>
    %730 = arith.index_cast %c6_i32_233 : i32 to index
    %c0_237 = arith.constant 0 : index
    %c0_238 = arith.constant 0 : index
    %731 = vector.load %arg23[%730, %c0_237, %c0_238] : memref<8x8x96xf32, #tpu.memory_space<vmem>>, vector<1x8x96xf32>
    %732 = vector.shape_cast %731 : vector<1x8x96xf32> to vector<8x96xf32>
    %733 = arith.addf %732, %727 : vector<8x96xf32>
    %734 = arith.negf %733 : vector<8x96xf32>
    %735 = math.exp %734 : vector<8x96xf32>
    %cst_239 = arith.constant 1.000000e+00 : f32
    %736 = vector.broadcast %cst_239 : f32 to vector<8x96xf32>
    %737 = arith.addf %736, %735 : vector<8x96xf32>
    %738 = arith.divf %736, %737 : vector<8x96xf32>
    %739 = vector.extract_strided_slice %738 {offsets = [0, 0], sizes = [8, 32], strides = [1, 1]} : vector<8x96xf32> to vector<8x32xf32>
    %740 = vector.extract_strided_slice %738 {offsets = [0, 32], sizes = [8, 32], strides = [1, 1]} : vector<8x96xf32> to vector<8x32xf32>
    %741 = vector.extract_strided_slice %732 {offsets = [0, 64], sizes = [8, 32], strides = [1, 1]} : vector<8x96xf32> to vector<8x32xf32>
    %742 = vector.extract_strided_slice %727 {offsets = [0, 64], sizes = [8, 32], strides = [1, 1]} : vector<8x96xf32> to vector<8x32xf32>
    %743 = arith.mulf %739, %742 : vector<8x32xf32>
    %744 = arith.addf %741, %743 : vector<8x32xf32>
    %745 = math.tanh %744 : vector<8x32xf32>
    %cst_240 = arith.constant 1.000000e+00 : f32
    %746 = vector.broadcast %cst_240 : f32 to vector<8x32xf32>
    %747 = arith.subf %746, %740 : vector<8x32xf32>
    %748 = arith.mulf %747, %745 : vector<8x32xf32>
    %749 = arith.mulf %740, %703 : vector<8x32xf32>
    %750 = arith.addf %748, %749 : vector<8x32xf32>
    %751 = arith.index_cast %725 : i32 to index
    %c0_241 = arith.constant 0 : index
    %c0_242 = arith.constant 0 : index
    %752 = vector.load %arg24[%751, %c0_241, %c0_242] : memref<8x8x96xf32, #tpu.memory_space<vmem>>, vector<1x8x96xf32>
    %753 = vector.shape_cast %752 : vector<1x8x96xf32> to vector<8x96xf32>
    %754 = arith.addf %753, %729 : vector<8x96xf32>
    %755 = arith.negf %754 : vector<8x96xf32>
    %756 = math.exp %755 : vector<8x96xf32>
    %cst_243 = arith.constant 1.000000e+00 : f32
    %757 = vector.broadcast %cst_243 : f32 to vector<8x96xf32>
    %758 = arith.addf %757, %756 : vector<8x96xf32>
    %759 = arith.divf %757, %758 : vector<8x96xf32>
    %760 = vector.extract_strided_slice %759 {offsets = [0, 0], sizes = [8, 32], strides = [1, 1]} : vector<8x96xf32> to vector<8x32xf32>
    %761 = vector.extract_strided_slice %759 {offsets = [0, 32], sizes = [8, 32], strides = [1, 1]} : vector<8x96xf32> to vector<8x32xf32>
    %762 = vector.extract_strided_slice %753 {offsets = [0, 64], sizes = [8, 32], strides = [1, 1]} : vector<8x96xf32> to vector<8x32xf32>
    %763 = vector.extract_strided_slice %729 {offsets = [0, 64], sizes = [8, 32], strides = [1, 1]} : vector<8x96xf32> to vector<8x32xf32>
    %764 = arith.mulf %760, %763 : vector<8x32xf32>
    %765 = arith.addf %762, %764 : vector<8x32xf32>
    %766 = math.tanh %765 : vector<8x32xf32>
    %cst_244 = arith.constant 1.000000e+00 : f32
    %767 = vector.broadcast %cst_244 : f32 to vector<8x32xf32>
    %768 = arith.subf %767, %761 : vector<8x32xf32>
    %769 = arith.mulf %768, %766 : vector<8x32xf32>
    %770 = arith.mulf %761, %724 : vector<8x32xf32>
    %771 = arith.addf %769, %770 : vector<8x32xf32>
    %c7_i32_245 = arith.constant 7 : i32
    %c7_i32_246 = arith.constant 7 : i32
    %772 = arith.subi %c7_i32_246, %c7_i32_245 : i32
    %cst_247 = arith.constant dense<0.000000e+00> : vector<8x96xf32>
    %773 = tpu.matmul %750, %435, %cst_247 {dimension_numbers = #tpu.dot_dimension_numbers<[1], [0], [0], [1], [0, 0, 1, 1], [], []>} : vector<8x32xf32>, vector<32x96xf32>, vector<8x96xf32> -> vector<8x96xf32>
    %774 = arith.addf %773, %439 : vector<8x96xf32>
    %cst_248 = arith.constant dense<0.000000e+00> : vector<8x96xf32>
    %775 = tpu.matmul %771, %436, %cst_248 {dimension_numbers = #tpu.dot_dimension_numbers<[1], [0], [0], [1], [0, 0, 1, 1], [], []>} : vector<8x32xf32>, vector<32x96xf32>, vector<8x96xf32> -> vector<8x96xf32>
    %776 = arith.addf %775, %442 : vector<8x96xf32>
    %777 = arith.index_cast %c7_i32_245 : i32 to index
    %c0_249 = arith.constant 0 : index
    %c0_250 = arith.constant 0 : index
    %778 = vector.load %arg23[%777, %c0_249, %c0_250] : memref<8x8x96xf32, #tpu.memory_space<vmem>>, vector<1x8x96xf32>
    %779 = vector.shape_cast %778 : vector<1x8x96xf32> to vector<8x96xf32>
    %780 = arith.addf %779, %774 : vector<8x96xf32>
    %781 = arith.negf %780 : vector<8x96xf32>
    %782 = math.exp %781 : vector<8x96xf32>
    %cst_251 = arith.constant 1.000000e+00 : f32
    %783 = vector.broadcast %cst_251 : f32 to vector<8x96xf32>
    %784 = arith.addf %783, %782 : vector<8x96xf32>
    %785 = arith.divf %783, %784 : vector<8x96xf32>
    %786 = vector.extract_strided_slice %785 {offsets = [0, 0], sizes = [8, 32], strides = [1, 1]} : vector<8x96xf32> to vector<8x32xf32>
    %787 = vector.extract_strided_slice %785 {offsets = [0, 32], sizes = [8, 32], strides = [1, 1]} : vector<8x96xf32> to vector<8x32xf32>
    %788 = vector.extract_strided_slice %779 {offsets = [0, 64], sizes = [8, 32], strides = [1, 1]} : vector<8x96xf32> to vector<8x32xf32>
    %789 = vector.extract_strided_slice %774 {offsets = [0, 64], sizes = [8, 32], strides = [1, 1]} : vector<8x96xf32> to vector<8x32xf32>
    %790 = arith.mulf %786, %789 : vector<8x32xf32>
    %791 = arith.addf %788, %790 : vector<8x32xf32>
    %792 = math.tanh %791 : vector<8x32xf32>
    %cst_252 = arith.constant 1.000000e+00 : f32
    %793 = vector.broadcast %cst_252 : f32 to vector<8x32xf32>
    %794 = arith.subf %793, %787 : vector<8x32xf32>
    %795 = arith.mulf %794, %792 : vector<8x32xf32>
    %796 = arith.mulf %787, %750 : vector<8x32xf32>
    %797 = arith.addf %795, %796 : vector<8x32xf32>
    %798 = arith.index_cast %772 : i32 to index
    %c0_253 = arith.constant 0 : index
    %c0_254 = arith.constant 0 : index
    %799 = vector.load %arg24[%798, %c0_253, %c0_254] : memref<8x8x96xf32, #tpu.memory_space<vmem>>, vector<1x8x96xf32>
    %800 = vector.shape_cast %799 : vector<1x8x96xf32> to vector<8x96xf32>
    %801 = arith.addf %800, %776 : vector<8x96xf32>
    %802 = arith.negf %801 : vector<8x96xf32>
    %803 = math.exp %802 : vector<8x96xf32>
    %cst_255 = arith.constant 1.000000e+00 : f32
    %804 = vector.broadcast %cst_255 : f32 to vector<8x96xf32>
    %805 = arith.addf %804, %803 : vector<8x96xf32>
    %806 = arith.divf %804, %805 : vector<8x96xf32>
    %807 = vector.extract_strided_slice %806 {offsets = [0, 0], sizes = [8, 32], strides = [1, 1]} : vector<8x96xf32> to vector<8x32xf32>
    %808 = vector.extract_strided_slice %806 {offsets = [0, 32], sizes = [8, 32], strides = [1, 1]} : vector<8x96xf32> to vector<8x32xf32>
    %809 = vector.extract_strided_slice %800 {offsets = [0, 64], sizes = [8, 32], strides = [1, 1]} : vector<8x96xf32> to vector<8x32xf32>
    %810 = vector.extract_strided_slice %776 {offsets = [0, 64], sizes = [8, 32], strides = [1, 1]} : vector<8x96xf32> to vector<8x32xf32>
    %811 = arith.mulf %807, %810 : vector<8x32xf32>
    %812 = arith.addf %809, %811 : vector<8x32xf32>
    %813 = math.tanh %812 : vector<8x32xf32>
    %cst_256 = arith.constant 1.000000e+00 : f32
    %814 = vector.broadcast %cst_256 : f32 to vector<8x32xf32>
    %815 = arith.subf %814, %808 : vector<8x32xf32>
    %816 = arith.mulf %815, %813 : vector<8x32xf32>
    %817 = arith.mulf %808, %771 : vector<8x32xf32>
    %818 = arith.addf %816, %817 : vector<8x32xf32>
    %c8_i32_257 = arith.constant 8 : i32
    %c0_258 = arith.constant 0 : index
    %c0_259 = arith.constant 0 : index
    %819 = vector.load %arg16[%c0_258, %c0_259] : memref<64x1xf32, #tpu.memory_space<vmem>>, vector<32x1xf32>
    %cst_260 = arith.constant dense<0.000000e+00> : vector<8x1xf32>
    %820 = tpu.matmul %797, %819, %cst_260 {dimension_numbers = #tpu.dot_dimension_numbers<[1], [0], [0], [1], [0, 0, 1, 1], [], []>} : vector<8x32xf32>, vector<32x1xf32>, vector<8x1xf32> -> vector<8x1xf32>
    %c32_261 = arith.constant 32 : index
    %c0_262 = arith.constant 0 : index
    %821 = vector.load %arg16[%c32_261, %c0_262] : memref<64x1xf32, #tpu.memory_space<vmem>>, vector<32x1xf32>
    %cst_263 = arith.constant dense<0.000000e+00> : vector<8x1xf32>
    %822 = tpu.matmul %818, %821, %cst_263 {dimension_numbers = #tpu.dot_dimension_numbers<[1], [0], [0], [1], [0, 0, 1, 1], [], []>} : vector<8x32xf32>, vector<32x1xf32>, vector<8x1xf32> -> vector<8x1xf32>
    %823 = arith.addf %820, %822 : vector<8x1xf32>
    %c0_264 = arith.constant 0 : index
    %c0_265 = arith.constant 0 : index
    %824 = vector.load %arg17[%c0_264, %c0_265] : memref<1x1xf32, #tpu.memory_space<vmem>>, vector<1x1xf32>
    %825 = vector.broadcast %824 : vector<1x1xf32> to vector<8x1xf32>
    %826 = arith.addf %823, %825 : vector<8x1xf32>
    %c0_266 = arith.constant 0 : index
    %c0_267 = arith.constant 0 : index
    %827 = vector.load %arg18[%c0_266, %c0_267] : memref<8x1xf32, #tpu.memory_space<vmem>>, vector<8x1xf32>
    tpu.vector_store %arg18[%c0_266, %c0_267], %826 {strides = array<i32>} : memref<8x1xf32, #tpu.memory_space<vmem>>, vector<8x1xf32>,
    return
  }
  func.func @transform_0(%arg0: i32) -> (i32, i32, i32) {
    %c0_i32 = arith.constant 0 : i32
    %c0_i32_0 = arith.constant 0 : i32
    %c0_i32_1 = arith.constant 0 : i32
    return %c0_i32, %arg0, %c0_i32_0 : i32, i32, i32
  }
  func.func @transform_1(%arg0: i32) -> (i32, i32) {
    %c0_i32 = arith.constant 0 : i32
    %c0_i32_0 = arith.constant 0 : i32
    %c0_i32_1 = arith.constant 0 : i32
    return %c0_i32, %c0_i32_0 : i32, i32
  }
  func.func @transform_2(%arg0: i32) -> (i32, i32) {
    %c0_i32 = arith.constant 0 : i32
    %c0_i32_0 = arith.constant 0 : i32
    %c0_i32_1 = arith.constant 0 : i32
    return %c0_i32, %c0_i32_0 : i32, i32
  }
  func.func @transform_3(%arg0: i32) -> (i32, i32) {
    %c0_i32 = arith.constant 0 : i32
    %c0_i32_0 = arith.constant 0 : i32
    %c0_i32_1 = arith.constant 0 : i32
    return %c0_i32, %c0_i32_0 : i32, i32
  }
  func.func @transform_4(%arg0: i32) -> (i32, i32) {
    %c0_i32 = arith.constant 0 : i32
    %c0_i32_0 = arith.constant 0 : i32
    %c0_i32_1 = arith.constant 0 : i32
    return %c0_i32, %c0_i32_0 : i32, i32
  }
  func.func @transform_5(%arg0: i32) -> (i32, i32) {
    %c0_i32 = arith.constant 0 : i32
    %c0_i32_0 = arith.constant 0 : i32
    %c0_i32_1 = arith.constant 0 : i32
    return %c0_i32, %c0_i32_0 : i32, i32
  }
  func.func @transform_6(%arg0: i32) -> (i32, i32) {
    %c0_i32 = arith.constant 0 : i32
    %c0_i32_0 = arith.constant 0 : i32
    %c0_i32_1 = arith.constant 0 : i32
    return %c0_i32, %c0_i32_0 : i32, i32
  }
  func.func @transform_7(%arg0: i32) -> (i32, i32) {
    %c0_i32 = arith.constant 0 : i32
    %c0_i32_0 = arith.constant 0 : i32
    %c0_i32_1 = arith.constant 0 : i32
    return %c0_i32, %c0_i32_0 : i32, i32
  }
  func.func @transform_8(%arg0: i32) -> (i32, i32) {
    %c0_i32 = arith.constant 0 : i32
    %c0_i32_0 = arith.constant 0 : i32
    %c0_i32_1 = arith.constant 0 : i32
    return %c0_i32, %c0_i32_0 : i32, i32
  }
  func.func @transform_9(%arg0: i32) -> (i32, i32) {
    %c0_i32 = arith.constant 0 : i32
    %c0_i32_0 = arith.constant 0 : i32
    %c0_i32_1 = arith.constant 0 : i32
    return %c0_i32, %c0_i32_0 : i32, i32
  }
  func.func @transform_10(%arg0: i32) -> (i32, i32) {
    %c0_i32 = arith.constant 0 : i32
    %c0_i32_0 = arith.constant 0 : i32
    %c0_i32_1 = arith.constant 0 : i32
    return %c0_i32, %c0_i32_0 : i32, i32
  }
  func.func @transform_11(%arg0: i32) -> (i32, i32) {
    %c0_i32 = arith.constant 0 : i32
    %c0_i32_0 = arith.constant 0 : i32
    %c0_i32_1 = arith.constant 0 : i32
    return %c0_i32, %c0_i32_0 : i32, i32
  }
  func.func @transform_12(%arg0: i32) -> (i32, i32) {
    %c0_i32 = arith.constant 0 : i32
    %c0_i32_0 = arith.constant 0 : i32
    %c0_i32_1 = arith.constant 0 : i32
    return %c0_i32, %c0_i32_0 : i32, i32
  }
  func.func @transform_13(%arg0: i32) -> (i32, i32) {
    %c0_i32 = arith.constant 0 : i32
    %c0_i32_0 = arith.constant 0 : i32
    %c0_i32_1 = arith.constant 0 : i32
    return %c0_i32, %c0_i32_0 : i32, i32
  }
  func.func @transform_14(%arg0: i32) -> (i32, i32) {
    %c0_i32 = arith.constant 0 : i32
    %c0_i32_0 = arith.constant 0 : i32
    %c0_i32_1 = arith.constant 0 : i32
    return %c0_i32, %c0_i32_0 : i32, i32
  }
  func.func @transform_15(%arg0: i32) -> (i32, i32) {
    %c0_i32 = arith.constant 0 : i32
    %c0_i32_0 = arith.constant 0 : i32
    %c0_i32_1 = arith.constant 0 : i32
    return %c0_i32, %c0_i32_0 : i32, i32
  }
  func.func @transform_16(%arg0: i32) -> (i32, i32) {
    %c0_i32 = arith.constant 0 : i32
    %c0_i32_0 = arith.constant 0 : i32
    %c0_i32_1 = arith.constant 0 : i32
    return %c0_i32, %c0_i32_0 : i32, i32
  }
  func.func @transform_17(%arg0: i32) -> (i32, i32) {
    %c0_i32 = arith.constant 0 : i32
    %c0_i32_0 = arith.constant 0 : i32
    return %arg0, %c0_i32 : i32, i32
  }
}

</mosaic_0001>

<llo_original>
// kernel: tpu_custom_call.1
$region0: #{tpu_custom_call.1}
  #allocation0 [shape = 'u32[]', space=smem, size = 0x4, offset = 0x4, fixed_abs, tag = 'smem constant byte address 0x4 - core index']
  #allocation1 [shape = 'u32[72,128]{1,0:T(1,128)}', space=vmem, size = 0x9000, scoped, tag = 'internal scratch']
  #allocation2 [shape = 'f32[8,8,128]{2,1,0:T(8,128)}', space=vmem, size = 0x8000, scoped, tag = 'scratch operand']
  #allocation3 [shape = 'f32[8,8,128]{2,1,0:T(8,128)}', space=vmem, size = 0x8000, scoped, tag = 'scratch operand']
  #allocation4 [shape = 'f32[8,8,32]{2,1,0:T(8,128)}', space=vmem, size = 0x8000, scoped, tag = 'scratch operand']
  #allocation5 [shape = 'f32[8,8,32]{2,1,0:T(8,128)}', space=vmem, size = 0x8000, scoped, tag = 'scratch operand']
  #allocation6 [shape = 'f32[8,8,96]{2,1,0:T(8,128)}', space=vmem, size = 0x8000, scoped, tag = 'scratch operand']
  #allocation7 [shape = 'f32[8,8,96]{2,1,0:T(8,128)}', space=vmem, size = 0x8000, scoped, tag = 'scratch operand']
  #allocation8 [shape = 'f32[1,1]{1,0:T(1,128)S(1)}', space=vmem, size = 0x200, scoped, tag = 'scoped memory for tpu_custom_call.1']
  %s0 = inlined_call_operand.vmem [shape: f32[8,8,32], index: 0, kind: input, shape index: {}]
  %s1 = inlined_call_operand.hbm [shape: f32[32,128], index: 1, kind: input, shape index: {}]
  %s2 = inlined_call_operand.hbm [shape: f32[32,128], index: 2, kind: input, shape index: {}]
  %s3 = inlined_call_operand.vmem [shape: f32[1,128], index: 3, kind: input, shape index: {}]
  %s4 = inlined_call_operand.hbm [shape: f32[32,128], index: 4, kind: input, shape index: {}]
  %s5 = inlined_call_operand.hbm [shape: f32[32,128], index: 5, kind: input, shape index: {}]
  %s6 = inlined_call_operand.vmem [shape: f32[1,128], index: 6, kind: input, shape index: {}]
  %s7 = inlined_call_operand.hbm [shape: f32[64,96], index: 7, kind: input, shape index: {}]
  %s8 = inlined_call_operand.hbm [shape: f32[32,96], index: 8, kind: input, shape index: {}]
  %s9 = inlined_call_operand.vmem [shape: f32[1,96], index: 9, kind: input, shape index: {}]
  %s10 = inlined_call_operand.vmem [shape: f32[1,96], index: 10, kind: input, shape index: {}]
  %s11 = inlined_call_operand.hbm [shape: f32[64,96], index: 11, kind: input, shape index: {}]
  %s12 = inlined_call_operand.hbm [shape: f32[32,96], index: 12, kind: input, shape index: {}]
  %s13 = inlined_call_operand.vmem [shape: f32[1,96], index: 13, kind: input, shape index: {}]
  %s14 = inlined_call_operand.vmem [shape: f32[1,96], index: 14, kind: input, shape index: {}]
  %s15 = inlined_call_operand.vmem [shape: f32[64,1], index: 15, kind: input, shape index: {}]
  %s16 = inlined_call_operand.<no memory space> [shape: f32[1,1], index: 16, kind: input, shape index: {}]
  %s17 = inlined_call_operand.vmem [shape: f32[8,1], index: 17, kind: output, shape index: {}]
  %s18 = sld [smem:[#allocation0]]
  $region110: #{tpu_custom_call.1} parent=0
    _
  %s20 = ssub.s32 1, %s18
  %s21 = scalar_select 0, %s20, %s18
  %v22 = vstv %s16
  %23 = vst [vmem:[#allocation8] sm:$0x1] %v22
  $region1: #{tpu_custom_call.1} parent=0
    #allocation9 [shape = 'u8[16384]{0}', space=vmem, size = 0x4000, scoped, tag = 'input window, operand 1, single buffered']
    #allocation10 [shape = 's32[1]{0}', space=sflag, size = 0x4, scoped, tag = 'scoped memory for tpu_custom_call.1']
    #allocation11 [shape = 'u8[16384]{0}', space=vmem, size = 0x4000, scoped, tag = 'input window, operand 2, single buffered']
    #allocation12 [shape = 's32[1]{0}', space=sflag, size = 0x4, scoped, tag = 'scoped memory for tpu_custom_call.1']
    #allocation13 [shape = 'u8[16384]{0}', space=vmem, size = 0x4000, scoped, tag = 'input window, operand 4, single buffered']
    #allocation14 [shape = 'u8[16384]{0}', space=vmem, size = 0x4000, scoped, tag = 'input window, operand 5, single buffered']
    #allocation15 [shape = 's32[1]{0}', space=sflag, size = 0x4, scoped, tag = 'scoped memory for tpu_custom_call.1']
    #allocation16 [shape = 'u8[32768]{0}', space=vmem, size = 0x8000, scoped, tag = 'input window, operand 7, single buffered']
    #allocation17 [shape = 'u8[16384]{0}', space=vmem, size = 0x4000, scoped, tag = 'input window, operand 8, single buffered']
    #allocation18 [shape = 's32[1]{0}', space=sflag, size = 0x4, scoped, tag = 'scoped memory for tpu_custom_call.1']
    #allocation19 [shape = 'u8[32768]{0}', space=vmem, size = 0x8000, scoped, tag = 'input window, operand 11, single buffered']
    #allocation20 [shape = 'u8[16384]{0}', space=vmem, size = 0x4000, scoped, tag = 'input window, operand 12, single buffered']
    #allocation21 [shape = 's32[1]{0}', space=sflag, size = 0x4, scoped, tag = 'scoped memory for tpu_custom_call.1']
    %24 = vsyncpa [#allocation10], 0
    %25 = vsyncpa [#allocation12], 0
    %26 = vsyncpa [#allocation15], 0
    %27 = vsyncpa [#allocation18], 0
    %28 = vsyncpa [#allocation21], 0
    // Predicated region
    $region2: #{tpu_custom_call.1} parent=1 // pred_check
      _
    $region3: #{tpu_custom_call.1} parent=1 // pred_check_branch
      %30 = sbr.rel (0) target = $region5
    $region4: #{tpu_custom_call.1} parent=1 // pred_region
      _
    $region5: #{tpu_custom_call.1} parent=1 // pred_fallthru
      _
    // Predicated region
    $region6: #{tpu_custom_call.1} parent=1 // pred_check
      _
    $region7: #{tpu_custom_call.1} parent=1 // pred_check_branch
      %32 = sbr.rel (0) target = $region9
    $region8: #{tpu_custom_call.1} parent=1 // pred_region
      %34 = vsyncadd [#allocation10], 0
      %s35 = sshll.u32 %s1, 4
      %s36 = int_to_ptr.hbm [resolvable:$true] %s35
      %s37 = sshll.u32 [#allocation9], 4
      %s38 = int_to_ptr.vmem [resolvable:$true] %s37
      %43 = dma.hbm_to_vmem [thread:$0]  %s36, 512, %s38, [#allocation10], 128, 128, 8
    $region9: #{tpu_custom_call.1} parent=1 // pred_fallthru
      _
    // Predicated region
    $region10: #{tpu_custom_call.1} parent=1 // pred_check
      _
    $region11: #{tpu_custom_call.1} parent=1 // pred_check_branch
      %45 = sbr.rel (0) target = $region13
    $region12: #{tpu_custom_call.1} parent=1 // pred_region
      %47 = vsyncadd [#allocation12], 0
      %s48 = sshll.u32 %s2, 4
      %s49 = int_to_ptr.hbm [resolvable:$true] %s48
      %s50 = sshll.u32 [#allocation11], 4
      %s51 = int_to_ptr.vmem [resolvable:$true] %s50
      %56 = dma.hbm_to_vmem [thread:$0]  %s49, 512, %s51, [#allocation12], 128, 128, 8
    $region13: #{tpu_custom_call.1} parent=1 // pred_fallthru
      _
    // Predicated region
    $region14: #{tpu_custom_call.1} parent=1 // pred_check
      _
    $region15: #{tpu_custom_call.1} parent=1 // pred_check_branch
      %58 = sbr.rel (0) target = $region17
    $region16: #{tpu_custom_call.1} parent=1 // pred_region
      _
    $region17: #{tpu_custom_call.1} parent=1 // pred_fallthru
      _
    // Predicated region
    $region18: #{tpu_custom_call.1} parent=1 // pred_check
      _
    $region19: #{tpu_custom_call.1} parent=1 // pred_check_branch
      %60 = sbr.rel (0) target = $region21
    $region20: #{tpu_custom_call.1} parent=1 // pred_region
      %62 = vsyncadd [#allocation12], 0
      %s63 = sshll.u32 %s4, 4
      %s64 = int_to_ptr.hbm [resolvable:$true] %s63
      %s65 = sshll.u32 [#allocation13], 4
      %s66 = int_to_ptr.vmem [resolvable:$true] %s65
      %71 = dma.hbm_to_vmem [thread:$0]  %s64, 512, %s66, [#allocation12], 128, 128, 8
    $region21: #{tpu_custom_call.1} parent=1 // pred_fallthru
      _
    // Predicated region
    $region22: #{tpu_custom_call.1} parent=1 // pred_check
      _
    $region23: #{tpu_custom_call.1} parent=1 // pred_check_branch
      %73 = sbr.rel (0) target = $region25
    $region24: #{tpu_custom_call.1} parent=1 // pred_region
      %75 = vsyncadd [#allocation15], 0
      %s76 = sshll.u32 %s5, 4
      %s77 = int_to_ptr.hbm [resolvable:$true] %s76
      %s78 = sshll.u32 [#allocation14], 4
      %s79 = int_to_ptr.vmem [resolvable:$true] %s78
      %84 = dma.hbm_to_vmem [thread:$0]  %s77, 512, %s79, [#allocation15], 128, 128, 8
    $region25: #{tpu_custom_call.1} parent=1 // pred_fallthru
      _
    // Predicated region
    $region26: #{tpu_custom_call.1} parent=1 // pred_check
      _
    $region27: #{tpu_custom_call.1} parent=1 // pred_check_branch
      %86 = sbr.rel (0) target = $region29
    $region28: #{tpu_custom_call.1} parent=1 // pred_region
      _
    $region29: #{tpu_custom_call.1} parent=1 // pred_fallthru
      _
    // Predicated region
    $region30: #{tpu_custom_call.1} parent=1 // pred_check
      _
    $region31: #{tpu_custom_call.1} parent=1 // pred_check_branch
      %88 = sbr.rel (0) target = $region33
    $region32: #{tpu_custom_call.1} parent=1 // pred_region
      %90 = vsyncadd [#allocation15], 0
      %s91 = sshll.u32 %s7, 4
      %s92 = int_to_ptr.hbm [resolvable:$true] %s91
      %s93 = sshll.u32 [#allocation16], 4
      %s94 = int_to_ptr.vmem [resolvable:$true] %s93
      %99 = dma.hbm_to_vmem [thread:$0]  %s92, 1024, %s94, [#allocation15], 128, 128, 8
    $region33: #{tpu_custom_call.1} parent=1 // pred_fallthru
      _
    // Predicated region
    $region34: #{tpu_custom_call.1} parent=1 // pred_check
      _
    $region35: #{tpu_custom_call.1} parent=1 // pred_check_branch
      %101 = sbr.rel (0) target = $region37
    $region36: #{tpu_custom_call.1} parent=1 // pred_region
      %103 = vsyncadd [#allocation18], 0
      %s104 = sshll.u32 %s8, 4
      %s105 = int_to_ptr.hbm [resolvable:$true] %s104
      %s106 = sshll.u32 [#allocation17], 4
      %s107 = int_to_ptr.vmem [resolvable:$true] %s106
      %112 = dma.hbm_to_vmem [thread:$0]  %s105, 512, %s107, [#allocation18], 128, 128, 8
    $region37: #{tpu_custom_call.1} parent=1 // pred_fallthru
      _
    // Predicated region
    $region38: #{tpu_custom_call.1} parent=1 // pred_check
      _
    $region39: #{tpu_custom_call.1} parent=1 // pred_check_branch
      %114 = sbr.rel (0) target = $region41
    $region40: #{tpu_custom_call.1} parent=1 // pred_region
      _
    $region41: #{tpu_custom_call.1} parent=1 // pred_fallthru
      _
    // Predicated region
    $region42: #{tpu_custom_call.1} parent=1 // pred_check
      _
    $region43: #{tpu_custom_call.1} parent=1 // pred_check_branch
      %116 = sbr.rel (0) target = $region45
    $region44: #{tpu_custom_call.1} parent=1 // pred_region
      _
    $region45: #{tpu_custom_call.1} parent=1 // pred_fallthru
      _
    // Predicated region
    $region46: #{tpu_custom_call.1} parent=1 // pred_check
      _
    $region47: #{tpu_custom_call.1} parent=1 // pred_check_branch
      %118 = sbr.rel (0) target = $region49
    $region48: #{tpu_custom_call.1} parent=1 // pred_region
      %120 = vsyncadd [#allocation18], 0
      %s121 = sshll.u32 %s11, 4
      %s122 = int_to_ptr.hbm [resolvable:$true] %s121
      %s123 = sshll.u32 [#allocation19], 4
      %s124 = int_to_ptr.vmem [resolvable:$true] %s123
      %129 = dma.hbm_to_vmem [thread:$0]  %s122, 1024, %s124, [#allocation18], 128, 128, 8
    $region49: #{tpu_custom_call.1} parent=1 // pred_fallthru
      _
    // Predicated region
    $region50: #{tpu_custom_call.1} parent=1 // pred_check
      _
    $region51: #{tpu_custom_call.1} parent=1 // pred_check_branch
      %131 = sbr.rel (0) target = $region53
    $region52: #{tpu_custom_call.1} parent=1 // pred_region
      %133 = vsyncadd [#allocation21], 0
      %s134 = sshll.u32 %s12, 4
      %s135 = int_to_ptr.hbm [resolvable:$true] %s134
      %s136 = sshll.u32 [#allocation20], 4
      %s137 = int_to_ptr.vmem [resolvable:$true] %s136
      %142 = dma.hbm_to_vmem [thread:$0]  %s135, 512, %s137, [#allocation21], 128, 128, 8
    $region53: #{tpu_custom_call.1} parent=1 // pred_fallthru
      _
    // Predicated region
    $region54: #{tpu_custom_call.1} parent=1 // pred_check
      _
    $region55: #{tpu_custom_call.1} parent=1 // pred_check_branch
      %144 = sbr.rel (0) target = $region57
    $region56: #{tpu_custom_call.1} parent=1 // pred_region
      _
    $region57: #{tpu_custom_call.1} parent=1 // pred_fallthru
      _
    // Predicated region
    $region58: #{tpu_custom_call.1} parent=1 // pred_check
      _
    $region59: #{tpu_custom_call.1} parent=1 // pred_check_branch
      %146 = sbr.rel (0) target = $region61
    $region60: #{tpu_custom_call.1} parent=1 // pred_region
      _
    $region61: #{tpu_custom_call.1} parent=1 // pred_fallthru
      _
    // Predicated region
    $region62: #{tpu_custom_call.1} parent=1 // pred_check
      _
    $region63: #{tpu_custom_call.1} parent=1 // pred_check_branch
      %148 = sbr.rel (0) target = $region65
    $region64: #{tpu_custom_call.1} parent=1 // pred_region
      _
    $region65: #{tpu_custom_call.1} parent=1 // pred_fallthru
      _
    // Predicated region
    $region66: #{tpu_custom_call.1} parent=1 // pred_check
      _
    $region67: #{tpu_custom_call.1} parent=1 // pred_check_branch
      %150 = sbr.rel (0) target = $region69
    $region68: #{tpu_custom_call.1} parent=1 // pred_region
      _
    $region69: #{tpu_custom_call.1} parent=1 // pred_fallthru
      _
    // Predicated region
    $region70: #{tpu_custom_call.1} parent=1 // pred_check
      _
    $region71: #{tpu_custom_call.1} parent=1 // pred_check_branch
      %152 = sbr.rel (0) target = $region73
    $region72: #{tpu_custom_call.1} parent=1 // pred_region
      %154 = dma.done [#allocation10], 512
    $region73: #{tpu_custom_call.1} parent=1 // pred_fallthru
      _
    // Predicated region
    $region74: #{tpu_custom_call.1} parent=1 // pred_check
      _
    $region75: #{tpu_custom_call.1} parent=1 // pred_check_branch
      %156 = sbr.rel (0) target = $region77
    $region76: #{tpu_custom_call.1} parent=1 // pred_region
      %158 = dma.done [#allocation12], 512
    $region77: #{tpu_custom_call.1} parent=1 // pred_fallthru
      _
    // Predicated region
    $region78: #{tpu_custom_call.1} parent=1 // pred_check
      _
    $region79: #{tpu_custom_call.1} parent=1 // pred_check_branch
      %160 = sbr.rel (0) target = $region81
    $region80: #{tpu_custom_call.1} parent=1 // pred_region
      %162 = dma.done [#allocation12], 512
    $region81: #{tpu_custom_call.1} parent=1 // pred_fallthru
      _
    // Predicated region
    $region82: #{tpu_custom_call.1} parent=1 // pred_check
      _
    $region83: #{tpu_custom_call.1} parent=1 // pred_check_branch
      %164 = sbr.rel (0) target = $region85
    $region84: #{tpu_custom_call.1} parent=1 // pred_region
      %166 = dma.done [#allocation15], 512
    $region85: #{tpu_custom_call.1} parent=1 // pred_fallthru
      _
    // Predicated region
    $region86: #{tpu_custom_call.1} parent=1 // pred_check
      _
    $region87: #{tpu_custom_call.1} parent=1 // pred_check_branch
      %168 = sbr.rel (0) target = $region89
    $region88: #{tpu_custom_call.1} parent=1 // pred_region
      %170 = dma.done [#allocation15], 1024
    $region89: #{tpu_custom_call.1} parent=1 // pred_fallthru
      _
    // Predicated region
    $region90: #{tpu_custom_call.1} parent=1 // pred_check
      _
    $region91: #{tpu_custom_call.1} parent=1 // pred_check_branch
      %172 = sbr.rel (0) target = $region93
    $region92: #{tpu_custom_call.1} parent=1 // pred_region
      %174 = dma.done [#allocation18], 512
    $region93: #{tpu_custom_call.1} parent=1 // pred_fallthru
      _
    // Predicated region
    $region94: #{tpu_custom_call.1} parent=1 // pred_check
      _
    $region95: #{tpu_custom_call.1} parent=1 // pred_check_branch
      %176 = sbr.rel (0) target = $region97
    $region96: #{tpu_custom_call.1} parent=1 // pred_region
      %178 = dma.done [#allocation18], 1024
    $region97: #{tpu_custom_call.1} parent=1 // pred_fallthru
      _
    // Predicated region
    $region98: #{tpu_custom_call.1} parent=1 // pred_check
      _
    $region99: #{tpu_custom_call.1} parent=1 // pred_check_branch
      %180 = sbr.rel (0) target = $region101
    $region100: #{tpu_custom_call.1} parent=1 // pred_region
      %182 = dma.done [#allocation21], 512
    $region101: #{tpu_custom_call.1} parent=1 // pred_fallthru
      _
    %v183 = vld [vmem:[%s0] sm:$0xff]
    %v184 = vld [vmem:[%s0 + $0x8] sm:$0xff]
    %v185 = vld [vmem:[%s0 + $0x10] sm:$0xff]
    %v186 = vld [vmem:[%s0 + $0x18] sm:$0xff]
    %v187 = vld [vmem:[%s0 + $0x20] sm:$0xff]
    %v188 = vld [vmem:[%s0 + $0x28] sm:$0xff]
    %v189 = vld [vmem:[%s0 + $0x30] sm:$0xff]
    %v190 = vld [vmem:[%s0 + $0x38] sm:$0xff]
    %v191 = vld [vmem:[#allocation9] sm:$0xff]
    %v192 = vld [vmem:[#allocation9 + $0x8] sm:$0xff]
    %v193 = vld [vmem:[#allocation9 + $0x10] sm:$0xff]
    %v194 = vld [vmem:[#allocation9 + $0x18] sm:$0xff]
    %v195 = vld [vmem:[%s3] sm:$0x1]
    %v197 = vperm.slane %v195, 0
    %vm199 = vcmask 261120
    %v201 = vsel %vm199, %v183, 0
    %v204 = vsel %vm199, %v184, 0
    %v207 = vsel %vm199, %v185, 0
    %v210 = vsel %vm199, %v186, 0
    %v213 = vsel %vm199, %v187, 0
    %v216 = vsel %vm199, %v188, 0
    %v219 = vsel %vm199, %v189, 0
    %v222 = vsel %vm199, %v190, 0
    %224 = vmatpush.msra.mxu0 0.0
    %225 = vmatpush.msra.mxu0 0.0
    %226 = vmatpush.msra.mxu0 0.0
    %227 = vmatpush.msra.mxu0 0.0
    %228 = vmatpush.msra.mxu0 0.0
    %229 = vmatpush.msra.mxu0 0.0
    %230 = vmatpush.msra.mxu0 0.0
    %231 = vmatpush.msra.mxu0 0.0
    %232 = vmatpush.msra.mxu0 0.0
    %233 = vmatpush.msra.mxu0 0.0
    %234 = vmatpush.msra.mxu0 0.0
    %235 = vmatpush.msra.mxu0 0.0
    %236 = vmatpush.msra.mxu0 %v194
    %237 = vmatpush.msra.mxu0 %v193
    %238 = vmatpush.msra.mxu0 %v192
    %239 = vmatpush.msra.mxu0 %v191
    %240 = vmatmul.f32.gmra.mxu0 %v201
    %v241 = vpop.f32.mrf.mxu0
    %v242 = vadd.f32 %v197, %v241
    %243 = vmatmul.f32.gmra.mxu0 %v204
    %v244 = vpop.f32.mrf.mxu0
    %v245 = vadd.f32 %v197, %v244
    %246 = vmatmul.f32.gmra.mxu0 %v207
    %v247 = vpop.f32.mrf.mxu0
    %v248 = vadd.f32 %v197, %v247
    %249 = vmatmul.f32.gmra.mxu0 %v210
    %v250 = vpop.f32.mrf.mxu0
    %v251 = vadd.f32 %v197, %v250
    %252 = vmatmul.f32.gmra.mxu0 %v213
    %v253 = vpop.f32.mrf.mxu0
    %v254 = vadd.f32 %v197, %v253
    %255 = vmatmul.f32.gmra.mxu0 %v216
    %v256 = vpop.f32.mrf.mxu0
    %v257 = vadd.f32 %v197, %v256
    %258 = vmatmul.f32.gmra.mxu0 %v219
    %v259 = vpop.f32.mrf.mxu0
    %v260 = vadd.f32 %v197, %v259
    %261 = vmatmul.f32.gmra.mxu0 %v222
    %v262 = vpop.f32.mrf.mxu0
    %v263 = vadd.f32 %v197, %v262
    %264 = vdwg.mxu0
    %265 = vst [vmem:[#allocation2] sm:$0xff] %v242
    %266 = vst [vmem:[#allocation2 + $0x8] sm:$0xff] %v245
    %267 = vst [vmem:[#allocation2 + $0x10] sm:$0xff] %v248
    %268 = vst [vmem:[#allocation2 + $0x18] sm:$0xff] %v251
    %269 = vst [vmem:[#allocation2 + $0x20] sm:$0xff] %v254
    %270 = vst [vmem:[#allocation2 + $0x28] sm:$0xff] %v257
    %271 = vst [vmem:[#allocation2 + $0x30] sm:$0xff] %v260
    %272 = vst [vmem:[#allocation2 + $0x38] sm:$0xff] %v263
    %v273 = vld [vmem:[#allocation13] sm:$0xff]
    %v274 = vld [vmem:[#allocation13 + $0x8] sm:$0xff]
    %v275 = vld [vmem:[#allocation13 + $0x10] sm:$0xff]
    %v276 = vld [vmem:[#allocation13 + $0x18] sm:$0xff]
    %v277 = vld [vmem:[%s6] sm:$0x1]
    %v279 = vperm.slane %v277, 0
    %281 = vmatpush.msra.mxu0 0.0
    %282 = vmatpush.msra.mxu0 0.0
    %283 = vmatpush.msra.mxu0 0.0
    %284 = vmatpush.msra.mxu0 0.0
    %285 = vmatpush.msra.mxu0 0.0
    %286 = vmatpush.msra.mxu0 0.0
    %287 = vmatpush.msra.mxu0 0.0
    %288 = vmatpush.msra.mxu0 0.0
    %289 = vmatpush.msra.mxu0 0.0
    %290 = vmatpush.msra.mxu0 0.0
    %291 = vmatpush.msra.mxu0 0.0
    %292 = vmatpush.msra.mxu0 0.0
    %293 = vmatpush.msra.mxu0 %v276
    %294 = vmatpush.msra.mxu0 %v275
    %295 = vmatpush.msra.mxu0 %v274
    %296 = vmatpush.msra.mxu0 %v273
    %297 = vmatmul.f32.gmra.mxu0 %v201
    %v298 = vpop.f32.mrf.mxu0
    %v299 = vadd.f32 %v279, %v298
    %300 = vmatmul.f32.gmra.mxu0 %v204
    %v301 = vpop.f32.mrf.mxu0
    %v302 = vadd.f32 %v279, %v301
    %303 = vmatmul.f32.gmra.mxu0 %v207
    %v304 = vpop.f32.mrf.mxu0
    %v305 = vadd.f32 %v279, %v304
    %306 = vmatmul.f32.gmra.mxu0 %v210
    %v307 = vpop.f32.mrf.mxu0
    %v308 = vadd.f32 %v279, %v307
    %309 = vmatmul.f32.gmra.mxu0 %v213
    %v310 = vpop.f32.mrf.mxu0
    %v311 = vadd.f32 %v279, %v310
    %312 = vmatmul.f32.gmra.mxu0 %v216
    %v313 = vpop.f32.mrf.mxu0
    %v314 = vadd.f32 %v279, %v313
    %315 = vmatmul.f32.gmra.mxu0 %v219
    %v316 = vpop.f32.mrf.mxu0
    %v317 = vadd.f32 %v279, %v316
    %318 = vmatmul.f32.gmra.mxu0 %v222
    %v319 = vpop.f32.mrf.mxu0
    %v320 = vadd.f32 %v279, %v319
    %321 = vdwg.mxu0
    %322 = vst [vmem:[#allocation3] sm:$0xff] %v299
    %323 = vst [vmem:[#allocation3 + $0x8] sm:$0xff] %v302
    %324 = vst [vmem:[#allocation3 + $0x10] sm:$0xff] %v305
    %325 = vst [vmem:[#allocation3 + $0x18] sm:$0xff] %v308
    %326 = vst [vmem:[#allocation3 + $0x20] sm:$0xff] %v311
    %327 = vst [vmem:[#allocation3 + $0x28] sm:$0xff] %v314
    %328 = vst [vmem:[#allocation3 + $0x30] sm:$0xff] %v317
    %329 = vst [vmem:[#allocation3 + $0x38] sm:$0xff] %v320
    %v330 = vld [vmem:[#allocation11] sm:$0xff]
    %v331 = vld [vmem:[#allocation11 + $0x8] sm:$0xff]
    %v332 = vld [vmem:[#allocation11 + $0x10] sm:$0xff]
    %v333 = vld [vmem:[#allocation11 + $0x18] sm:$0xff]
    %v334 = vld [vmem:[#allocation14] sm:$0xff]
    %v335 = vld [vmem:[#allocation14 + $0x8] sm:$0xff]
    %v336 = vld [vmem:[#allocation14 + $0x10] sm:$0xff]
    %v337 = vld [vmem:[#allocation14 + $0x18] sm:$0xff]
    %v338 = vld [vmem:[#allocation2] sm:$0xff]
    %v340 = vsel %vm199, 0.0, 0
    %342 = vmatpush.msra.mxu0 0.0
    %343 = vmatpush.msra.mxu0 0.0
    %344 = vmatpush.msra.mxu0 0.0
    %345 = vmatpush.msra.mxu0 0.0
    %346 = vmatpush.msra.mxu0 0.0
    %347 = vmatpush.msra.mxu0 0.0
    %348 = vmatpush.msra.mxu0 0.0
    %349 = vmatpush.msra.mxu0 0.0
    %350 = vmatpush.msra.mxu0 0.0
    %351 = vmatpush.msra.mxu0 0.0
    %352 = vmatpush.msra.mxu0 0.0
    %353 = vmatpush.msra.mxu0 0.0
    %354 = vmatpush.msra.mxu0 %v333
    %355 = vmatpush.msra.mxu0 %v332
    %356 = vmatpush.msra.mxu0 %v331
    %357 = vmatpush.msra.mxu0 %v330
    %358 = vmatmul.f32.gmra.mxu0 %v340
    %v359 = vpop.f32.mrf.mxu0
    %v360 = vadd.f32 0.0, %v359
    %361 = vdwg.mxu0
    %v362 = vadd.f32 %v338, %v360
    %s363 = scalar_lea.vmem [#allocation3], 56
    %v364 = vld [vmem:[%s363] sm:$0xff]
    %365 = vmatpush.msra.mxu0 0.0
    %366 = vmatpush.msra.mxu0 0.0
    %367 = vmatpush.msra.mxu0 0.0
    %368 = vmatpush.msra.mxu0 0.0
    %369 = vmatpush.msra.mxu0 0.0
    %370 = vmatpush.msra.mxu0 0.0
    %371 = vmatpush.msra.mxu0 0.0
    %372 = vmatpush.msra.mxu0 0.0
    %373 = vmatpush.msra.mxu0 0.0
    %374 = vmatpush.msra.mxu0 0.0
    %375 = vmatpush.msra.mxu0 0.0
    %376 = vmatpush.msra.mxu0 0.0
    %377 = vmatpush.msra.mxu0 %v337
    %378 = vmatpush.msra.mxu0 %v336
    %379 = vmatpush.msra.mxu0 %v335
    %380 = vmatpush.msra.mxu0 %v334
    %381 = vmatmul.f32.gmra.mxu0 %v340
    %v382 = vpop.f32.mrf.mxu0
    %v383 = vadd.f32 0.0, %v382
    %384 = vdwg.mxu0
    %v385 = vadd.f32 %v364, %v383
    %v386 = vxor.u32 %v362, 2147483648
    %v387 = vmul.f32 %v386, 1.442695
    %v388 = vpow.pop %v387
    %v389 = vadd.f32 %v388, 1.0
    %v390 = vrcp.pop %v389
    %v391 = vmul.f32 %v389, %v390
    %v392 = vsub.f32 1.0, %v391
    %v393 = vmul.f32 %v390, %v392
    %v394 = vadd.f32 %v390, %v393
    %vm395 = vweird.f32 %v389
    %vm396 = vweird.f32 %v390
    %vm397 = vmor %vm395, %vm396
    %v398 = vsel %vm397, %v390, %v394
    %v399 = vand.u32 2147483647, %v389
    %vm400 = vcmp.eq.f32.partialorder %v399, 8.507059e+37
    %v401 = vand.u32 %v389, 2147483648
    %v402 = vor.u32 1.1754944e-38, %v401
    %v403 = vsel %vm400, %v402, %v398
    %v404 = vmul.f32 1.0, %v403
    %v405 = vtanh.pop %v362
    %v406 = vmul.f32 %v404, 0.0
    %408 = vrot.lane.b32.xlu0 %v405, 64
    %v409 = vpop.permute.xlu0 %408
    %v411 = vmul.f32 %v404, %v409
    %413 = vrot.lane.b32.xlu0 %v411, 32
    %v414 = vpop.permute.xlu0 %413
    %v416 = vadd.f32 %v406, %v414
    %v417 = vtanh.pop %v416
    %419 = vrot.lane.b32.xlu0 %v417, 64
    %v420 = vpop.permute.xlu0 %419
    %v422 = vmul.f32 %v404, %v420
    %v423 = vxor.u32 %v385, 2147483648
    %v424 = vmul.f32 %v423, 1.442695
    %v425 = vpow.pop %v424
    %v426 = vadd.f32 %v425, 1.0
    %v427 = vrcp.pop %v426
    %v428 = vmul.f32 %v426, %v427
    %v429 = vsub.f32 1.0, %v428
    %v430 = vmul.f32 %v427, %v429
    %v431 = vadd.f32 %v427, %v430
    %vm432 = vweird.f32 %v426
    %vm433 = vweird.f32 %v427
    %vm434 = vmor %vm432, %vm433
    %v435 = vsel %vm434, %v427, %v431
    %v436 = vand.u32 2147483647, %v426
    %vm437 = vcmp.eq.f32.partialorder %v436, 8.507059e+37
    %v438 = vand.u32 %v426, 2147483648
    %v439 = vor.u32 1.1754944e-38, %v438
    %v440 = vsel %vm437, %v439, %v435
    %v441 = vmul.f32 1.0, %v440
    %v442 = vtanh.pop %v385
    %v443 = vmul.f32 %v441, 0.0
    %445 = vrot.lane.b32.xlu0 %v442, 64
    %v446 = vpop.permute.xlu0 %445
    %v448 = vmul.f32 %v441, %v446
    %450 = vrot.lane.b32.xlu0 %v448, 32
    %v451 = vpop.permute.xlu0 %450
    %v453 = vadd.f32 %v443, %v451
    %v454 = vtanh.pop %v453
    %456 = vrot.lane.b32.xlu0 %v454, 64
    %v457 = vpop.permute.xlu0 %456
    %v459 = vmul.f32 %v441, %v457
    %461 = vrot.lane.b32.xlu0 %v422, 32
    %v462 = vpop.permute.xlu0 %461
    %464 = vst.msk [vmem:[#allocation4] sm:$0xff] %vm199, %v462
    %466 = vrot.lane.b32.xlu0 %v459, 32
    %v467 = vpop.permute.xlu0 %466
    %s469 = scalar_lea.vmem [#allocation5], 56
    %470 = vst.msk [vmem:[%s469] sm:$0xff] %vm199, %v467
    %s471 = scalar_lea.vmem [#allocation2], 8
    %v472 = vld [vmem:[%s471] sm:$0xff]
    %v473 = vsel %vm199, %v462, 0
    %475 = vmatpush.msra.mxu0 0.0
    %476 = vmatpush.msra.mxu0 0.0
    %477 = vmatpush.msra.mxu0 0.0
    %478 = vmatpush.msra.mxu0 0.0
    %479 = vmatpush.msra.mxu0 0.0
    %480 = vmatpush.msra.mxu0 0.0
    %481 = vmatpush.msra.mxu0 0.0
    %482 = vmatpush.msra.mxu0 0.0
    %483 = vmatpush.msra.mxu0 0.0
    %484 = vmatpush.msra.mxu0 0.0
    %485 = vmatpush.msra.mxu0 0.0
    %486 = vmatpush.msra.mxu0 0.0
    %487 = vmatpush.msra.mxu0 %v333
    %488 = vmatpush.msra.mxu0 %v332
    %489 = vmatpush.msra.mxu0 %v331
    %490 = vmatpush.msra.mxu0 %v330
    %491 = vmatmul.f32.gmra.mxu0 %v473
    %v492 = vpop.f32.mrf.mxu0
    %v493 = vadd.f32 0.0, %v492
    %494 = vdwg.mxu0
    %v495 = vadd.f32 %v472, %v493
    %s496 = scalar_lea.vmem [#allocation3], 48
    %v497 = vld [vmem:[%s496] sm:$0xff]
    %v498 = vsel %vm199, %v467, 0
    %500 = vmatpush.msra.mxu0 0.0
    %501 = vmatpush.msra.mxu0 0.0
    %502 = vmatpush.msra.mxu0 0.0
    %503 = vmatpush.msra.mxu0 0.0
    %504 = vmatpush.msra.mxu0 0.0
    %505 = vmatpush.msra.mxu0 0.0
    %506 = vmatpush.msra.mxu0 0.0
    %507 = vmatpush.msra.mxu0 0.0
    %508 = vmatpush.msra.mxu0 0.0
    %509 = vmatpush.msra.mxu0 0.0
    %510 = vmatpush.msra.mxu0 0.0
    %511 = vmatpush.msra.mxu0 0.0
    %512 = vmatpush.msra.mxu0 %v337
    %513 = vmatpush.msra.mxu0 %v336
    %514 = vmatpush.msra.mxu0 %v335
    %515 = vmatpush.msra.mxu0 %v334
    %516 = vmatmul.f32.gmra.mxu0 %v498
    %v517 = vpop.f32.mrf.mxu0
    %v518 = vadd.f32 0.0, %v517
    %519 = vdwg.mxu0
    %v520 = vadd.f32 %v497, %v518
    %v521 = vxor.u32 %v495, 2147483648
    %v522 = vmul.f32 %v521, 1.442695
    %v523 = vpow.pop %v522
    %v524 = vadd.f32 %v523, 1.0
    %v525 = vrcp.pop %v524
    %v526 = vmul.f32 %v524, %v525
    %v527 = vsub.f32 1.0, %v526
    %v528 = vmul.f32 %v525, %v527
    %v529 = vadd.f32 %v525, %v528
    %vm530 = vweird.f32 %v524
    %vm531 = vweird.f32 %v525
    %vm532 = vmor %vm530, %vm531
    %v533 = vsel %vm532, %v525, %v529
    %v534 = vand.u32 2147483647, %v524
    %vm535 = vcmp.eq.f32.partialorder %v534, 8.507059e+37
    %v536 = vand.u32 %v524, 2147483648
    %v537 = vor.u32 1.1754944e-38, %v536
    %v538 = vsel %vm535, %v537, %v533
    %v539 = vmul.f32 1.0, %v538
    %v540 = vtanh.pop %v495
    %v541 = vmul.f32 %v539, %v416
    %543 = vrot.lane.b32.xlu0 %v540, 64
    %v544 = vpop.permute.xlu0 %543
    %v546 = vmul.f32 %v539, %v544
    %548 = vrot.lane.b32.xlu0 %v546, 32
    %v549 = vpop.permute.xlu0 %548
    %v551 = vadd.f32 %v541, %v549
    %v552 = vtanh.pop %v551
    %554 = vrot.lane.b32.xlu0 %v552, 64
    %v555 = vpop.permute.xlu0 %554
    %v557 = vmul.f32 %v539, %v555
    %v558 = vxor.u32 %v520, 2147483648
    %v559 = vmul.f32 %v558, 1.442695
    %v560 = vpow.pop %v559
    %v561 = vadd.f32 %v560, 1.0
    %v562 = vrcp.pop %v561
    %v563 = vmul.f32 %v561, %v562
    %v564 = vsub.f32 1.0, %v563
    %v565 = vmul.f32 %v562, %v564
    %v566 = vadd.f32 %v562, %v565
    %vm567 = vweird.f32 %v561
    %vm568 = vweird.f32 %v562
    %vm569 = vmor %vm567, %vm568
    %v570 = vsel %vm569, %v562, %v566
    %v571 = vand.u32 2147483647, %v561
    %vm572 = vcmp.eq.f32.partialorder %v571, 8.507059e+37
    %v573 = vand.u32 %v561, 2147483648
    %v574 = vor.u32 1.1754944e-38, %v573
    %v575 = vsel %vm572, %v574, %v570
    %v576 = vmul.f32 1.0, %v575
    %v577 = vtanh.pop %v520
    %v578 = vmul.f32 %v576, %v453
    %580 = vrot.lane.b32.xlu0 %v577, 64
    %v581 = vpop.permute.xlu0 %580
    %v583 = vmul.f32 %v576, %v581
    %585 = vrot.lane.b32.xlu0 %v583, 32
    %v586 = vpop.permute.xlu0 %585
    %v588 = vadd.f32 %v578, %v586
    %v589 = vtanh.pop %v588
    %591 = vrot.lane.b32.xlu0 %v589, 64
    %v592 = vpop.permute.xlu0 %591
    %v594 = vmul.f32 %v576, %v592
    %596 = vrot.lane.b32.xlu0 %v557, 32
    %v597 = vpop.permute.xlu0 %596
    %s599 = scalar_lea.vmem [#allocation4], 8
    %600 = vst.msk [vmem:[%s599] sm:$0xff] %vm199, %v597
    %602 = vrot.lane.b32.xlu0 %v594, 32
    %v603 = vpop.permute.xlu0 %602
    %s605 = scalar_lea.vmem [#allocation5], 48
    %606 = vst.msk [vmem:[%s605] sm:$0xff] %vm199, %v603
    %s607 = scalar_lea.vmem [#allocation2], 16
    %v608 = vld [vmem:[%s607] sm:$0xff]
    %v609 = vsel %vm199, %v597, 0
    %611 = vmatpush.msra.mxu0 0.0
    %612 = vmatpush.msra.mxu0 0.0
    %613 = vmatpush.msra.mxu0 0.0
    %614 = vmatpush.msra.mxu0 0.0
    %615 = vmatpush.msra.mxu0 0.0
    %616 = vmatpush.msra.mxu0 0.0
    %617 = vmatpush.msra.mxu0 0.0
    %618 = vmatpush.msra.mxu0 0.0
    %619 = vmatpush.msra.mxu0 0.0
    %620 = vmatpush.msra.mxu0 0.0
    %621 = vmatpush.msra.mxu0 0.0
    %622 = vmatpush.msra.mxu0 0.0
    %623 = vmatpush.msra.mxu0 %v333
    %624 = vmatpush.msra.mxu0 %v332
    %625 = vmatpush.msra.mxu0 %v331
    %626 = vmatpush.msra.mxu0 %v330
    %627 = vmatmul.f32.gmra.mxu0 %v609
    %v628 = vpop.f32.mrf.mxu0
    %v629 = vadd.f32 0.0, %v628
    %630 = vdwg.mxu0
    %v631 = vadd.f32 %v608, %v629
    %s632 = scalar_lea.vmem [#allocation3], 40
    %v633 = vld [vmem:[%s632] sm:$0xff]
    %v634 = vsel %vm199, %v603, 0
    %636 = vmatpush.msra.mxu0 0.0
    %637 = vmatpush.msra.mxu0 0.0
    %638 = vmatpush.msra.mxu0 0.0
    %639 = vmatpush.msra.mxu0 0.0
    %640 = vmatpush.msra.mxu0 0.0
    %641 = vmatpush.msra.mxu0 0.0
    %642 = vmatpush.msra.mxu0 0.0
    %643 = vmatpush.msra.mxu0 0.0
    %644 = vmatpush.msra.mxu0 0.0
    %645 = vmatpush.msra.mxu0 0.0
    %646 = vmatpush.msra.mxu0 0.0
    %647 = vmatpush.msra.mxu0 0.0
    %648 = vmatpush.msra.mxu0 %v337
    %649 = vmatpush.msra.mxu0 %v336
    %650 = vmatpush.msra.mxu0 %v335
    %651 = vmatpush.msra.mxu0 %v334
    %652 = vmatmul.f32.gmra.mxu0 %v634
    %v653 = vpop.f32.mrf.mxu0
    %v654 = vadd.f32 0.0, %v653
    %655 = vdwg.mxu0
    %v656 = vadd.f32 %v633, %v654
    %v657 = vxor.u32 %v631, 2147483648
    %v658 = vmul.f32 %v657, 1.442695
    %v659 = vpow.pop %v658
    %v660 = vadd.f32 %v659, 1.0
    %v661 = vrcp.pop %v660
    %v662 = vmul.f32 %v660, %v661
    %v663 = vsub.f32 1.0, %v662
    %v664 = vmul.f32 %v661, %v663
    %v665 = vadd.f32 %v661, %v664
    %vm666 = vweird.f32 %v660
    %vm667 = vweird.f32 %v661
    %vm668 = vmor %vm666, %vm667
    %v669 = vsel %vm668, %v661, %v665
    %v670 = vand.u32 2147483647, %v660
    %vm671 = vcmp.eq.f32.partialorder %v670, 8.507059e+37
    %v672 = vand.u32 %v660, 2147483648
    %v673 = vor.u32 1.1754944e-38, %v672
    %v674 = vsel %vm671, %v673, %v669
    %v675 = vmul.f32 1.0, %v674
    %v676 = vtanh.pop %v631
    %v677 = vmul.f32 %v675, %v551
    %679 = vrot.lane.b32.xlu0 %v676, 64
    %v680 = vpop.permute.xlu0 %679
    %v682 = vmul.f32 %v675, %v680
    %684 = vrot.lane.b32.xlu0 %v682, 32
    %v685 = vpop.permute.xlu0 %684
    %v687 = vadd.f32 %v677, %v685
    %v688 = vtanh.pop %v687
    %690 = vrot.lane.b32.xlu0 %v688, 64
    %v691 = vpop.permute.xlu0 %690
    %v693 = vmul.f32 %v675, %v691
    %v694 = vxor.u32 %v656, 2147483648
    %v695 = vmul.f32 %v694, 1.442695
    %v696 = vpow.pop %v695
    %v697 = vadd.f32 %v696, 1.0
    %v698 = vrcp.pop %v697
    %v699 = vmul.f32 %v697, %v698
    %v700 = vsub.f32 1.0, %v699
    %v701 = vmul.f32 %v698, %v700
    %v702 = vadd.f32 %v698, %v701
    %vm703 = vweird.f32 %v697
    %vm704 = vweird.f32 %v698
    %vm705 = vmor %vm703, %vm704
    %v706 = vsel %vm705, %v698, %v702
    %v707 = vand.u32 2147483647, %v697
    %vm708 = vcmp.eq.f32.partialorder %v707, 8.507059e+37
    %v709 = vand.u32 %v697, 2147483648
    %v710 = vor.u32 1.1754944e-38, %v709
    %v711 = vsel %vm708, %v710, %v706
    %v712 = vmul.f32 1.0, %v711
    %v713 = vtanh.pop %v656
    %v714 = vmul.f32 %v712, %v588
    %716 = vrot.lane.b32.xlu0 %v713, 64
    %v717 = vpop.permute.xlu0 %716
    %v719 = vmul.f32 %v712, %v717
    %721 = vrot.lane.b32.xlu0 %v719, 32
    %v722 = vpop.permute.xlu0 %721
    %v724 = vadd.f32 %v714, %v722
    %v725 = vtanh.pop %v724
    %727 = vrot.lane.b32.xlu0 %v725, 64
    %v728 = vpop.permute.xlu0 %727
    %v730 = vmul.f32 %v712, %v728
    %732 = vrot.lane.b32.xlu0 %v693, 32
    %v733 = vpop.permute.xlu0 %732
    %s735 = scalar_lea.vmem [#allocation4], 16
    %736 = vst.msk [vmem:[%s735] sm:$0xff] %vm199, %v733
    %738 = vrot.lane.b32.xlu0 %v730, 32
    %v739 = vpop.permute.xlu0 %738
    %s741 = scalar_lea.vmem [#allocation5], 40
    %742 = vst.msk [vmem:[%s741] sm:$0xff] %vm199, %v739
    %s743 = scalar_lea.vmem [#allocation2], 24
    %v744 = vld [vmem:[%s743] sm:$0xff]
    %v745 = vsel %vm199, %v733, 0
    %747 = vmatpush.msra.mxu0 0.0
    %748 = vmatpush.msra.mxu0 0.0
    %749 = vmatpush.msra.mxu0 0.0
    %750 = vmatpush.msra.mxu0 0.0
    %751 = vmatpush.msra.mxu0 0.0
    %752 = vmatpush.msra.mxu0 0.0
    %753 = vmatpush.msra.mxu0 0.0
    %754 = vmatpush.msra.mxu0 0.0
    %755 = vmatpush.msra.mxu0 0.0
    %756 = vmatpush.msra.mxu0 0.0
    %757 = vmatpush.msra.mxu0 0.0
    %758 = vmatpush.msra.mxu0 0.0
    %759 = vmatpush.msra.mxu0 %v333
    %760 = vmatpush.msra.mxu0 %v332
    %761 = vmatpush.msra.mxu0 %v331
    %762 = vmatpush.msra.mxu0 %v330
    %763 = vmatmul.f32.gmra.mxu0 %v745
    %v764 = vpop.f32.mrf.mxu0
    %v765 = vadd.f32 0.0, %v764
    %766 = vdwg.mxu0
    %v767 = vadd.f32 %v744, %v765
    %s768 = scalar_lea.vmem [#allocation3], 32
    %v769 = vld [vmem:[%s768] sm:$0xff]
    %v770 = vsel %vm199, %v739, 0
    %772 = vmatpush.msra.mxu0 0.0
    %773 = vmatpush.msra.mxu0 0.0
    %774 = vmatpush.msra.mxu0 0.0
    %775 = vmatpush.msra.mxu0 0.0
    %776 = vmatpush.msra.mxu0 0.0
    %777 = vmatpush.msra.mxu0 0.0
    %778 = vmatpush.msra.mxu0 0.0
    %779 = vmatpush.msra.mxu0 0.0
    %780 = vmatpush.msra.mxu0 0.0
    %781 = vmatpush.msra.mxu0 0.0
    %782 = vmatpush.msra.mxu0 0.0
    %783 = vmatpush.msra.mxu0 0.0
    %784 = vmatpush.msra.mxu0 %v337
    %785 = vmatpush.msra.mxu0 %v336
    %786 = vmatpush.msra.mxu0 %v335
    %787 = vmatpush.msra.mxu0 %v334
    %788 = vmatmul.f32.gmra.mxu0 %v770
    %v789 = vpop.f32.mrf.mxu0
    %v790 = vadd.f32 0.0, %v789
    %791 = vdwg.mxu0
    %v792 = vadd.f32 %v769, %v790
    %v793 = vxor.u32 %v767, 2147483648
    %v794 = vmul.f32 %v793, 1.442695
    %v795 = vpow.pop %v794
    %v796 = vadd.f32 %v795, 1.0
    %v797 = vrcp.pop %v796
    %v798 = vmul.f32 %v796, %v797
    %v799 = vsub.f32 1.0, %v798
    %v800 = vmul.f32 %v797, %v799
    %v801 = vadd.f32 %v797, %v800
    %vm802 = vweird.f32 %v796
    %vm803 = vweird.f32 %v797
    %vm804 = vmor %vm802, %vm803
    %v805 = vsel %vm804, %v797, %v801
    %v806 = vand.u32 2147483647, %v796
    %vm807 = vcmp.eq.f32.partialorder %v806, 8.507059e+37
    %v808 = vand.u32 %v796, 2147483648
    %v809 = vor.u32 1.1754944e-38, %v808
    %v810 = vsel %vm807, %v809, %v805
    %v811 = vmul.f32 1.0, %v810
    %v812 = vtanh.pop %v767
    %v813 = vmul.f32 %v811, %v687
    %815 = vrot.lane.b32.xlu0 %v812, 64
    %v816 = vpop.permute.xlu0 %815
    %v818 = vmul.f32 %v811, %v816
    %820 = vrot.lane.b32.xlu0 %v818, 32
    %v821 = vpop.permute.xlu0 %820
    %v823 = vadd.f32 %v813, %v821
    %v824 = vtanh.pop %v823
    %826 = vrot.lane.b32.xlu0 %v824, 64
    %v827 = vpop.permute.xlu0 %826
    %v829 = vmul.f32 %v811, %v827
    %v830 = vxor.u32 %v792, 2147483648
    %v831 = vmul.f32 %v830, 1.442695
    %v832 = vpow.pop %v831
    %v833 = vadd.f32 %v832, 1.0
    %v834 = vrcp.pop %v833
    %v835 = vmul.f32 %v833, %v834
    %v836 = vsub.f32 1.0, %v835
    %v837 = vmul.f32 %v834, %v836
    %v838 = vadd.f32 %v834, %v837
    %vm839 = vweird.f32 %v833
    %vm840 = vweird.f32 %v834
    %vm841 = vmor %vm839, %vm840
    %v842 = vsel %vm841, %v834, %v838
    %v843 = vand.u32 2147483647, %v833
    %vm844 = vcmp.eq.f32.partialorder %v843, 8.507059e+37
    %v845 = vand.u32 %v833, 2147483648
    %v846 = vor.u32 1.1754944e-38, %v845
    %v847 = vsel %vm844, %v846, %v842
    %v848 = vmul.f32 1.0, %v847
    %v849 = vtanh.pop %v792
    %v850 = vmul.f32 %v848, %v724
    %852 = vrot.lane.b32.xlu0 %v849, 64
    %v853 = vpop.permute.xlu0 %852
    %v855 = vmul.f32 %v848, %v853
    %857 = vrot.lane.b32.xlu0 %v855, 32
    %v858 = vpop.permute.xlu0 %857
    %v860 = vadd.f32 %v850, %v858
    %v861 = vtanh.pop %v860
    %863 = vrot.lane.b32.xlu0 %v861, 64
    %v864 = vpop.permute.xlu0 %863
    %v866 = vmul.f32 %v848, %v864
    %868 = vrot.lane.b32.xlu0 %v829, 32
    %v869 = vpop.permute.xlu0 %868
    %s871 = scalar_lea.vmem [#allocation4], 24
    %872 = vst.msk [vmem:[%s871] sm:$0xff] %vm199, %v869
    %874 = vrot.lane.b32.xlu0 %v866, 32
    %v875 = vpop.permute.xlu0 %874
    %s877 = scalar_lea.vmem [#allocation5], 32
    %878 = vst.msk [vmem:[%s877] sm:$0xff] %vm199, %v875
    %s879 = scalar_lea.vmem [#allocation2], 32
    %v880 = vld [vmem:[%s879] sm:$0xff]
    %v881 = vsel %vm199, %v869, 0
    %883 = vmatpush.msra.mxu0 0.0
    %884 = vmatpush.msra.mxu0 0.0
    %885 = vmatpush.msra.mxu0 0.0
    %886 = vmatpush.msra.mxu0 0.0
    %887 = vmatpush.msra.mxu0 0.0
    %888 = vmatpush.msra.mxu0 0.0
    %889 = vmatpush.msra.mxu0 0.0
    %890 = vmatpush.msra.mxu0 0.0
    %891 = vmatpush.msra.mxu0 0.0
    %892 = vmatpush.msra.mxu0 0.0
    %893 = vmatpush.msra.mxu0 0.0
    %894 = vmatpush.msra.mxu0 0.0
    %895 = vmatpush.msra.mxu0 %v333
    %896 = vmatpush.msra.mxu0 %v332
    %897 = vmatpush.msra.mxu0 %v331
    %898 = vmatpush.msra.mxu0 %v330
    %899 = vmatmul.f32.gmra.mxu0 %v881
    %v900 = vpop.f32.mrf.mxu0
    %v901 = vadd.f32 0.0, %v900
    %902 = vdwg.mxu0
    %v903 = vadd.f32 %v880, %v901
    %s904 = scalar_lea.vmem [#allocation3], 24
    %v905 = vld [vmem:[%s904] sm:$0xff]
    %v906 = vsel %vm199, %v875, 0
    %908 = vmatpush.msra.mxu0 0.0
    %909 = vmatpush.msra.mxu0 0.0
    %910 = vmatpush.msra.mxu0 0.0
    %911 = vmatpush.msra.mxu0 0.0
    %912 = vmatpush.msra.mxu0 0.0
    %913 = vmatpush.msra.mxu0 0.0
    %914 = vmatpush.msra.mxu0 0.0
    %915 = vmatpush.msra.mxu0 0.0
    %916 = vmatpush.msra.mxu0 0.0
    %917 = vmatpush.msra.mxu0 0.0
    %918 = vmatpush.msra.mxu0 0.0
    %919 = vmatpush.msra.mxu0 0.0
    %920 = vmatpush.msra.mxu0 %v337
    %921 = vmatpush.msra.mxu0 %v336
    %922 = vmatpush.msra.mxu0 %v335
    %923 = vmatpush.msra.mxu0 %v334
    %924 = vmatmul.f32.gmra.mxu0 %v906
    %v925 = vpop.f32.mrf.mxu0
    %v926 = vadd.f32 0.0, %v925
    %927 = vdwg.mxu0
    %v928 = vadd.f32 %v905, %v926
    %v929 = vxor.u32 %v903, 2147483648
    %v930 = vmul.f32 %v929, 1.442695
    %v931 = vpow.pop %v930
    %v932 = vadd.f32 %v931, 1.0
    %v933 = vrcp.pop %v932
    %v934 = vmul.f32 %v932, %v933
    %v935 = vsub.f32 1.0, %v934
    %v936 = vmul.f32 %v933, %v935
    %v937 = vadd.f32 %v933, %v936
    %vm938 = vweird.f32 %v932
    %vm939 = vweird.f32 %v933
    %vm940 = vmor %vm938, %vm939
    %v941 = vsel %vm940, %v933, %v937
    %v942 = vand.u32 2147483647, %v932
    %vm943 = vcmp.eq.f32.partialorder %v942, 8.507059e+37
    %v944 = vand.u32 %v932, 2147483648
    %v945 = vor.u32 1.1754944e-38, %v944
    %v946 = vsel %vm943, %v945, %v941
    %v947 = vmul.f32 1.0, %v946
    %v948 = vtanh.pop %v903
    %v949 = vmul.f32 %v947, %v823
    %951 = vrot.lane.b32.xlu0 %v948, 64
    %v952 = vpop.permute.xlu0 %951
    %v954 = vmul.f32 %v947, %v952
    %956 = vrot.lane.b32.xlu0 %v954, 32
    %v957 = vpop.permute.xlu0 %956
    %v959 = vadd.f32 %v949, %v957
    %v960 = vtanh.pop %v959
    %962 = vrot.lane.b32.xlu0 %v960, 64
    %v963 = vpop.permute.xlu0 %962
    %v965 = vmul.f32 %v947, %v963
    %v966 = vxor.u32 %v928, 2147483648
    %v967 = vmul.f32 %v966, 1.442695
    %v968 = vpow.pop %v967
    %v969 = vadd.f32 %v968, 1.0
    %v970 = vrcp.pop %v969
    %v971 = vmul.f32 %v969, %v970
    %v972 = vsub.f32 1.0, %v971
    %v973 = vmul.f32 %v970, %v972
    %v974 = vadd.f32 %v970, %v973
    %vm975 = vweird.f32 %v969
    %vm976 = vweird.f32 %v970
    %vm977 = vmor %vm975, %vm976
    %v978 = vsel %vm977, %v970, %v974
    %v979 = vand.u32 2147483647, %v969
    %vm980 = vcmp.eq.f32.partialorder %v979, 8.507059e+37
    %v981 = vand.u32 %v969, 2147483648
    %v982 = vor.u32 1.1754944e-38, %v981
    %v983 = vsel %vm980, %v982, %v978
    %v984 = vmul.f32 1.0, %v983
    %v985 = vtanh.pop %v928
    %v986 = vmul.f32 %v984, %v860
    %988 = vrot.lane.b32.xlu0 %v985, 64
    %v989 = vpop.permute.xlu0 %988
    %v991 = vmul.f32 %v984, %v989
    %993 = vrot.lane.b32.xlu0 %v991, 32
    %v994 = vpop.permute.xlu0 %993
    %v996 = vadd.f32 %v986, %v994
    %v997 = vtanh.pop %v996
    %999 = vrot.lane.b32.xlu0 %v997, 64
    %v1000 = vpop.permute.xlu0 %999
    %v1002 = vmul.f32 %v984, %v1000
    %1004 = vrot.lane.b32.xlu0 %v965, 32
    %v1005 = vpop.permute.xlu0 %1004
    %s1007 = scalar_lea.vmem [#allocation4], 32
    %1008 = vst.msk [vmem:[%s1007] sm:$0xff] %vm199, %v1005
    %1010 = vrot.lane.b32.xlu0 %v1002, 32
    %v1011 = vpop.permute.xlu0 %1010
    %s1013 = scalar_lea.vmem [#allocation5], 24
    %1014 = vst.msk [vmem:[%s1013] sm:$0xff] %vm199, %v1011
    %s1015 = scalar_lea.vmem [#allocation2], 40
    %v1016 = vld [vmem:[%s1015] sm:$0xff]
    %v1017 = vsel %vm199, %v1005, 0
    %1019 = vmatpush.msra.mxu0 0.0
    %1020 = vmatpush.msra.mxu0 0.0
    %1021 = vmatpush.msra.mxu0 0.0
    %1022 = vmatpush.msra.mxu0 0.0
    %1023 = vmatpush.msra.mxu0 0.0
    %1024 = vmatpush.msra.mxu0 0.0
    %1025 = vmatpush.msra.mxu0 0.0
    %1026 = vmatpush.msra.mxu0 0.0
    %1027 = vmatpush.msra.mxu0 0.0
    %1028 = vmatpush.msra.mxu0 0.0
    %1029 = vmatpush.msra.mxu0 0.0
    %1030 = vmatpush.msra.mxu0 0.0
    %1031 = vmatpush.msra.mxu0 %v333
    %1032 = vmatpush.msra.mxu0 %v332
    %1033 = vmatpush.msra.mxu0 %v331
    %1034 = vmatpush.msra.mxu0 %v330
    %1035 = vmatmul.f32.gmra.mxu0 %v1017
    %v1036 = vpop.f32.mrf.mxu0
    %v1037 = vadd.f32 0.0, %v1036
    %1038 = vdwg.mxu0
    %v1039 = vadd.f32 %v1016, %v1037
    %s1040 = scalar_lea.vmem [#allocation3], 16
    %v1041 = vld [vmem:[%s1040] sm:$0xff]
    %v1042 = vsel %vm199, %v1011, 0
    %1044 = vmatpush.msra.mxu0 0.0
    %1045 = vmatpush.msra.mxu0 0.0
    %1046 = vmatpush.msra.mxu0 0.0
    %1047 = vmatpush.msra.mxu0 0.0
    %1048 = vmatpush.msra.mxu0 0.0
    %1049 = vmatpush.msra.mxu0 0.0
    %1050 = vmatpush.msra.mxu0 0.0
    %1051 = vmatpush.msra.mxu0 0.0
    %1052 = vmatpush.msra.mxu0 0.0
    %1053 = vmatpush.msra.mxu0 0.0
    %1054 = vmatpush.msra.mxu0 0.0
    %1055 = vmatpush.msra.mxu0 0.0
    %1056 = vmatpush.msra.mxu0 %v337
    %1057 = vmatpush.msra.mxu0 %v336
    %1058 = vmatpush.msra.mxu0 %v335
    %1059 = vmatpush.msra.mxu0 %v334
    %1060 = vmatmul.f32.gmra.mxu0 %v1042
    %v1061 = vpop.f32.mrf.mxu0
    %v1062 = vadd.f32 0.0, %v1061
    %1063 = vdwg.mxu0
    %v1064 = vadd.f32 %v1041, %v1062
    %v1065 = vxor.u32 %v1039, 2147483648
    %v1066 = vmul.f32 %v1065, 1.442695
    %v1067 = vpow.pop %v1066
    %v1068 = vadd.f32 %v1067, 1.0
    %v1069 = vrcp.pop %v1068
    %v1070 = vmul.f32 %v1068, %v1069
    %v1071 = vsub.f32 1.0, %v1070
    %v1072 = vmul.f32 %v1069, %v1071
    %v1073 = vadd.f32 %v1069, %v1072
    %vm1074 = vweird.f32 %v1068
    %vm1075 = vweird.f32 %v1069
    %vm1076 = vmor %vm1074, %vm1075
    %v1077 = vsel %vm1076, %v1069, %v1073
    %v1078 = vand.u32 2147483647, %v1068
    %vm1079 = vcmp.eq.f32.partialorder %v1078, 8.507059e+37
    %v1080 = vand.u32 %v1068, 2147483648
    %v1081 = vor.u32 1.1754944e-38, %v1080
    %v1082 = vsel %vm1079, %v1081, %v1077
    %v1083 = vmul.f32 1.0, %v1082
    %v1084 = vtanh.pop %v1039
    %v1085 = vmul.f32 %v1083, %v959
    %1087 = vrot.lane.b32.xlu0 %v1084, 64
    %v1088 = vpop.permute.xlu0 %1087
    %v1090 = vmul.f32 %v1083, %v1088
    %1092 = vrot.lane.b32.xlu0 %v1090, 32
    %v1093 = vpop.permute.xlu0 %1092
    %v1095 = vadd.f32 %v1085, %v1093
    %v1096 = vtanh.pop %v1095
    %1098 = vrot.lane.b32.xlu0 %v1096, 64
    %v1099 = vpop.permute.xlu0 %1098
    %v1101 = vmul.f32 %v1083, %v1099
    %v1102 = vxor.u32 %v1064, 2147483648
    %v1103 = vmul.f32 %v1102, 1.442695
    %v1104 = vpow.pop %v1103
    %v1105 = vadd.f32 %v1104, 1.0
    %v1106 = vrcp.pop %v1105
    %v1107 = vmul.f32 %v1105, %v1106
    %v1108 = vsub.f32 1.0, %v1107
    %v1109 = vmul.f32 %v1106, %v1108
    %v1110 = vadd.f32 %v1106, %v1109
    %vm1111 = vweird.f32 %v1105
    %vm1112 = vweird.f32 %v1106
    %vm1113 = vmor %vm1111, %vm1112
    %v1114 = vsel %vm1113, %v1106, %v1110
    %v1115 = vand.u32 2147483647, %v1105
    %vm1116 = vcmp.eq.f32.partialorder %v1115, 8.507059e+37
    %v1117 = vand.u32 %v1105, 2147483648
    %v1118 = vor.u32 1.1754944e-38, %v1117
    %v1119 = vsel %vm1116, %v1118, %v1114
    %v1120 = vmul.f32 1.0, %v1119
    %v1121 = vtanh.pop %v1064
    %v1122 = vmul.f32 %v1120, %v996
    %1124 = vrot.lane.b32.xlu0 %v1121, 64
    %v1125 = vpop.permute.xlu0 %1124
    %v1127 = vmul.f32 %v1120, %v1125
    %1129 = vrot.lane.b32.xlu0 %v1127, 32
    %v1130 = vpop.permute.xlu0 %1129
    %v1132 = vadd.f32 %v1122, %v1130
    %v1133 = vtanh.pop %v1132
    %1135 = vrot.lane.b32.xlu0 %v1133, 64
    %v1136 = vpop.permute.xlu0 %1135
    %v1138 = vmul.f32 %v1120, %v1136
    %1140 = vrot.lane.b32.xlu0 %v1101, 32
    %v1141 = vpop.permute.xlu0 %1140
    %s1143 = scalar_lea.vmem [#allocation4], 40
    %1144 = vst.msk [vmem:[%s1143] sm:$0xff] %vm199, %v1141
    %1146 = vrot.lane.b32.xlu0 %v1138, 32
    %v1147 = vpop.permute.xlu0 %1146
    %s1149 = scalar_lea.vmem [#allocation5], 16
    %1150 = vst.msk [vmem:[%s1149] sm:$0xff] %vm199, %v1147
    %s1151 = scalar_lea.vmem [#allocation2], 48
    %v1152 = vld [vmem:[%s1151] sm:$0xff]
    %v1153 = vsel %vm199, %v1141, 0
    %1155 = vmatpush.msra.mxu0 0.0
    %1156 = vmatpush.msra.mxu0 0.0
    %1157 = vmatpush.msra.mxu0 0.0
    %1158 = vmatpush.msra.mxu0 0.0
    %1159 = vmatpush.msra.mxu0 0.0
    %1160 = vmatpush.msra.mxu0 0.0
    %1161 = vmatpush.msra.mxu0 0.0
    %1162 = vmatpush.msra.mxu0 0.0
    %1163 = vmatpush.msra.mxu0 0.0
    %1164 = vmatpush.msra.mxu0 0.0
    %1165 = vmatpush.msra.mxu0 0.0
    %1166 = vmatpush.msra.mxu0 0.0
    %1167 = vmatpush.msra.mxu0 %v333
    %1168 = vmatpush.msra.mxu0 %v332
    %1169 = vmatpush.msra.mxu0 %v331
    %1170 = vmatpush.msra.mxu0 %v330
    %1171 = vmatmul.f32.gmra.mxu0 %v1153
    %v1172 = vpop.f32.mrf.mxu0
    %v1173 = vadd.f32 0.0, %v1172
    %1174 = vdwg.mxu0
    %v1175 = vadd.f32 %v1152, %v1173
    %s1176 = scalar_lea.vmem [#allocation3], 8
    %v1177 = vld [vmem:[%s1176] sm:$0xff]
    %v1178 = vsel %vm199, %v1147, 0
    %1180 = vmatpush.msra.mxu0 0.0
    %1181 = vmatpush.msra.mxu0 0.0
    %1182 = vmatpush.msra.mxu0 0.0
    %1183 = vmatpush.msra.mxu0 0.0
    %1184 = vmatpush.msra.mxu0 0.0
    %1185 = vmatpush.msra.mxu0 0.0
    %1186 = vmatpush.msra.mxu0 0.0
    %1187 = vmatpush.msra.mxu0 0.0
    %1188 = vmatpush.msra.mxu0 0.0
    %1189 = vmatpush.msra.mxu0 0.0
    %1190 = vmatpush.msra.mxu0 0.0
    %1191 = vmatpush.msra.mxu0 0.0
    %1192 = vmatpush.msra.mxu0 %v337
    %1193 = vmatpush.msra.mxu0 %v336
    %1194 = vmatpush.msra.mxu0 %v335
    %1195 = vmatpush.msra.mxu0 %v334
    %1196 = vmatmul.f32.gmra.mxu0 %v1178
    %v1197 = vpop.f32.mrf.mxu0
    %v1198 = vadd.f32 0.0, %v1197
    %1199 = vdwg.mxu0
    %v1200 = vadd.f32 %v1177, %v1198
    %v1201 = vxor.u32 %v1175, 2147483648
    %v1202 = vmul.f32 %v1201, 1.442695
    %v1203 = vpow.pop %v1202
    %v1204 = vadd.f32 %v1203, 1.0
    %v1205 = vrcp.pop %v1204
    %v1206 = vmul.f32 %v1204, %v1205
    %v1207 = vsub.f32 1.0, %v1206
    %v1208 = vmul.f32 %v1205, %v1207
    %v1209 = vadd.f32 %v1205, %v1208
    %vm1210 = vweird.f32 %v1204
    %vm1211 = vweird.f32 %v1205
    %vm1212 = vmor %vm1210, %vm1211
    %v1213 = vsel %vm1212, %v1205, %v1209
    %v1214 = vand.u32 2147483647, %v1204
    %vm1215 = vcmp.eq.f32.partialorder %v1214, 8.507059e+37
    %v1216 = vand.u32 %v1204, 2147483648
    %v1217 = vor.u32 1.1754944e-38, %v1216
    %v1218 = vsel %vm1215, %v1217, %v1213
    %v1219 = vmul.f32 1.0, %v1218
    %v1220 = vtanh.pop %v1175
    %v1221 = vmul.f32 %v1219, %v1095
    %1223 = vrot.lane.b32.xlu0 %v1220, 64
    %v1224 = vpop.permute.xlu0 %1223
    %v1226 = vmul.f32 %v1219, %v1224
    %1228 = vrot.lane.b32.xlu0 %v1226, 32
    %v1229 = vpop.permute.xlu0 %1228
    %v1231 = vadd.f32 %v1221, %v1229
    %v1232 = vtanh.pop %v1231
    %1234 = vrot.lane.b32.xlu0 %v1232, 64
    %v1235 = vpop.permute.xlu0 %1234
    %v1237 = vmul.f32 %v1219, %v1235
    %v1238 = vxor.u32 %v1200, 2147483648
    %v1239 = vmul.f32 %v1238, 1.442695
    %v1240 = vpow.pop %v1239
    %v1241 = vadd.f32 %v1240, 1.0
    %v1242 = vrcp.pop %v1241
    %v1243 = vmul.f32 %v1241, %v1242
    %v1244 = vsub.f32 1.0, %v1243
    %v1245 = vmul.f32 %v1242, %v1244
    %v1246 = vadd.f32 %v1242, %v1245
    %vm1247 = vweird.f32 %v1241
    %vm1248 = vweird.f32 %v1242
    %vm1249 = vmor %vm1247, %vm1248
    %v1250 = vsel %vm1249, %v1242, %v1246
    %v1251 = vand.u32 2147483647, %v1241
    %vm1252 = vcmp.eq.f32.partialorder %v1251, 8.507059e+37
    %v1253 = vand.u32 %v1241, 2147483648
    %v1254 = vor.u32 1.1754944e-38, %v1253
    %v1255 = vsel %vm1252, %v1254, %v1250
    %v1256 = vmul.f32 1.0, %v1255
    %v1257 = vtanh.pop %v1200
    %v1258 = vmul.f32 %v1256, %v1132
    %1260 = vrot.lane.b32.xlu0 %v1257, 64
    %v1261 = vpop.permute.xlu0 %1260
    %v1263 = vmul.f32 %v1256, %v1261
    %1265 = vrot.lane.b32.xlu0 %v1263, 32
    %v1266 = vpop.permute.xlu0 %1265
    %v1268 = vadd.f32 %v1258, %v1266
    %v1269 = vtanh.pop %v1268
    %1271 = vrot.lane.b32.xlu0 %v1269, 64
    %v1272 = vpop.permute.xlu0 %1271
    %v1274 = vmul.f32 %v1256, %v1272
    %1276 = vrot.lane.b32.xlu0 %v1237, 32
    %v1277 = vpop.permute.xlu0 %1276
    %s1279 = scalar_lea.vmem [#allocation4], 48
    %1280 = vst.msk [vmem:[%s1279] sm:$0xff] %vm199, %v1277
    %1282 = vrot.lane.b32.xlu0 %v1274, 32
    %v1283 = vpop.permute.xlu0 %1282
    %s1285 = scalar_lea.vmem [#allocation5], 8
    %1286 = vst.msk [vmem:[%s1285] sm:$0xff] %vm199, %v1283
    %s1287 = scalar_lea.vmem [#allocation2], 56
    %v1288 = vld [vmem:[%s1287] sm:$0xff]
    %v1289 = vsel %vm199, %v1277, 0
    %1291 = vmatpush.msra.mxu0 0.0
    %1292 = vmatpush.msra.mxu0 0.0
    %1293 = vmatpush.msra.mxu0 0.0
    %1294 = vmatpush.msra.mxu0 0.0
    %1295 = vmatpush.msra.mxu0 0.0
    %1296 = vmatpush.msra.mxu0 0.0
    %1297 = vmatpush.msra.mxu0 0.0
    %1298 = vmatpush.msra.mxu0 0.0
    %1299 = vmatpush.msra.mxu0 0.0
    %1300 = vmatpush.msra.mxu0 0.0
    %1301 = vmatpush.msra.mxu0 0.0
    %1302 = vmatpush.msra.mxu0 0.0
    %1303 = vmatpush.msra.mxu0 %v333
    %1304 = vmatpush.msra.mxu0 %v332
    %1305 = vmatpush.msra.mxu0 %v331
    %1306 = vmatpush.msra.mxu0 %v330
    %1307 = vmatmul.f32.gmra.mxu0 %v1289
    %v1308 = vpop.f32.mrf.mxu0
    %v1309 = vadd.f32 0.0, %v1308
    %1310 = vdwg.mxu0
    %v1311 = vadd.f32 %v1288, %v1309
    %v1312 = vld [vmem:[#allocation3] sm:$0xff]
    %v1313 = vsel %vm199, %v1283, 0
    %1315 = vmatpush.msra.mxu0 0.0
    %1316 = vmatpush.msra.mxu0 0.0
    %1317 = vmatpush.msra.mxu0 0.0
    %1318 = vmatpush.msra.mxu0 0.0
    %1319 = vmatpush.msra.mxu0 0.0
    %1320 = vmatpush.msra.mxu0 0.0
    %1321 = vmatpush.msra.mxu0 0.0
    %1322 = vmatpush.msra.mxu0 0.0
    %1323 = vmatpush.msra.mxu0 0.0
    %1324 = vmatpush.msra.mxu0 0.0
    %1325 = vmatpush.msra.mxu0 0.0
    %1326 = vmatpush.msra.mxu0 0.0
    %1327 = vmatpush.msra.mxu0 %v337
    %1328 = vmatpush.msra.mxu0 %v336
    %1329 = vmatpush.msra.mxu0 %v335
    %1330 = vmatpush.msra.mxu0 %v334
    %1331 = vmatmul.f32.gmra.mxu0 %v1313
    %v1332 = vpop.f32.mrf.mxu0
    %v1333 = vadd.f32 0.0, %v1332
    %1334 = vdwg.mxu0
    %v1335 = vadd.f32 %v1312, %v1333
    %v1336 = vxor.u32 %v1311, 2147483648
    %v1337 = vmul.f32 %v1336, 1.442695
    %v1338 = vpow.pop %v1337
    %v1339 = vadd.f32 %v1338, 1.0
    %v1340 = vrcp.pop %v1339
    %v1341 = vmul.f32 %v1339, %v1340
    %v1342 = vsub.f32 1.0, %v1341
    %v1343 = vmul.f32 %v1340, %v1342
    %v1344 = vadd.f32 %v1340, %v1343
    %vm1345 = vweird.f32 %v1339
    %vm1346 = vweird.f32 %v1340
    %vm1347 = vmor %vm1345, %vm1346
    %v1348 = vsel %vm1347, %v1340, %v1344
    %v1349 = vand.u32 2147483647, %v1339
    %vm1350 = vcmp.eq.f32.partialorder %v1349, 8.507059e+37
    %v1351 = vand.u32 %v1339, 2147483648
    %v1352 = vor.u32 1.1754944e-38, %v1351
    %v1353 = vsel %vm1350, %v1352, %v1348
    %v1354 = vmul.f32 1.0, %v1353
    %v1355 = vtanh.pop %v1311
    %v1356 = vmul.f32 %v1354, %v1231
    %1358 = vrot.lane.b32.xlu0 %v1355, 64
    %v1359 = vpop.permute.xlu0 %1358
    %v1361 = vmul.f32 %v1354, %v1359
    %1363 = vrot.lane.b32.xlu0 %v1361, 32
    %v1364 = vpop.permute.xlu0 %1363
    %v1366 = vadd.f32 %v1356, %v1364
    %v1367 = vtanh.pop %v1366
    %1369 = vrot.lane.b32.xlu0 %v1367, 64
    %v1370 = vpop.permute.xlu0 %1369
    %v1372 = vmul.f32 %v1354, %v1370
    %v1373 = vxor.u32 %v1335, 2147483648
    %v1374 = vmul.f32 %v1373, 1.442695
    %v1375 = vpow.pop %v1374
    %v1376 = vadd.f32 %v1375, 1.0
    %v1377 = vrcp.pop %v1376
    %v1378 = vmul.f32 %v1376, %v1377
    %v1379 = vsub.f32 1.0, %v1378
    %v1380 = vmul.f32 %v1377, %v1379
    %v1381 = vadd.f32 %v1377, %v1380
    %vm1382 = vweird.f32 %v1376
    %vm1383 = vweird.f32 %v1377
    %vm1384 = vmor %vm1382, %vm1383
    %v1385 = vsel %vm1384, %v1377, %v1381
    %v1386 = vand.u32 2147483647, %v1376
    %vm1387 = vcmp.eq.f32.partialorder %v1386, 8.507059e+37
    %v1388 = vand.u32 %v1376, 2147483648
    %v1389 = vor.u32 1.1754944e-38, %v1388
    %v1390 = vsel %vm1387, %v1389, %v1385
    %v1391 = vmul.f32 1.0, %v1390
    %v1392 = vtanh.pop %v1335
    %v1393 = vmul.f32 %v1391, %v1268
    %1395 = vrot.lane.b32.xlu0 %v1392, 64
    %v1396 = vpop.permute.xlu0 %1395
    %v1398 = vmul.f32 %v1391, %v1396
    %1400 = vrot.lane.b32.xlu0 %v1398, 32
    %v1401 = vpop.permute.xlu0 %1400
    %v1403 = vadd.f32 %v1393, %v1401
    %v1404 = vtanh.pop %v1403
    %1406 = vrot.lane.b32.xlu0 %v1404, 64
    %v1407 = vpop.permute.xlu0 %1406
    %v1409 = vmul.f32 %v1391, %v1407
    %1411 = vrot.lane.b32.xlu0 %v1372, 32
    %v1412 = vpop.permute.xlu0 %1411
    %s1414 = scalar_lea.vmem [#allocation4], 56
    %1415 = vst.msk [vmem:[%s1414] sm:$0xff] %vm199, %v1412
    %1417 = vrot.lane.b32.xlu0 %v1409, 32
    %v1418 = vpop.permute.xlu0 %1417
    %1420 = vst.msk [vmem:[#allocation5] sm:$0xff] %vm199, %v1418
    %v1421 = vld [vmem:[#allocation4] sm:$0xff]
    %v1422 = vld [vmem:[#allocation4 + $0x8] sm:$0xff]
    %v1423 = vld [vmem:[#allocation4 + $0x10] sm:$0xff]
    %v1424 = vld [vmem:[#allocation4 + $0x18] sm:$0xff]
    %v1425 = vld [vmem:[#allocation4 + $0x20] sm:$0xff]
    %v1426 = vld [vmem:[#allocation4 + $0x28] sm:$0xff]
    %v1427 = vld [vmem:[#allocation4 + $0x30] sm:$0xff]
    %v1428 = vld [vmem:[#allocation4 + $0x38] sm:$0xff]
    %v1429 = vld [vmem:[#allocation5] sm:$0xff]
    %v1430 = vld [vmem:[#allocation5 + $0x8] sm:$0xff]
    %v1431 = vld [vmem:[#allocation5 + $0x10] sm:$0xff]
    %v1432 = vld [vmem:[#allocation5 + $0x18] sm:$0xff]
    %v1433 = vld [vmem:[#allocation5 + $0x20] sm:$0xff]
    %v1434 = vld [vmem:[#allocation5 + $0x28] sm:$0xff]
    %v1435 = vld [vmem:[#allocation5 + $0x30] sm:$0xff]
    %v1436 = vld [vmem:[#allocation5 + $0x38] sm:$0xff]
    %v1437 = vld [vmem:[#allocation16] sm:$0xff]
    %v1438 = vld [vmem:[#allocation16 + $0x8] sm:$0xff]
    %v1439 = vld [vmem:[#allocation16 + $0x10] sm:$0xff]
    %v1440 = vld [vmem:[#allocation16 + $0x18] sm:$0xff]
    %v1441 = vld [vmem:[#allocation16 + $0x20] sm:$0xff]
    %v1442 = vld [vmem:[#allocation16 + $0x28] sm:$0xff]
    %v1443 = vld [vmem:[#allocation16 + $0x30] sm:$0xff]
    %v1444 = vld [vmem:[#allocation16 + $0x38] sm:$0xff]
    %v1446 = vsel %vm199, %v1429, 0
    %v1449 = vsel %vm199, %v1430, 0
    %v1452 = vsel %vm199, %v1431, 0
    %v1455 = vsel %vm199, %v1432, 0
    %v1458 = vsel %vm199, %v1433, 0
    %v1461 = vsel %vm199, %v1434, 0
    %v1464 = vsel %vm199, %v1435, 0
    %v1467 = vsel %vm199, %v1436, 0
    %1469 = vmatpush.msra.mxu0 0.0
    %1470 = vmatpush.msra.mxu0 0.0
    %1471 = vmatpush.msra.mxu0 0.0
    %1472 = vmatpush.msra.mxu0 0.0
    %1473 = vmatpush.msra.mxu0 0.0
    %1474 = vmatpush.msra.mxu0 0.0
    %1475 = vmatpush.msra.mxu0 0.0
    %1476 = vmatpush.msra.mxu0 0.0
    %1477 = vmatpush.msra.mxu0 0.0
    %1478 = vmatpush.msra.mxu0 0.0
    %1479 = vmatpush.msra.mxu0 0.0
    %1480 = vmatpush.msra.mxu0 0.0
    %1481 = vmatpush.msra.mxu0 %v1444
    %1482 = vmatpush.msra.mxu0 %v1443
    %1483 = vmatpush.msra.mxu0 %v1442
    %1484 = vmatpush.msra.mxu0 %v1441
    %1485 = vmatmul.f32.gmra.mxu0 %v1446
    %v1486 = vpop.f32.mrf.mxu0
    %v1487 = vadd.f32 0.0, %v1486
    %1488 = vmatmul.f32.gmra.mxu0 %v1449
    %v1489 = vpop.f32.mrf.mxu0
    %v1490 = vadd.f32 0.0, %v1489
    %1491 = vmatmul.f32.gmra.mxu0 %v1452
    %v1492 = vpop.f32.mrf.mxu0
    %v1493 = vadd.f32 0.0, %v1492
    %1494 = vmatmul.f32.gmra.mxu0 %v1455
    %v1495 = vpop.f32.mrf.mxu0
    %v1496 = vadd.f32 0.0, %v1495
    %1497 = vmatmul.f32.gmra.mxu0 %v1458
    %v1498 = vpop.f32.mrf.mxu0
    %v1499 = vadd.f32 0.0, %v1498
    %1500 = vmatmul.f32.gmra.mxu0 %v1461
    %v1501 = vpop.f32.mrf.mxu0
    %v1502 = vadd.f32 0.0, %v1501
    %1503 = vmatmul.f32.gmra.mxu0 %v1464
    %v1504 = vpop.f32.mrf.mxu0
    %v1505 = vadd.f32 0.0, %v1504
    %1506 = vmatmul.f32.gmra.mxu0 %v1467
    %v1507 = vpop.f32.mrf.mxu0
    %v1508 = vadd.f32 0.0, %v1507
    %1509 = vdwg.mxu0
    %v1511 = vsel %vm199, %v1421, 0
    %v1514 = vsel %vm199, %v1422, 0
    %v1517 = vsel %vm199, %v1423, 0
    %v1520 = vsel %vm199, %v1424, 0
    %v1523 = vsel %vm199, %v1425, 0
    %v1526 = vsel %vm199, %v1426, 0
    %v1529 = vsel %vm199, %v1427, 0
    %v1532 = vsel %vm199, %v1428, 0
    %1534 = vmatpush.msra.mxu0 0.0
    %1535 = vmatpush.msra.mxu0 0.0
    %1536 = vmatpush.msra.mxu0 0.0
    %1537 = vmatpush.msra.mxu0 0.0
    %1538 = vmatpush.msra.mxu0 0.0
    %1539 = vmatpush.msra.mxu0 0.0
    %1540 = vmatpush.msra.mxu0 0.0
    %1541 = vmatpush.msra.mxu0 0.0
    %1542 = vmatpush.msra.mxu0 0.0
    %1543 = vmatpush.msra.mxu0 0.0
    %1544 = vmatpush.msra.mxu0 0.0
    %1545 = vmatpush.msra.mxu0 0.0
    %1546 = vmatpush.msra.mxu0 %v1440
    %1547 = vmatpush.msra.mxu0 %v1439
    %1548 = vmatpush.msra.mxu0 %v1438
    %1549 = vmatpush.msra.mxu0 %v1437
    %1550 = vmatmul.f32.gmra.mxu0 %v1511
    %v1551 = vpop.f32.mrf.mxu0
    %v1552 = vadd.f32 %v1487, %v1551
    %1553 = vmatmul.f32.gmra.mxu0 %v1514
    %v1554 = vpop.f32.mrf.mxu0
    %v1555 = vadd.f32 %v1490, %v1554
    %1556 = vmatmul.f32.gmra.mxu0 %v1517
    %v1557 = vpop.f32.mrf.mxu0
    %v1558 = vadd.f32 %v1493, %v1557
    %1559 = vmatmul.f32.gmra.mxu0 %v1520
    %v1560 = vpop.f32.mrf.mxu0
    %v1561 = vadd.f32 %v1496, %v1560
    %1562 = vmatmul.f32.gmra.mxu0 %v1523
    %v1563 = vpop.f32.mrf.mxu0
    %v1564 = vadd.f32 %v1499, %v1563
    %1565 = vmatmul.f32.gmra.mxu0 %v1526
    %v1566 = vpop.f32.mrf.mxu0
    %v1567 = vadd.f32 %v1502, %v1566
    %1568 = vmatmul.f32.gmra.mxu0 %v1529
    %v1569 = vpop.f32.mrf.mxu0
    %v1570 = vadd.f32 %v1505, %v1569
    %1571 = vmatmul.f32.gmra.mxu0 %v1532
    %v1572 = vpop.f32.mrf.mxu0
    %v1573 = vadd.f32 %v1508, %v1572
    %1574 = vdwg.mxu0
    %v1575 = vld [vmem:[%s9] sm:$0x1]
    %v1577 = vperm.slane %v1575, 0
    %v1579 = vadd.f32 %v1552, %v1577
    %v1580 = vadd.f32 %v1555, %v1577
    %v1581 = vadd.f32 %v1558, %v1577
    %v1582 = vadd.f32 %v1561, %v1577
    %v1583 = vadd.f32 %v1564, %v1577
    %v1584 = vadd.f32 %v1567, %v1577
    %v1585 = vadd.f32 %v1570, %v1577
    %v1586 = vadd.f32 %v1573, %v1577
    %vm1587 = vcmask 785408
    %1588 = vst.msk [vmem:[#allocation6] sm:$0xff] %vm1587, %v1579
    %1589 = vst.msk [vmem:[#allocation6 + $0x8] sm:$0xff] %vm1587, %v1580
    %1590 = vst.msk [vmem:[#allocation6 + $0x10] sm:$0xff] %vm1587, %v1581
    %1591 = vst.msk [vmem:[#allocation6 + $0x18] sm:$0xff] %vm1587, %v1582
    %1592 = vst.msk [vmem:[#allocation6 + $0x20] sm:$0xff] %vm1587, %v1583
    %1593 = vst.msk [vmem:[#allocation6 + $0x28] sm:$0xff] %vm1587, %v1584
    %1594 = vst.msk [vmem:[#allocation6 + $0x30] sm:$0xff] %vm1587, %v1585
    %1595 = vst.msk [vmem:[#allocation6 + $0x38] sm:$0xff] %vm1587, %v1586
    %v1596 = vld [vmem:[#allocation19] sm:$0xff]
    %v1597 = vld [vmem:[#allocation19 + $0x8] sm:$0xff]
    %v1598 = vld [vmem:[#allocation19 + $0x10] sm:$0xff]
    %v1599 = vld [vmem:[#allocation19 + $0x18] sm:$0xff]
    %v1600 = vld [vmem:[#allocation19 + $0x20] sm:$0xff]
    %v1601 = vld [vmem:[#allocation19 + $0x28] sm:$0xff]
    %v1602 = vld [vmem:[#allocation19 + $0x30] sm:$0xff]
    %v1603 = vld [vmem:[#allocation19 + $0x38] sm:$0xff]
    %1604 = vmatpush.msra.mxu0 0.0
    %1605 = vmatpush.msra.mxu0 0.0
    %1606 = vmatpush.msra.mxu0 0.0
    %1607 = vmatpush.msra.mxu0 0.0
    %1608 = vmatpush.msra.mxu0 0.0
    %1609 = vmatpush.msra.mxu0 0.0
    %1610 = vmatpush.msra.mxu0 0.0
    %1611 = vmatpush.msra.mxu0 0.0
    %1612 = vmatpush.msra.mxu0 0.0
    %1613 = vmatpush.msra.mxu0 0.0
    %1614 = vmatpush.msra.mxu0 0.0
    %1615 = vmatpush.msra.mxu0 0.0
    %1616 = vmatpush.msra.mxu0 %v1603
    %1617 = vmatpush.msra.mxu0 %v1602
    %1618 = vmatpush.msra.mxu0 %v1601
    %1619 = vmatpush.msra.mxu0 %v1600
    %1620 = vmatmul.f32.gmra.mxu0 %v1446
    %v1621 = vpop.f32.mrf.mxu0
    %v1622 = vadd.f32 0.0, %v1621
    %1623 = vmatmul.f32.gmra.mxu0 %v1449
    %v1624 = vpop.f32.mrf.mxu0
    %v1625 = vadd.f32 0.0, %v1624
    %1626 = vmatmul.f32.gmra.mxu0 %v1452
    %v1627 = vpop.f32.mrf.mxu0
    %v1628 = vadd.f32 0.0, %v1627
    %1629 = vmatmul.f32.gmra.mxu0 %v1455
    %v1630 = vpop.f32.mrf.mxu0
    %v1631 = vadd.f32 0.0, %v1630
    %1632 = vmatmul.f32.gmra.mxu0 %v1458
    %v1633 = vpop.f32.mrf.mxu0
    %v1634 = vadd.f32 0.0, %v1633
    %1635 = vmatmul.f32.gmra.mxu0 %v1461
    %v1636 = vpop.f32.mrf.mxu0
    %v1637 = vadd.f32 0.0, %v1636
    %1638 = vmatmul.f32.gmra.mxu0 %v1464
    %v1639 = vpop.f32.mrf.mxu0
    %v1640 = vadd.f32 0.0, %v1639
    %1641 = vmatmul.f32.gmra.mxu0 %v1467
    %v1642 = vpop.f32.mrf.mxu0
    %v1643 = vadd.f32 0.0, %v1642
    %1644 = vdwg.mxu0
    %1645 = vmatpush.msra.mxu0 0.0
    %1646 = vmatpush.msra.mxu0 0.0
    %1647 = vmatpush.msra.mxu0 0.0
    %1648 = vmatpush.msra.mxu0 0.0
    %1649 = vmatpush.msra.mxu0 0.0
    %1650 = vmatpush.msra.mxu0 0.0
    %1651 = vmatpush.msra.mxu0 0.0
    %1652 = vmatpush.msra.mxu0 0.0
    %1653 = vmatpush.msra.mxu0 0.0
    %1654 = vmatpush.msra.mxu0 0.0
    %1655 = vmatpush.msra.mxu0 0.0
    %1656 = vmatpush.msra.mxu0 0.0
    %1657 = vmatpush.msra.mxu0 %v1599
    %1658 = vmatpush.msra.mxu0 %v1598
    %1659 = vmatpush.msra.mxu0 %v1597
    %1660 = vmatpush.msra.mxu0 %v1596
    %1661 = vmatmul.f32.gmra.mxu0 %v1511
    %v1662 = vpop.f32.mrf.mxu0
    %v1663 = vadd.f32 %v1622, %v1662
    %1664 = vmatmul.f32.gmra.mxu0 %v1514
    %v1665 = vpop.f32.mrf.mxu0
    %v1666 = vadd.f32 %v1625, %v1665
    %1667 = vmatmul.f32.gmra.mxu0 %v1517
    %v1668 = vpop.f32.mrf.mxu0
    %v1669 = vadd.f32 %v1628, %v1668
    %1670 = vmatmul.f32.gmra.mxu0 %v1520
    %v1671 = vpop.f32.mrf.mxu0
    %v1672 = vadd.f32 %v1631, %v1671
    %1673 = vmatmul.f32.gmra.mxu0 %v1523
    %v1674 = vpop.f32.mrf.mxu0
    %v1675 = vadd.f32 %v1634, %v1674
    %1676 = vmatmul.f32.gmra.mxu0 %v1526
    %v1677 = vpop.f32.mrf.mxu0
    %v1678 = vadd.f32 %v1637, %v1677
    %1679 = vmatmul.f32.gmra.mxu0 %v1529
    %v1680 = vpop.f32.mrf.mxu0
    %v1681 = vadd.f32 %v1640, %v1680
    %1682 = vmatmul.f32.gmra.mxu0 %v1532
    %v1683 = vpop.f32.mrf.mxu0
    %v1684 = vadd.f32 %v1643, %v1683
    %1685 = vdwg.mxu0
    %v1686 = vld [vmem:[%s13] sm:$0x1]
    %v1688 = vperm.slane %v1686, 0
    %v1690 = vadd.f32 %v1663, %v1688
    %v1691 = vadd.f32 %v1666, %v1688
    %v1692 = vadd.f32 %v1669, %v1688
    %v1693 = vadd.f32 %v1672, %v1688
    %v1694 = vadd.f32 %v1675, %v1688
    %v1695 = vadd.f32 %v1678, %v1688
    %v1696 = vadd.f32 %v1681, %v1688
    %v1697 = vadd.f32 %v1684, %v1688
    %1698 = vst.msk [vmem:[#allocation7] sm:$0xff] %vm1587, %v1690
    %1699 = vst.msk [vmem:[#allocation7 + $0x8] sm:$0xff] %vm1587, %v1691
    %1700 = vst.msk [vmem:[#allocation7 + $0x10] sm:$0xff] %vm1587, %v1692
    %1701 = vst.msk [vmem:[#allocation7 + $0x18] sm:$0xff] %vm1587, %v1693
    %1702 = vst.msk [vmem:[#allocation7 + $0x20] sm:$0xff] %vm1587, %v1694
    %1703 = vst.msk [vmem:[#allocation7 + $0x28] sm:$0xff] %vm1587, %v1695
    %1704 = vst.msk [vmem:[#allocation7 + $0x30] sm:$0xff] %vm1587, %v1696
    %1705 = vst.msk [vmem:[#allocation7 + $0x38] sm:$0xff] %vm1587, %v1697
    %v1706 = vld [vmem:[#allocation17] sm:$0xff]
    %v1707 = vld [vmem:[#allocation17 + $0x8] sm:$0xff]
    %v1708 = vld [vmem:[#allocation17 + $0x10] sm:$0xff]
    %v1709 = vld [vmem:[#allocation17 + $0x18] sm:$0xff]
    %v1710 = vld [vmem:[#allocation20] sm:$0xff]
    %v1711 = vld [vmem:[#allocation20 + $0x8] sm:$0xff]
    %v1712 = vld [vmem:[#allocation20 + $0x10] sm:$0xff]
    %v1713 = vld [vmem:[#allocation20 + $0x18] sm:$0xff]
    %v1714 = vld [vmem:[%s10] sm:$0x1]
    %v1716 = vperm.slane %v1714, 0
    %v1718 = vld [vmem:[%s14] sm:$0x1]
    %v1720 = vperm.slane %v1718, 0
    %1722 = vmatpush.msra.mxu0 0.0
    %1723 = vmatpush.msra.mxu0 0.0
    %1724 = vmatpush.msra.mxu0 0.0
    %1725 = vmatpush.msra.mxu0 0.0
    %1726 = vmatpush.msra.mxu0 0.0
    %1727 = vmatpush.msra.mxu0 0.0
    %1728 = vmatpush.msra.mxu0 0.0
    %1729 = vmatpush.msra.mxu0 0.0
    %1730 = vmatpush.msra.mxu0 0.0
    %1731 = vmatpush.msra.mxu0 0.0
    %1732 = vmatpush.msra.mxu0 0.0
    %1733 = vmatpush.msra.mxu0 0.0
    %1734 = vmatpush.msra.mxu0 %v1709
    %1735 = vmatpush.msra.mxu0 %v1708
    %1736 = vmatpush.msra.mxu0 %v1707
    %1737 = vmatpush.msra.mxu0 %v1706
    %1738 = vmatmul.f32.gmra.mxu0 %v340
    %v1739 = vpop.f32.mrf.mxu0
    %v1740 = vadd.f32 %v1716, %v1739
    %1741 = vdwg.mxu0
    %1742 = vmatpush.msra.mxu0 0.0
    %1743 = vmatpush.msra.mxu0 0.0
    %1744 = vmatpush.msra.mxu0 0.0
    %1745 = vmatpush.msra.mxu0 0.0
    %1746 = vmatpush.msra.mxu0 0.0
    %1747 = vmatpush.msra.mxu0 0.0
    %1748 = vmatpush.msra.mxu0 0.0
    %1749 = vmatpush.msra.mxu0 0.0
    %1750 = vmatpush.msra.mxu0 0.0
    %1751 = vmatpush.msra.mxu0 0.0
    %1752 = vmatpush.msra.mxu0 0.0
    %1753 = vmatpush.msra.mxu0 0.0
    %1754 = vmatpush.msra.mxu0 %v1713
    %1755 = vmatpush.msra.mxu0 %v1712
    %1756 = vmatpush.msra.mxu0 %v1711
    %1757 = vmatpush.msra.mxu0 %v1710
    %1758 = vmatmul.f32.gmra.mxu0 %v340
    %v1759 = vpop.f32.mrf.mxu0
    %v1760 = vadd.f32 %v1720, %v1759
    %1761 = vdwg.mxu0
    %v1762 = vld [vmem:[#allocation6] sm:$0xff]
    %v1763 = vadd.f32 %v1762, %v1740
    %v1764 = vxor.u32 %v1763, 2147483648
    %v1765 = vmul.f32 %v1764, 1.442695
    %v1766 = vpow.pop %v1765
    %v1767 = vadd.f32 %v1766, 1.0
    %v1768 = vrcp.pop %v1767
    %v1769 = vmul.f32 %v1767, %v1768
    %v1770 = vsub.f32 1.0, %v1769
    %v1771 = vmul.f32 %v1768, %v1770
    %v1772 = vadd.f32 %v1768, %v1771
    %vm1773 = vweird.f32 %v1767
    %vm1774 = vweird.f32 %v1768
    %vm1775 = vmor %vm1773, %vm1774
    %v1776 = vsel %vm1775, %v1768, %v1772
    %v1777 = vand.u32 2147483647, %v1767
    %vm1778 = vcmp.eq.f32.partialorder %v1777, 8.507059e+37
    %v1779 = vand.u32 %v1767, 2147483648
    %v1780 = vor.u32 1.1754944e-38, %v1779
    %v1781 = vsel %vm1778, %v1780, %v1776
    %v1782 = vmul.f32 1.0, %v1781
    %1784 = vrot.lane.b32.xlu0 %v1740, 64
    %v1785 = vpop.permute.xlu0 %1784
    %v1787 = vmul.f32 %v1782, %v1785
    %1789 = vrot.lane.b32.xlu0 %v1787, 64
    %v1790 = vpop.permute.xlu0 %1789
    %v1792 = vadd.f32 %v1762, %v1790
    %v1793 = vtanh.pop %v1792
    %v1794 = vsub.f32 1.0, %v1782
    %1796 = vrot.lane.b32.xlu0 %v1793, 96
    %v1797 = vpop.permute.xlu0 %1796
    %v1799 = vmul.f32 %v1794, %v1797
    %v1800 = vmul.f32 %v1782, 0.0
    %v1801 = vadd.f32 %v1799, %v1800
    %s1802 = scalar_lea.vmem [#allocation7], 56
    %v1803 = vld [vmem:[%s1802] sm:$0xff]
    %v1804 = vadd.f32 %v1803, %v1760
    %v1805 = vxor.u32 %v1804, 2147483648
    %v1806 = vmul.f32 %v1805, 1.442695
    %v1807 = vpow.pop %v1806
    %v1808 = vadd.f32 %v1807, 1.0
    %v1809 = vrcp.pop %v1808
    %v1810 = vmul.f32 %v1808, %v1809
    %v1811 = vsub.f32 1.0, %v1810
    %v1812 = vmul.f32 %v1809, %v1811
    %v1813 = vadd.f32 %v1809, %v1812
    %vm1814 = vweird.f32 %v1808
    %vm1815 = vweird.f32 %v1809
    %vm1816 = vmor %vm1814, %vm1815
    %v1817 = vsel %vm1816, %v1809, %v1813
    %v1818 = vand.u32 2147483647, %v1808
    %vm1819 = vcmp.eq.f32.partialorder %v1818, 8.507059e+37
    %v1820 = vand.u32 %v1808, 2147483648
    %v1821 = vor.u32 1.1754944e-38, %v1820
    %v1822 = vsel %vm1819, %v1821, %v1817
    %v1823 = vmul.f32 1.0, %v1822
    %1825 = vrot.lane.b32.xlu0 %v1760, 64
    %v1826 = vpop.permute.xlu0 %1825
    %v1828 = vmul.f32 %v1823, %v1826
    %1830 = vrot.lane.b32.xlu0 %v1828, 64
    %v1831 = vpop.permute.xlu0 %1830
    %v1833 = vadd.f32 %v1803, %v1831
    %v1834 = vtanh.pop %v1833
    %v1835 = vsub.f32 1.0, %v1823
    %1837 = vrot.lane.b32.xlu0 %v1834, 96
    %v1838 = vpop.permute.xlu0 %1837
    %v1840 = vmul.f32 %v1835, %v1838
    %v1841 = vmul.f32 %v1823, 0.0
    %v1842 = vadd.f32 %v1840, %v1841
    %1844 = vrot.lane.b32.xlu0 %v1801, 96
    %v1845 = vpop.permute.xlu0 %1844
    %v1846 = vsel %vm199, %v1845, 0
    %1848 = vmatpush.msra.mxu0 0.0
    %1849 = vmatpush.msra.mxu0 0.0
    %1850 = vmatpush.msra.mxu0 0.0
    %1851 = vmatpush.msra.mxu0 0.0
    %1852 = vmatpush.msra.mxu0 0.0
    %1853 = vmatpush.msra.mxu0 0.0
    %1854 = vmatpush.msra.mxu0 0.0
    %1855 = vmatpush.msra.mxu0 0.0
    %1856 = vmatpush.msra.mxu0 0.0
    %1857 = vmatpush.msra.mxu0 0.0
    %1858 = vmatpush.msra.mxu0 0.0
    %1859 = vmatpush.msra.mxu0 0.0
    %1860 = vmatpush.msra.mxu0 %v1709
    %1861 = vmatpush.msra.mxu0 %v1708
    %1862 = vmatpush.msra.mxu0 %v1707
    %1863 = vmatpush.msra.mxu0 %v1706
    %1864 = vmatmul.f32.gmra.mxu0 %v1846
    %v1865 = vpop.f32.mrf.mxu0
    %v1866 = vadd.f32 %v1716, %v1865
    %1867 = vdwg.mxu0
    %1869 = vrot.lane.b32.xlu0 %v1842, 96
    %v1870 = vpop.permute.xlu0 %1869
    %v1871 = vsel %vm199, %v1870, 0
    %1873 = vmatpush.msra.mxu0 0.0
    %1874 = vmatpush.msra.mxu0 0.0
    %1875 = vmatpush.msra.mxu0 0.0
    %1876 = vmatpush.msra.mxu0 0.0
    %1877 = vmatpush.msra.mxu0 0.0
    %1878 = vmatpush.msra.mxu0 0.0
    %1879 = vmatpush.msra.mxu0 0.0
    %1880 = vmatpush.msra.mxu0 0.0
    %1881 = vmatpush.msra.mxu0 0.0
    %1882 = vmatpush.msra.mxu0 0.0
    %1883 = vmatpush.msra.mxu0 0.0
    %1884 = vmatpush.msra.mxu0 0.0
    %1885 = vmatpush.msra.mxu0 %v1713
    %1886 = vmatpush.msra.mxu0 %v1712
    %1887 = vmatpush.msra.mxu0 %v1711
    %1888 = vmatpush.msra.mxu0 %v1710
    %1889 = vmatmul.f32.gmra.mxu0 %v1871
    %v1890 = vpop.f32.mrf.mxu0
    %v1891 = vadd.f32 %v1720, %v1890
    %1892 = vdwg.mxu0
    %s1893 = scalar_lea.vmem [#allocation6], 8
    %v1894 = vld [vmem:[%s1893] sm:$0xff]
    %v1895 = vadd.f32 %v1894, %v1866
    %v1896 = vxor.u32 %v1895, 2147483648
    %v1897 = vmul.f32 %v1896, 1.442695
    %v1898 = vpow.pop %v1897
    %v1899 = vadd.f32 %v1898, 1.0
    %v1900 = vrcp.pop %v1899
    %v1901 = vmul.f32 %v1899, %v1900
    %v1902 = vsub.f32 1.0, %v1901
    %v1903 = vmul.f32 %v1900, %v1902
    %v1904 = vadd.f32 %v1900, %v1903
    %vm1905 = vweird.f32 %v1899
    %vm1906 = vweird.f32 %v1900
    %vm1907 = vmor %vm1905, %vm1906
    %v1908 = vsel %vm1907, %v1900, %v1904
    %v1909 = vand.u32 2147483647, %v1899
    %vm1910 = vcmp.eq.f32.partialorder %v1909, 8.507059e+37
    %v1911 = vand.u32 %v1899, 2147483648
    %v1912 = vor.u32 1.1754944e-38, %v1911
    %v1913 = vsel %vm1910, %v1912, %v1908
    %v1914 = vmul.f32 1.0, %v1913
    %1916 = vrot.lane.b32.xlu0 %v1866, 64
    %v1917 = vpop.permute.xlu0 %1916
    %v1919 = vmul.f32 %v1914, %v1917
    %1921 = vrot.lane.b32.xlu0 %v1919, 64
    %v1922 = vpop.permute.xlu0 %1921
    %v1924 = vadd.f32 %v1894, %v1922
    %v1925 = vtanh.pop %v1924
    %v1926 = vsub.f32 1.0, %v1914
    %1928 = vrot.lane.b32.xlu0 %v1925, 96
    %v1929 = vpop.permute.xlu0 %1928
    %v1931 = vmul.f32 %v1926, %v1929
    %v1932 = vmul.f32 %v1914, %v1801
    %v1933 = vadd.f32 %v1931, %v1932
    %s1934 = scalar_lea.vmem [#allocation7], 48
    %v1935 = vld [vmem:[%s1934] sm:$0xff]
    %v1936 = vadd.f32 %v1935, %v1891
    %v1937 = vxor.u32 %v1936, 2147483648
    %v1938 = vmul.f32 %v1937, 1.442695
    %v1939 = vpow.pop %v1938
    %v1940 = vadd.f32 %v1939, 1.0
    %v1941 = vrcp.pop %v1940
    %v1942 = vmul.f32 %v1940, %v1941
    %v1943 = vsub.f32 1.0, %v1942
    %v1944 = vmul.f32 %v1941, %v1943
    %v1945 = vadd.f32 %v1941, %v1944
    %vm1946 = vweird.f32 %v1940
    %vm1947 = vweird.f32 %v1941
    %vm1948 = vmor %vm1946, %vm1947
    %v1949 = vsel %vm1948, %v1941, %v1945
    %v1950 = vand.u32 2147483647, %v1940
    %vm1951 = vcmp.eq.f32.partialorder %v1950, 8.507059e+37
    %v1952 = vand.u32 %v1940, 2147483648
    %v1953 = vor.u32 1.1754944e-38, %v1952
    %v1954 = vsel %vm1951, %v1953, %v1949
    %v1955 = vmul.f32 1.0, %v1954
    %1957 = vrot.lane.b32.xlu0 %v1891, 64
    %v1958 = vpop.permute.xlu0 %1957
    %v1960 = vmul.f32 %v1955, %v1958
    %1962 = vrot.lane.b32.xlu0 %v1960, 64
    %v1963 = vpop.permute.xlu0 %1962
    %v1965 = vadd.f32 %v1935, %v1963
    %v1966 = vtanh.pop %v1965
    %v1967 = vsub.f32 1.0, %v1955
    %1969 = vrot.lane.b32.xlu0 %v1966, 96
    %v1970 = vpop.permute.xlu0 %1969
    %v1972 = vmul.f32 %v1967, %v1970
    %v1973 = vmul.f32 %v1955, %v1842
    %v1974 = vadd.f32 %v1972, %v1973
    %1976 = vrot.lane.b32.xlu0 %v1933, 96
    %v1977 = vpop.permute.xlu0 %1976
    %v1978 = vsel %vm199, %v1977, 0
    %1980 = vmatpush.msra.mxu0 0.0
    %1981 = vmatpush.msra.mxu0 0.0
    %1982 = vmatpush.msra.mxu0 0.0
    %1983 = vmatpush.msra.mxu0 0.0
    %1984 = vmatpush.msra.mxu0 0.0
    %1985 = vmatpush.msra.mxu0 0.0
    %1986 = vmatpush.msra.mxu0 0.0
    %1987 = vmatpush.msra.mxu0 0.0
    %1988 = vmatpush.msra.mxu0 0.0
    %1989 = vmatpush.msra.mxu0 0.0
    %1990 = vmatpush.msra.mxu0 0.0
    %1991 = vmatpush.msra.mxu0 0.0
    %1992 = vmatpush.msra.mxu0 %v1709
    %1993 = vmatpush.msra.mxu0 %v1708
    %1994 = vmatpush.msra.mxu0 %v1707
    %1995 = vmatpush.msra.mxu0 %v1706
    %1996 = vmatmul.f32.gmra.mxu0 %v1978
    %v1997 = vpop.f32.mrf.mxu0
    %v1998 = vadd.f32 %v1716, %v1997
    %1999 = vdwg.mxu0
    %2001 = vrot.lane.b32.xlu0 %v1974, 96
    %v2002 = vpop.permute.xlu0 %2001
    %v2003 = vsel %vm199, %v2002, 0
    %2005 = vmatpush.msra.mxu0 0.0
    %2006 = vmatpush.msra.mxu0 0.0
    %2007 = vmatpush.msra.mxu0 0.0
    %2008 = vmatpush.msra.mxu0 0.0
    %2009 = vmatpush.msra.mxu0 0.0
    %2010 = vmatpush.msra.mxu0 0.0
    %2011 = vmatpush.msra.mxu0 0.0
    %2012 = vmatpush.msra.mxu0 0.0
    %2013 = vmatpush.msra.mxu0 0.0
    %2014 = vmatpush.msra.mxu0 0.0
    %2015 = vmatpush.msra.mxu0 0.0
    %2016 = vmatpush.msra.mxu0 0.0
    %2017 = vmatpush.msra.mxu0 %v1713
    %2018 = vmatpush.msra.mxu0 %v1712
    %2019 = vmatpush.msra.mxu0 %v1711
    %2020 = vmatpush.msra.mxu0 %v1710
    %2021 = vmatmul.f32.gmra.mxu0 %v2003
    %v2022 = vpop.f32.mrf.mxu0
    %v2023 = vadd.f32 %v1720, %v2022
    %2024 = vdwg.mxu0
    %s2025 = scalar_lea.vmem [#allocation6], 16
    %v2026 = vld [vmem:[%s2025] sm:$0xff]
    %v2027 = vadd.f32 %v2026, %v1998
    %v2028 = vxor.u32 %v2027, 2147483648
    %v2029 = vmul.f32 %v2028, 1.442695
    %v2030 = vpow.pop %v2029
    %v2031 = vadd.f32 %v2030, 1.0
    %v2032 = vrcp.pop %v2031
    %v2033 = vmul.f32 %v2031, %v2032
    %v2034 = vsub.f32 1.0, %v2033
    %v2035 = vmul.f32 %v2032, %v2034
    %v2036 = vadd.f32 %v2032, %v2035
    %vm2037 = vweird.f32 %v2031
    %vm2038 = vweird.f32 %v2032
    %vm2039 = vmor %vm2037, %vm2038
    %v2040 = vsel %vm2039, %v2032, %v2036
    %v2041 = vand.u32 2147483647, %v2031
    %vm2042 = vcmp.eq.f32.partialorder %v2041, 8.507059e+37
    %v2043 = vand.u32 %v2031, 2147483648
    %v2044 = vor.u32 1.1754944e-38, %v2043
    %v2045 = vsel %vm2042, %v2044, %v2040
    %v2046 = vmul.f32 1.0, %v2045
    %2048 = vrot.lane.b32.xlu0 %v1998, 64
    %v2049 = vpop.permute.xlu0 %2048
    %v2051 = vmul.f32 %v2046, %v2049
    %2053 = vrot.lane.b32.xlu0 %v2051, 64
    %v2054 = vpop.permute.xlu0 %2053
    %v2056 = vadd.f32 %v2026, %v2054
    %v2057 = vtanh.pop %v2056
    %v2058 = vsub.f32 1.0, %v2046
    %2060 = vrot.lane.b32.xlu0 %v2057, 96
    %v2061 = vpop.permute.xlu0 %2060
    %v2063 = vmul.f32 %v2058, %v2061
    %v2064 = vmul.f32 %v2046, %v1933
    %v2065 = vadd.f32 %v2063, %v2064
    %s2066 = scalar_lea.vmem [#allocation7], 40
    %v2067 = vld [vmem:[%s2066] sm:$0xff]
    %v2068 = vadd.f32 %v2067, %v2023
    %v2069 = vxor.u32 %v2068, 2147483648
    %v2070 = vmul.f32 %v2069, 1.442695
    %v2071 = vpow.pop %v2070
    %v2072 = vadd.f32 %v2071, 1.0
    %v2073 = vrcp.pop %v2072
    %v2074 = vmul.f32 %v2072, %v2073
    %v2075 = vsub.f32 1.0, %v2074
    %v2076 = vmul.f32 %v2073, %v2075
    %v2077 = vadd.f32 %v2073, %v2076
    %vm2078 = vweird.f32 %v2072
    %vm2079 = vweird.f32 %v2073
    %vm2080 = vmor %vm2078, %vm2079
    %v2081 = vsel %vm2080, %v2073, %v2077
    %v2082 = vand.u32 2147483647, %v2072
    %vm2083 = vcmp.eq.f32.partialorder %v2082, 8.507059e+37
    %v2084 = vand.u32 %v2072, 2147483648
    %v2085 = vor.u32 1.1754944e-38, %v2084
    %v2086 = vsel %vm2083, %v2085, %v2081
    %v2087 = vmul.f32 1.0, %v2086
    %2089 = vrot.lane.b32.xlu0 %v2023, 64
    %v2090 = vpop.permute.xlu0 %2089
    %v2092 = vmul.f32 %v2087, %v2090
    %2094 = vrot.lane.b32.xlu0 %v2092, 64
    %v2095 = vpop.permute.xlu0 %2094
    %v2097 = vadd.f32 %v2067, %v2095
    %v2098 = vtanh.pop %v2097
    %v2099 = vsub.f32 1.0, %v2087
    %2101 = vrot.lane.b32.xlu0 %v2098, 96
    %v2102 = vpop.permute.xlu0 %2101
    %v2104 = vmul.f32 %v2099, %v2102
    %v2105 = vmul.f32 %v2087, %v1974
    %v2106 = vadd.f32 %v2104, %v2105
    %2108 = vrot.lane.b32.xlu0 %v2065, 96
    %v2109 = vpop.permute.xlu0 %2108
    %v2110 = vsel %vm199, %v2109, 0
    %2112 = vmatpush.msra.mxu0 0.0
    %2113 = vmatpush.msra.mxu0 0.0
    %2114 = vmatpush.msra.mxu0 0.0
    %2115 = vmatpush.msra.mxu0 0.0
    %2116 = vmatpush.msra.mxu0 0.0
    %2117 = vmatpush.msra.mxu0 0.0
    %2118 = vmatpush.msra.mxu0 0.0
    %2119 = vmatpush.msra.mxu0 0.0
    %2120 = vmatpush.msra.mxu0 0.0
    %2121 = vmatpush.msra.mxu0 0.0
    %2122 = vmatpush.msra.mxu0 0.0
    %2123 = vmatpush.msra.mxu0 0.0
    %2124 = vmatpush.msra.mxu0 %v1709
    %2125 = vmatpush.msra.mxu0 %v1708
    %2126 = vmatpush.msra.mxu0 %v1707
    %2127 = vmatpush.msra.mxu0 %v1706
    %2128 = vmatmul.f32.gmra.mxu0 %v2110
    %v2129 = vpop.f32.mrf.mxu0
    %v2130 = vadd.f32 %v1716, %v2129
    %2131 = vdwg.mxu0
    %2133 = vrot.lane.b32.xlu0 %v2106, 96
    %v2134 = vpop.permute.xlu0 %2133
    %v2135 = vsel %vm199, %v2134, 0
    %2137 = vmatpush.msra.mxu0 0.0
    %2138 = vmatpush.msra.mxu0 0.0
    %2139 = vmatpush.msra.mxu0 0.0
    %2140 = vmatpush.msra.mxu0 0.0
    %2141 = vmatpush.msra.mxu0 0.0
    %2142 = vmatpush.msra.mxu0 0.0
    %2143 = vmatpush.msra.mxu0 0.0
    %2144 = vmatpush.msra.mxu0 0.0
    %2145 = vmatpush.msra.mxu0 0.0
    %2146 = vmatpush.msra.mxu0 0.0
    %2147 = vmatpush.msra.mxu0 0.0
    %2148 = vmatpush.msra.mxu0 0.0
    %2149 = vmatpush.msra.mxu0 %v1713
    %2150 = vmatpush.msra.mxu0 %v1712
    %2151 = vmatpush.msra.mxu0 %v1711
    %2152 = vmatpush.msra.mxu0 %v1710
    %2153 = vmatmul.f32.gmra.mxu0 %v2135
    %v2154 = vpop.f32.mrf.mxu0
    %v2155 = vadd.f32 %v1720, %v2154
    %2156 = vdwg.mxu0
    %s2157 = scalar_lea.vmem [#allocation6], 24
    %v2158 = vld [vmem:[%s2157] sm:$0xff]
    %v2159 = vadd.f32 %v2158, %v2130
    %v2160 = vxor.u32 %v2159, 2147483648
    %v2161 = vmul.f32 %v2160, 1.442695
    %v2162 = vpow.pop %v2161
    %v2163 = vadd.f32 %v2162, 1.0
    %v2164 = vrcp.pop %v2163
    %v2165 = vmul.f32 %v2163, %v2164
    %v2166 = vsub.f32 1.0, %v2165
    %v2167 = vmul.f32 %v2164, %v2166
    %v2168 = vadd.f32 %v2164, %v2167
    %vm2169 = vweird.f32 %v2163
    %vm2170 = vweird.f32 %v2164
    %vm2171 = vmor %vm2169, %vm2170
    %v2172 = vsel %vm2171, %v2164, %v2168
    %v2173 = vand.u32 2147483647, %v2163
    %vm2174 = vcmp.eq.f32.partialorder %v2173, 8.507059e+37
    %v2175 = vand.u32 %v2163, 2147483648
    %v2176 = vor.u32 1.1754944e-38, %v2175
    %v2177 = vsel %vm2174, %v2176, %v2172
    %v2178 = vmul.f32 1.0, %v2177
    %2180 = vrot.lane.b32.xlu0 %v2130, 64
    %v2181 = vpop.permute.xlu0 %2180
    %v2183 = vmul.f32 %v2178, %v2181
    %2185 = vrot.lane.b32.xlu0 %v2183, 64
    %v2186 = vpop.permute.xlu0 %2185
    %v2188 = vadd.f32 %v2158, %v2186
    %v2189 = vtanh.pop %v2188
    %v2190 = vsub.f32 1.0, %v2178
    %2192 = vrot.lane.b32.xlu0 %v2189, 96
    %v2193 = vpop.permute.xlu0 %2192
    %v2195 = vmul.f32 %v2190, %v2193
    %v2196 = vmul.f32 %v2178, %v2065
    %v2197 = vadd.f32 %v2195, %v2196
    %s2198 = scalar_lea.vmem [#allocation7], 32
    %v2199 = vld [vmem:[%s2198] sm:$0xff]
    %v2200 = vadd.f32 %v2199, %v2155
    %v2201 = vxor.u32 %v2200, 2147483648
    %v2202 = vmul.f32 %v2201, 1.442695
    %v2203 = vpow.pop %v2202
    %v2204 = vadd.f32 %v2203, 1.0
    %v2205 = vrcp.pop %v2204
    %v2206 = vmul.f32 %v2204, %v2205
    %v2207 = vsub.f32 1.0, %v2206
    %v2208 = vmul.f32 %v2205, %v2207
    %v2209 = vadd.f32 %v2205, %v2208
    %vm2210 = vweird.f32 %v2204
    %vm2211 = vweird.f32 %v2205
    %vm2212 = vmor %vm2210, %vm2211
    %v2213 = vsel %vm2212, %v2205, %v2209
    %v2214 = vand.u32 2147483647, %v2204
    %vm2215 = vcmp.eq.f32.partialorder %v2214, 8.507059e+37
    %v2216 = vand.u32 %v2204, 2147483648
    %v2217 = vor.u32 1.1754944e-38, %v2216
    %v2218 = vsel %vm2215, %v2217, %v2213
    %v2219 = vmul.f32 1.0, %v2218
    %2221 = vrot.lane.b32.xlu0 %v2155, 64
    %v2222 = vpop.permute.xlu0 %2221
    %v2224 = vmul.f32 %v2219, %v2222
    %2226 = vrot.lane.b32.xlu0 %v2224, 64
    %v2227 = vpop.permute.xlu0 %2226
    %v2229 = vadd.f32 %v2199, %v2227
    %v2230 = vtanh.pop %v2229
    %v2231 = vsub.f32 1.0, %v2219
    %2233 = vrot.lane.b32.xlu0 %v2230, 96
    %v2234 = vpop.permute.xlu0 %2233
    %v2236 = vmul.f32 %v2231, %v2234
    %v2237 = vmul.f32 %v2219, %v2106
    %v2238 = vadd.f32 %v2236, %v2237
    %2240 = vrot.lane.b32.xlu0 %v2197, 96
    %v2241 = vpop.permute.xlu0 %2240
    %v2242 = vsel %vm199, %v2241, 0
    %2244 = vmatpush.msra.mxu0 0.0
    %2245 = vmatpush.msra.mxu0 0.0
    %2246 = vmatpush.msra.mxu0 0.0
    %2247 = vmatpush.msra.mxu0 0.0
    %2248 = vmatpush.msra.mxu0 0.0
    %2249 = vmatpush.msra.mxu0 0.0
    %2250 = vmatpush.msra.mxu0 0.0
    %2251 = vmatpush.msra.mxu0 0.0
    %2252 = vmatpush.msra.mxu0 0.0
    %2253 = vmatpush.msra.mxu0 0.0
    %2254 = vmatpush.msra.mxu0 0.0
    %2255 = vmatpush.msra.mxu0 0.0
    %2256 = vmatpush.msra.mxu0 %v1709
    %2257 = vmatpush.msra.mxu0 %v1708
    %2258 = vmatpush.msra.mxu0 %v1707
    %2259 = vmatpush.msra.mxu0 %v1706
    %2260 = vmatmul.f32.gmra.mxu0 %v2242
    %v2261 = vpop.f32.mrf.mxu0
    %v2262 = vadd.f32 %v1716, %v2261
    %2263 = vdwg.mxu0
    %2265 = vrot.lane.b32.xlu0 %v2238, 96
    %v2266 = vpop.permute.xlu0 %2265
    %v2267 = vsel %vm199, %v2266, 0
    %2269 = vmatpush.msra.mxu0 0.0
    %2270 = vmatpush.msra.mxu0 0.0
    %2271 = vmatpush.msra.mxu0 0.0
    %2272 = vmatpush.msra.mxu0 0.0
    %2273 = vmatpush.msra.mxu0 0.0
    %2274 = vmatpush.msra.mxu0 0.0
    %2275 = vmatpush.msra.mxu0 0.0
    %2276 = vmatpush.msra.mxu0 0.0
    %2277 = vmatpush.msra.mxu0 0.0
    %2278 = vmatpush.msra.mxu0 0.0
    %2279 = vmatpush.msra.mxu0 0.0
    %2280 = vmatpush.msra.mxu0 0.0
    %2281 = vmatpush.msra.mxu0 %v1713
    %2282 = vmatpush.msra.mxu0 %v1712
    %2283 = vmatpush.msra.mxu0 %v1711
    %2284 = vmatpush.msra.mxu0 %v1710
    %2285 = vmatmul.f32.gmra.mxu0 %v2267
    %v2286 = vpop.f32.mrf.mxu0
    %v2287 = vadd.f32 %v1720, %v2286
    %2288 = vdwg.mxu0
    %s2289 = scalar_lea.vmem [#allocation6], 32
    %v2290 = vld [vmem:[%s2289] sm:$0xff]
    %v2291 = vadd.f32 %v2290, %v2262
    %v2292 = vxor.u32 %v2291, 2147483648
    %v2293 = vmul.f32 %v2292, 1.442695
    %v2294 = vpow.pop %v2293
    %v2295 = vadd.f32 %v2294, 1.0
    %v2296 = vrcp.pop %v2295
    %v2297 = vmul.f32 %v2295, %v2296
    %v2298 = vsub.f32 1.0, %v2297
    %v2299 = vmul.f32 %v2296, %v2298
    %v2300 = vadd.f32 %v2296, %v2299
    %vm2301 = vweird.f32 %v2295
    %vm2302 = vweird.f32 %v2296
    %vm2303 = vmor %vm2301, %vm2302
    %v2304 = vsel %vm2303, %v2296, %v2300
    %v2305 = vand.u32 2147483647, %v2295
    %vm2306 = vcmp.eq.f32.partialorder %v2305, 8.507059e+37
    %v2307 = vand.u32 %v2295, 2147483648
    %v2308 = vor.u32 1.1754944e-38, %v2307
    %v2309 = vsel %vm2306, %v2308, %v2304
    %v2310 = vmul.f32 1.0, %v2309
    %2312 = vrot.lane.b32.xlu0 %v2262, 64
    %v2313 = vpop.permute.xlu0 %2312
    %v2315 = vmul.f32 %v2310, %v2313
    %2317 = vrot.lane.b32.xlu0 %v2315, 64
    %v2318 = vpop.permute.xlu0 %2317
    %v2320 = vadd.f32 %v2290, %v2318
    %v2321 = vtanh.pop %v2320
    %v2322 = vsub.f32 1.0, %v2310
    %2324 = vrot.lane.b32.xlu0 %v2321, 96
    %v2325 = vpop.permute.xlu0 %2324
    %v2327 = vmul.f32 %v2322, %v2325
    %v2328 = vmul.f32 %v2310, %v2197
    %v2329 = vadd.f32 %v2327, %v2328
    %s2330 = scalar_lea.vmem [#allocation7], 24
    %v2331 = vld [vmem:[%s2330] sm:$0xff]
    %v2332 = vadd.f32 %v2331, %v2287
    %v2333 = vxor.u32 %v2332, 2147483648
    %v2334 = vmul.f32 %v2333, 1.442695
    %v2335 = vpow.pop %v2334
    %v2336 = vadd.f32 %v2335, 1.0
    %v2337 = vrcp.pop %v2336
    %v2338 = vmul.f32 %v2336, %v2337
    %v2339 = vsub.f32 1.0, %v2338
    %v2340 = vmul.f32 %v2337, %v2339
    %v2341 = vadd.f32 %v2337, %v2340
    %vm2342 = vweird.f32 %v2336
    %vm2343 = vweird.f32 %v2337
    %vm2344 = vmor %vm2342, %vm2343
    %v2345 = vsel %vm2344, %v2337, %v2341
    %v2346 = vand.u32 2147483647, %v2336
    %vm2347 = vcmp.eq.f32.partialorder %v2346, 8.507059e+37
    %v2348 = vand.u32 %v2336, 2147483648
    %v2349 = vor.u32 1.1754944e-38, %v2348
    %v2350 = vsel %vm2347, %v2349, %v2345
    %v2351 = vmul.f32 1.0, %v2350
    %2353 = vrot.lane.b32.xlu0 %v2287, 64
    %v2354 = vpop.permute.xlu0 %2353
    %v2356 = vmul.f32 %v2351, %v2354
    %2358 = vrot.lane.b32.xlu0 %v2356, 64
    %v2359 = vpop.permute.xlu0 %2358
    %v2361 = vadd.f32 %v2331, %v2359
    %v2362 = vtanh.pop %v2361
    %v2363 = vsub.f32 1.0, %v2351
    %2365 = vrot.lane.b32.xlu0 %v2362, 96
    %v2366 = vpop.permute.xlu0 %2365
    %v2368 = vmul.f32 %v2363, %v2366
    %v2369 = vmul.f32 %v2351, %v2238
    %v2370 = vadd.f32 %v2368, %v2369
    %2372 = vrot.lane.b32.xlu0 %v2329, 96
    %v2373 = vpop.permute.xlu0 %2372
    %v2374 = vsel %vm199, %v2373, 0
    %2376 = vmatpush.msra.mxu0 0.0
    %2377 = vmatpush.msra.mxu0 0.0
    %2378 = vmatpush.msra.mxu0 0.0
    %2379 = vmatpush.msra.mxu0 0.0
    %2380 = vmatpush.msra.mxu0 0.0
    %2381 = vmatpush.msra.mxu0 0.0
    %2382 = vmatpush.msra.mxu0 0.0
    %2383 = vmatpush.msra.mxu0 0.0
    %2384 = vmatpush.msra.mxu0 0.0
    %2385 = vmatpush.msra.mxu0 0.0
    %2386 = vmatpush.msra.mxu0 0.0
    %2387 = vmatpush.msra.mxu0 0.0
    %2388 = vmatpush.msra.mxu0 %v1709
    %2389 = vmatpush.msra.mxu0 %v1708
    %2390 = vmatpush.msra.mxu0 %v1707
    %2391 = vmatpush.msra.mxu0 %v1706
    %2392 = vmatmul.f32.gmra.mxu0 %v2374
    %v2393 = vpop.f32.mrf.mxu0
    %v2394 = vadd.f32 %v1716, %v2393
    %2395 = vdwg.mxu0
    %2397 = vrot.lane.b32.xlu0 %v2370, 96
    %v2398 = vpop.permute.xlu0 %2397
    %v2399 = vsel %vm199, %v2398, 0
    %2401 = vmatpush.msra.mxu0 0.0
    %2402 = vmatpush.msra.mxu0 0.0
    %2403 = vmatpush.msra.mxu0 0.0
    %2404 = vmatpush.msra.mxu0 0.0
    %2405 = vmatpush.msra.mxu0 0.0
    %2406 = vmatpush.msra.mxu0 0.0
    %2407 = vmatpush.msra.mxu0 0.0
    %2408 = vmatpush.msra.mxu0 0.0
    %2409 = vmatpush.msra.mxu0 0.0
    %2410 = vmatpush.msra.mxu0 0.0
    %2411 = vmatpush.msra.mxu0 0.0
    %2412 = vmatpush.msra.mxu0 0.0
    %2413 = vmatpush.msra.mxu0 %v1713
    %2414 = vmatpush.msra.mxu0 %v1712
    %2415 = vmatpush.msra.mxu0 %v1711
    %2416 = vmatpush.msra.mxu0 %v1710
    %2417 = vmatmul.f32.gmra.mxu0 %v2399
    %v2418 = vpop.f32.mrf.mxu0
    %v2419 = vadd.f32 %v1720, %v2418
    %2420 = vdwg.mxu0
    %s2421 = scalar_lea.vmem [#allocation6], 40
    %v2422 = vld [vmem:[%s2421] sm:$0xff]
    %v2423 = vadd.f32 %v2422, %v2394
    %v2424 = vxor.u32 %v2423, 2147483648
    %v2425 = vmul.f32 %v2424, 1.442695
    %v2426 = vpow.pop %v2425
    %v2427 = vadd.f32 %v2426, 1.0
    %v2428 = vrcp.pop %v2427
    %v2429 = vmul.f32 %v2427, %v2428
    %v2430 = vsub.f32 1.0, %v2429
    %v2431 = vmul.f32 %v2428, %v2430
    %v2432 = vadd.f32 %v2428, %v2431
    %vm2433 = vweird.f32 %v2427
    %vm2434 = vweird.f32 %v2428
    %vm2435 = vmor %vm2433, %vm2434
    %v2436 = vsel %vm2435, %v2428, %v2432
    %v2437 = vand.u32 2147483647, %v2427
    %vm2438 = vcmp.eq.f32.partialorder %v2437, 8.507059e+37
    %v2439 = vand.u32 %v2427, 2147483648
    %v2440 = vor.u32 1.1754944e-38, %v2439
    %v2441 = vsel %vm2438, %v2440, %v2436
    %v2442 = vmul.f32 1.0, %v2441
    %2444 = vrot.lane.b32.xlu0 %v2394, 64
    %v2445 = vpop.permute.xlu0 %2444
    %v2447 = vmul.f32 %v2442, %v2445
    %2449 = vrot.lane.b32.xlu0 %v2447, 64
    %v2450 = vpop.permute.xlu0 %2449
    %v2452 = vadd.f32 %v2422, %v2450
    %v2453 = vtanh.pop %v2452
    %v2454 = vsub.f32 1.0, %v2442
    %2456 = vrot.lane.b32.xlu0 %v2453, 96
    %v2457 = vpop.permute.xlu0 %2456
    %v2459 = vmul.f32 %v2454, %v2457
    %v2460 = vmul.f32 %v2442, %v2329
    %v2461 = vadd.f32 %v2459, %v2460
    %s2462 = scalar_lea.vmem [#allocation7], 16
    %v2463 = vld [vmem:[%s2462] sm:$0xff]
    %v2464 = vadd.f32 %v2463, %v2419
    %v2465 = vxor.u32 %v2464, 2147483648
    %v2466 = vmul.f32 %v2465, 1.442695
    %v2467 = vpow.pop %v2466
    %v2468 = vadd.f32 %v2467, 1.0
    %v2469 = vrcp.pop %v2468
    %v2470 = vmul.f32 %v2468, %v2469
    %v2471 = vsub.f32 1.0, %v2470
    %v2472 = vmul.f32 %v2469, %v2471
    %v2473 = vadd.f32 %v2469, %v2472
    %vm2474 = vweird.f32 %v2468
    %vm2475 = vweird.f32 %v2469
    %vm2476 = vmor %vm2474, %vm2475
    %v2477 = vsel %vm2476, %v2469, %v2473
    %v2478 = vand.u32 2147483647, %v2468
    %vm2479 = vcmp.eq.f32.partialorder %v2478, 8.507059e+37
    %v2480 = vand.u32 %v2468, 2147483648
    %v2481 = vor.u32 1.1754944e-38, %v2480
    %v2482 = vsel %vm2479, %v2481, %v2477
    %v2483 = vmul.f32 1.0, %v2482
    %2485 = vrot.lane.b32.xlu0 %v2419, 64
    %v2486 = vpop.permute.xlu0 %2485
    %v2488 = vmul.f32 %v2483, %v2486
    %2490 = vrot.lane.b32.xlu0 %v2488, 64
    %v2491 = vpop.permute.xlu0 %2490
    %v2493 = vadd.f32 %v2463, %v2491
    %v2494 = vtanh.pop %v2493
    %v2495 = vsub.f32 1.0, %v2483
    %2497 = vrot.lane.b32.xlu0 %v2494, 96
    %v2498 = vpop.permute.xlu0 %2497
    %v2500 = vmul.f32 %v2495, %v2498
    %v2501 = vmul.f32 %v2483, %v2370
    %v2502 = vadd.f32 %v2500, %v2501
    %2504 = vrot.lane.b32.xlu0 %v2461, 96
    %v2505 = vpop.permute.xlu0 %2504
    %v2506 = vsel %vm199, %v2505, 0
    %2508 = vmatpush.msra.mxu0 0.0
    %2509 = vmatpush.msra.mxu0 0.0
    %2510 = vmatpush.msra.mxu0 0.0
    %2511 = vmatpush.msra.mxu0 0.0
    %2512 = vmatpush.msra.mxu0 0.0
    %2513 = vmatpush.msra.mxu0 0.0
    %2514 = vmatpush.msra.mxu0 0.0
    %2515 = vmatpush.msra.mxu0 0.0
    %2516 = vmatpush.msra.mxu0 0.0
    %2517 = vmatpush.msra.mxu0 0.0
    %2518 = vmatpush.msra.mxu0 0.0
    %2519 = vmatpush.msra.mxu0 0.0
    %2520 = vmatpush.msra.mxu0 %v1709
    %2521 = vmatpush.msra.mxu0 %v1708
    %2522 = vmatpush.msra.mxu0 %v1707
    %2523 = vmatpush.msra.mxu0 %v1706
    %2524 = vmatmul.f32.gmra.mxu0 %v2506
    %v2525 = vpop.f32.mrf.mxu0
    %v2526 = vadd.f32 %v1716, %v2525
    %2527 = vdwg.mxu0
    %2529 = vrot.lane.b32.xlu0 %v2502, 96
    %v2530 = vpop.permute.xlu0 %2529
    %v2531 = vsel %vm199, %v2530, 0
    %2533 = vmatpush.msra.mxu0 0.0
    %2534 = vmatpush.msra.mxu0 0.0
    %2535 = vmatpush.msra.mxu0 0.0
    %2536 = vmatpush.msra.mxu0 0.0
    %2537 = vmatpush.msra.mxu0 0.0
    %2538 = vmatpush.msra.mxu0 0.0
    %2539 = vmatpush.msra.mxu0 0.0
    %2540 = vmatpush.msra.mxu0 0.0
    %2541 = vmatpush.msra.mxu0 0.0
    %2542 = vmatpush.msra.mxu0 0.0
    %2543 = vmatpush.msra.mxu0 0.0
    %2544 = vmatpush.msra.mxu0 0.0
    %2545 = vmatpush.msra.mxu0 %v1713
    %2546 = vmatpush.msra.mxu0 %v1712
    %2547 = vmatpush.msra.mxu0 %v1711
    %2548 = vmatpush.msra.mxu0 %v1710
    %2549 = vmatmul.f32.gmra.mxu0 %v2531
    %v2550 = vpop.f32.mrf.mxu0
    %v2551 = vadd.f32 %v1720, %v2550
    %2552 = vdwg.mxu0
    %s2553 = scalar_lea.vmem [#allocation6], 48
    %v2554 = vld [vmem:[%s2553] sm:$0xff]
    %v2555 = vadd.f32 %v2554, %v2526
    %v2556 = vxor.u32 %v2555, 2147483648
    %v2557 = vmul.f32 %v2556, 1.442695
    %v2558 = vpow.pop %v2557
    %v2559 = vadd.f32 %v2558, 1.0
    %v2560 = vrcp.pop %v2559
    %v2561 = vmul.f32 %v2559, %v2560
    %v2562 = vsub.f32 1.0, %v2561
    %v2563 = vmul.f32 %v2560, %v2562
    %v2564 = vadd.f32 %v2560, %v2563
    %vm2565 = vweird.f32 %v2559
    %vm2566 = vweird.f32 %v2560
    %vm2567 = vmor %vm2565, %vm2566
    %v2568 = vsel %vm2567, %v2560, %v2564
    %v2569 = vand.u32 2147483647, %v2559
    %vm2570 = vcmp.eq.f32.partialorder %v2569, 8.507059e+37
    %v2571 = vand.u32 %v2559, 2147483648
    %v2572 = vor.u32 1.1754944e-38, %v2571
    %v2573 = vsel %vm2570, %v2572, %v2568
    %v2574 = vmul.f32 1.0, %v2573
    %2576 = vrot.lane.b32.xlu0 %v2526, 64
    %v2577 = vpop.permute.xlu0 %2576
    %v2579 = vmul.f32 %v2574, %v2577
    %2581 = vrot.lane.b32.xlu0 %v2579, 64
    %v2582 = vpop.permute.xlu0 %2581
    %v2584 = vadd.f32 %v2554, %v2582
    %v2585 = vtanh.pop %v2584
    %v2586 = vsub.f32 1.0, %v2574
    %2588 = vrot.lane.b32.xlu0 %v2585, 96
    %v2589 = vpop.permute.xlu0 %2588
    %v2591 = vmul.f32 %v2586, %v2589
    %v2592 = vmul.f32 %v2574, %v2461
    %v2593 = vadd.f32 %v2591, %v2592
    %s2594 = scalar_lea.vmem [#allocation7], 8
    %v2595 = vld [vmem:[%s2594] sm:$0xff]
    %v2596 = vadd.f32 %v2595, %v2551
    %v2597 = vxor.u32 %v2596, 2147483648
    %v2598 = vmul.f32 %v2597, 1.442695
    %v2599 = vpow.pop %v2598
    %v2600 = vadd.f32 %v2599, 1.0
    %v2601 = vrcp.pop %v2600
    %v2602 = vmul.f32 %v2600, %v2601
    %v2603 = vsub.f32 1.0, %v2602
    %v2604 = vmul.f32 %v2601, %v2603
    %v2605 = vadd.f32 %v2601, %v2604
    %vm2606 = vweird.f32 %v2600
    %vm2607 = vweird.f32 %v2601
    %vm2608 = vmor %vm2606, %vm2607
    %v2609 = vsel %vm2608, %v2601, %v2605
    %v2610 = vand.u32 2147483647, %v2600
    %vm2611 = vcmp.eq.f32.partialorder %v2610, 8.507059e+37
    %v2612 = vand.u32 %v2600, 2147483648
    %v2613 = vor.u32 1.1754944e-38, %v2612
    %v2614 = vsel %vm2611, %v2613, %v2609
    %v2615 = vmul.f32 1.0, %v2614
    %2617 = vrot.lane.b32.xlu0 %v2551, 64
    %v2618 = vpop.permute.xlu0 %2617
    %v2620 = vmul.f32 %v2615, %v2618
    %2622 = vrot.lane.b32.xlu0 %v2620, 64
    %v2623 = vpop.permute.xlu0 %2622
    %v2625 = vadd.f32 %v2595, %v2623
    %v2626 = vtanh.pop %v2625
    %v2627 = vsub.f32 1.0, %v2615
    %2629 = vrot.lane.b32.xlu0 %v2626, 96
    %v2630 = vpop.permute.xlu0 %2629
    %v2632 = vmul.f32 %v2627, %v2630
    %v2633 = vmul.f32 %v2615, %v2502
    %v2634 = vadd.f32 %v2632, %v2633
    %2636 = vrot.lane.b32.xlu0 %v2593, 96
    %v2637 = vpop.permute.xlu0 %2636
    %v2638 = vsel %vm199, %v2637, 0
    %2640 = vmatpush.msra.mxu0 0.0
    %2641 = vmatpush.msra.mxu0 0.0
    %2642 = vmatpush.msra.mxu0 0.0
    %2643 = vmatpush.msra.mxu0 0.0
    %2644 = vmatpush.msra.mxu0 0.0
    %2645 = vmatpush.msra.mxu0 0.0
    %2646 = vmatpush.msra.mxu0 0.0
    %2647 = vmatpush.msra.mxu0 0.0
    %2648 = vmatpush.msra.mxu0 0.0
    %2649 = vmatpush.msra.mxu0 0.0
    %2650 = vmatpush.msra.mxu0 0.0
    %2651 = vmatpush.msra.mxu0 0.0
    %2652 = vmatpush.msra.mxu0 %v1709
    %2653 = vmatpush.msra.mxu0 %v1708
    %2654 = vmatpush.msra.mxu0 %v1707
    %2655 = vmatpush.msra.mxu0 %v1706
    %2656 = vmatmul.f32.gmra.mxu0 %v2638
    %v2657 = vpop.f32.mrf.mxu0
    %v2658 = vadd.f32 %v1716, %v2657
    %2659 = vdwg.mxu0
    %2661 = vrot.lane.b32.xlu0 %v2634, 96
    %v2662 = vpop.permute.xlu0 %2661
    %v2663 = vsel %vm199, %v2662, 0
    %2665 = vmatpush.msra.mxu0 0.0
    %2666 = vmatpush.msra.mxu0 0.0
    %2667 = vmatpush.msra.mxu0 0.0
    %2668 = vmatpush.msra.mxu0 0.0
    %2669 = vmatpush.msra.mxu0 0.0
    %2670 = vmatpush.msra.mxu0 0.0
    %2671 = vmatpush.msra.mxu0 0.0
    %2672 = vmatpush.msra.mxu0 0.0
    %2673 = vmatpush.msra.mxu0 0.0
    %2674 = vmatpush.msra.mxu0 0.0
    %2675 = vmatpush.msra.mxu0 0.0
    %2676 = vmatpush.msra.mxu0 0.0
    %2677 = vmatpush.msra.mxu0 %v1713
    %2678 = vmatpush.msra.mxu0 %v1712
    %2679 = vmatpush.msra.mxu0 %v1711
    %2680 = vmatpush.msra.mxu0 %v1710
    %2681 = vmatmul.f32.gmra.mxu0 %v2663
    %v2682 = vpop.f32.mrf.mxu0
    %v2683 = vadd.f32 %v1720, %v2682
    %2684 = vdwg.mxu0
    %s2685 = scalar_lea.vmem [#allocation6], 56
    %v2686 = vld [vmem:[%s2685] sm:$0xff]
    %v2687 = vadd.f32 %v2686, %v2658
    %v2688 = vxor.u32 %v2687, 2147483648
    %v2689 = vmul.f32 %v2688, 1.442695
    %v2690 = vpow.pop %v2689
    %v2691 = vadd.f32 %v2690, 1.0
    %v2692 = vrcp.pop %v2691
    %v2693 = vmul.f32 %v2691, %v2692
    %v2694 = vsub.f32 1.0, %v2693
    %v2695 = vmul.f32 %v2692, %v2694
    %v2696 = vadd.f32 %v2692, %v2695
    %vm2697 = vweird.f32 %v2691
    %vm2698 = vweird.f32 %v2692
    %vm2699 = vmor %vm2697, %vm2698
    %v2700 = vsel %vm2699, %v2692, %v2696
    %v2701 = vand.u32 2147483647, %v2691
    %vm2702 = vcmp.eq.f32.partialorder %v2701, 8.507059e+37
    %v2703 = vand.u32 %v2691, 2147483648
    %v2704 = vor.u32 1.1754944e-38, %v2703
    %v2705 = vsel %vm2702, %v2704, %v2700
    %v2706 = vmul.f32 1.0, %v2705
    %2708 = vrot.lane.b32.xlu0 %v2658, 64
    %v2709 = vpop.permute.xlu0 %2708
    %v2711 = vmul.f32 %v2706, %v2709
    %2713 = vrot.lane.b32.xlu0 %v2711, 64
    %v2714 = vpop.permute.xlu0 %2713
    %v2716 = vadd.f32 %v2686, %v2714
    %v2717 = vtanh.pop %v2716
    %v2718 = vsub.f32 1.0, %v2706
    %2720 = vrot.lane.b32.xlu0 %v2717, 96
    %v2721 = vpop.permute.xlu0 %2720
    %v2723 = vmul.f32 %v2718, %v2721
    %v2724 = vmul.f32 %v2706, %v2593
    %v2725 = vadd.f32 %v2723, %v2724
    %v2726 = vld [vmem:[#allocation7] sm:$0xff]
    %v2727 = vadd.f32 %v2726, %v2683
    %v2728 = vxor.u32 %v2727, 2147483648
    %v2729 = vmul.f32 %v2728, 1.442695
    %v2730 = vpow.pop %v2729
    %v2731 = vadd.f32 %v2730, 1.0
    %v2732 = vrcp.pop %v2731
    %v2733 = vmul.f32 %v2731, %v2732
    %v2734 = vsub.f32 1.0, %v2733
    %v2735 = vmul.f32 %v2732, %v2734
    %v2736 = vadd.f32 %v2732, %v2735
    %vm2737 = vweird.f32 %v2731
    %vm2738 = vweird.f32 %v2732
    %vm2739 = vmor %vm2737, %vm2738
    %v2740 = vsel %vm2739, %v2732, %v2736
    %v2741 = vand.u32 2147483647, %v2731
    %vm2742 = vcmp.eq.f32.partialorder %v2741, 8.507059e+37
    %v2743 = vand.u32 %v2731, 2147483648
    %v2744 = vor.u32 1.1754944e-38, %v2743
    %v2745 = vsel %vm2742, %v2744, %v2740
    %v2746 = vmul.f32 1.0, %v2745
    %2748 = vrot.lane.b32.xlu0 %v2683, 64
    %v2749 = vpop.permute.xlu0 %2748
    %v2751 = vmul.f32 %v2746, %v2749
    %2753 = vrot.lane.b32.xlu0 %v2751, 64
    %v2754 = vpop.permute.xlu0 %2753
    %v2756 = vadd.f32 %v2726, %v2754
    %v2757 = vtanh.pop %v2756
    %v2758 = vsub.f32 1.0, %v2746
    %2760 = vrot.lane.b32.xlu0 %v2757, 96
    %v2761 = vpop.permute.xlu0 %2760
    %v2763 = vmul.f32 %v2758, %v2761
    %v2764 = vmul.f32 %v2746, %v2634
    %v2765 = vadd.f32 %v2763, %v2764
    %v2766 = vld [vmem:[%s15] sm:$0xff]
    %v2767 = vld [vmem:[%s15 + $0x8] sm:$0xff]
    %v2768 = vld [vmem:[%s15 + $0x10] sm:$0xff]
    %v2769 = vld [vmem:[%s15 + $0x18] sm:$0xff]
    %v2770 = vld [vmem:[%s15 + $0x20] sm:$0xff]
    %v2771 = vld [vmem:[%s15 + $0x28] sm:$0xff]
    %v2772 = vld [vmem:[%s15 + $0x30] sm:$0xff]
    %v2773 = vld [vmem:[%s15 + $0x38] sm:$0xff]
    %2775 = vrot.lane.b32.xlu0 %v2765, 96
    %v2776 = vpop.permute.xlu0 %2775
    %v2777 = vsel %vm199, %v2776, 0
    %2779 = vmatpush.msra.mxu0 0.0
    %2780 = vmatpush.msra.mxu0 0.0
    %2781 = vmatpush.msra.mxu0 0.0
    %2782 = vmatpush.msra.mxu0 0.0
    %2783 = vmatpush.msra.mxu0 0.0
    %2784 = vmatpush.msra.mxu0 0.0
    %2785 = vmatpush.msra.mxu0 0.0
    %2786 = vmatpush.msra.mxu0 0.0
    %2787 = vmatpush.msra.mxu0 0.0
    %2788 = vmatpush.msra.mxu0 0.0
    %2789 = vmatpush.msra.mxu0 0.0
    %2790 = vmatpush.msra.mxu0 0.0
    %2791 = vmatpush.msra.mxu0 %v2773
    %2792 = vmatpush.msra.mxu0 %v2772
    %2793 = vmatpush.msra.mxu0 %v2771
    %2794 = vmatpush.msra.mxu0 %v2770
    %2795 = vmatmul.f32.gmra.mxu0 %v2777
    %v2796 = vpop.f32.mrf.mxu0
    %v2797 = vadd.f32 0.0, %v2796
    %2798 = vdwg.mxu0
    %2800 = vrot.lane.b32.xlu0 %v2725, 96
    %v2801 = vpop.permute.xlu0 %2800
    %v2802 = vsel %vm199, %v2801, 0
    %2804 = vmatpush.msra.mxu0 0.0
    %2805 = vmatpush.msra.mxu0 0.0
    %2806 = vmatpush.msra.mxu0 0.0
    %2807 = vmatpush.msra.mxu0 0.0
    %2808 = vmatpush.msra.mxu0 0.0
    %2809 = vmatpush.msra.mxu0 0.0
    %2810 = vmatpush.msra.mxu0 0.0
    %2811 = vmatpush.msra.mxu0 0.0
    %2812 = vmatpush.msra.mxu0 0.0
    %2813 = vmatpush.msra.mxu0 0.0
    %2814 = vmatpush.msra.mxu0 0.0
    %2815 = vmatpush.msra.mxu0 0.0
    %2816 = vmatpush.msra.mxu0 %v2769
    %2817 = vmatpush.msra.mxu0 %v2768
    %2818 = vmatpush.msra.mxu0 %v2767
    %2819 = vmatpush.msra.mxu0 %v2766
    %2820 = vmatmul.f32.gmra.mxu0 %v2802
    %v2821 = vpop.f32.mrf.mxu0
    %v2822 = vadd.f32 %v2797, %v2821
    %2823 = vdwg.mxu0
    %v2824 = vld [vmem:[#allocation8] sm:$0x1]
    %v2826 = vperm.slane %v2824, 0
    %v2828 = vadd.f32 %v2822, %v2826
    %vm2829 = vcmask 7168
    %2830 = vst.msk [vmem:[%s17] sm:$0xff] %vm2829, %v2828
    // Predicated region
    $region102: #{tpu_custom_call.1} parent=1 // pred_check
      _
    $region103: #{tpu_custom_call.1} parent=1 // pred_check_branch
      %2832 = sbr.rel (0) target = $region105
    $region104: #{tpu_custom_call.1} parent=1 // pred_region
      _
    $region105: #{tpu_custom_call.1} parent=1 // pred_fallthru
      _
    // Predicated region
    $region106: #{tpu_custom_call.1} parent=1 // pred_check
      _
    $region107: #{tpu_custom_call.1} parent=1 // pred_check_branch
      %2834 = sbr.rel (0) target = $region109
    $region108: #{tpu_custom_call.1} parent=1 // pred_region
      _
    $region109: #{tpu_custom_call.1} parent=1 // pred_fallthru
      _
    %2835 = vsyncpa [#allocation10], 1
    %2836 = vsyncpa [#allocation12], 1
    %2837 = vsyncpa [#allocation15], 1
    %2838 = vsyncpa [#allocation18], 1
    %2839 = vsyncpa [#allocation21], 1

</llo_original>
